<compile_context>
chip_gen: v7x
topology: tpu7x:2x2x1
jax: 0.10.0
libtpu: 0.0.40
codegen_flags: <defaults>
</compile_context>

<pallas_src>
import jax
import jax.numpy as jnp
import numpy as np
from jax import lax
from jax.experimental import pallas as pl
from jax.experimental.pallas import tpu as pltpu

H = 32          # hidden_size
V = 64          # output_size (vocab)
L = 16          # max_length (attention span)
N_LAYERS = 1

OUT_WIDTH = 128                  # fused lane-dense output row
PAD_W = OUT_WIDTH - V - H - L    # 16


def _round_up(x, m):
    return ((x + m - 1) // m) * m


def attn_decoder_seq_kernel(enc_ref, h0_ref, emb_ref,
                            w_pro_ref, b_pro_ref,
                            w_h_ref, b_h_ref,
                            w_x_ref, w_ca_ref,
                            w_out_ref, b_out_ref,
                            out_ref,
                            pre_att, pre_comb, h_hist, e_hist):
    """Decode T_pad steps.

    enc_ref:   (L, H)       encoder outputs
    h0_ref:    (1, H)       initial hidden
    emb_ref:   (T_pad, H)   embedded tokens (zero padded to multiple of 8)
    w_pro_ref: (H, L+H)     [W_attn_emb | W_comb_emb]
    b_pro_ref: (1, L+H)     [b_attn     | b_comb    ]
    w_h_ref:   (H, 4H+L)    [W_gru_h (r|z|0|n) | W_attn_h]
    b_h_ref:   (1, 4H+L)    [b_gru             | 0       ]
    w_x_ref:   (H, 4H)      W_gru_x (r|z|n|0)
    w_ca_ref:  (H, H)       W_comb_applied
    w_out_ref: (H, V), b_out_ref: (1, V)
    out_ref:   (T_pad, 128) per-step [logp(V) | hidden(H) | attn_w(L) | pad]
    """
    f32 = jnp.float32
    t_pad = out_ref.shape[0]

    # ---- prologue: batched emb-dependent dot (T_pad LHS rows of MXU work) ----
    pre = (jnp.dot(emb_ref[...], w_pro_ref[...], preferred_element_type=f32)
           + b_pro_ref[...])                                  # (T_pad, L+H)
    pre_att[...] = pre[:, 0:L]
    pre_comb[...] = pre[:, L:L + H]

    def step(t, h):
        # TODO(synk): nn.Dropout(p=0.1) on the embedded input is train-time
        # stochastic masking; eval semantics (identity) are used here.

        # Single h-dependent dot at top of step: GRU gate h-half + attn h-half.
        hdot = (jnp.dot(h, w_h_ref[...], preferred_element_type=f32)
                + b_h_ref[...])                               # (1, 4H+L)
        g_h = hdot[:, 0:4 * H]                                # gate h-contribution

        # ---- attention logits = emb half (prologue) + h half -----------------
        att = pre_att[pl.ds(t, 1), :] + hdot[:, 4 * H:4 * H + L]   # (1, L)
        att = att - jnp.max(att, axis=-1, keepdims=True)
        e = jnp.exp(att)
        s = jnp.sum(e, axis=-1, keepdims=True)
        inv = pl.reciprocal(s, approx=True)                   # EUP slot
        inv = inv * (2.0 - s * inv)                           # one Newton step
        # reciprocal runs concurrently with the applied MXU dot:
        applied = jnp.dot(e, enc_ref[...], preferred_element_type=f32) * inv  # (1,H)

        # ---- attn_combine = emb half (prologue) + applied half ---------------
        x = pre_comb[pl.ds(t, 1), :] + jnp.dot(
            applied, w_ca_ref[...], preferred_element_type=f32)      # (1, H)

        # ---- n_layers x (relu -> GRU cell); h-half of gates already in g_h ---
        for layer in range(N_LAYERS):
            x = jnp.maximum(x, 0.0)                           # F.relu
            if layer > 0:                                     # re-derive h-half
                g_h = (jnp.dot(h, w_h_ref[...], preferred_element_type=f32)
                       + b_h_ref[...])[:, 0:4 * H]
            g = g_h + jnp.dot(x, w_x_ref[...], preferred_element_type=f32)  # (1,4H)
            r = jax.nn.sigmoid(g[:, 0:H])
            z = jax.nn.sigmoid(g[:, H:2 * H])
            n = jnp.tanh(g[:, 2 * H:3 * H] + r * g[:, 3 * H:4 * H])
            h = (1.0 - z) * n + z * h
            x = h

        # Stash recurrence outputs; heavy output math happens in the epilogue.
        h_hist[pl.ds(t, 1), :] = h
        e_hist[pl.ds(t, 1), :] = e
        return h

    lax.fori_loop(0, t_pad, step, h0_ref[...], unroll=True)

    # ---- epilogue: batched output projection / softmaxes / one dense store ---
    hs = h_hist[...]                                          # (T_pad, H)
    logits = (jnp.dot(hs, w_out_ref[...], preferred_element_type=f32)
              + b_out_ref[...])                               # (T_pad, V)
    m = jnp.max(logits, axis=-1, keepdims=True)
    sh = logits - m
    logp = sh - jnp.log(jnp.sum(jnp.exp(sh), axis=-1, keepdims=True))

    e_all = e_hist[...]                                       # (T_pad, L)
    aw = e_all / jnp.sum(e_all, axis=-1, keepdims=True)       # exact softmax

    out_ref[...] = jnp.concatenate(
        [logp, hs, aw, jnp.zeros((t_pad, PAD_W), f32)], axis=1)   # (T_pad, 128)


def pack_params(params):
    """One-time host-side packing of all weights into lane-dense blocks."""
    f32 = jnp.float32
    attn_w = params["attn_w"].astype(f32)          # (L, 2H)
    attn_b = params["attn_b"].astype(f32)          # (L,)
    comb_w = params["comb_w"].astype(f32)          # (H, 2H)
    comb_b = params["comb_b"].astype(f32)          # (H,)
    w_ih = params["gru_w_ih"].astype(f32)          # (3H, H)  rows [r|z|n]
    w_hh = params["gru_w_hh"].astype(f32)          # (3H, H)
    b_ih = params["gru_b_ih"].astype(f32)          # (3H,)
    b_hh = params["gru_b_hh"].astype(f32)          # (3H,)
    out_w = params["out_w"].astype(f32)            # (V, H)
    out_b = params["out_b"].astype(f32)            # (V,)

    # prologue (emb-dependent halves; biases folded in here)
    w_pro = jnp.concatenate([attn_w[:, :H].T, comb_w[:, :H].T], axis=1)   # (H, L+H)
    b_pro = jnp.concatenate([attn_b, comb_b])[None, :]                    # (1, L+H)

    # top-of-step h-dot: [W_gru_h (r|z|0|n) | W_attn_h]
    zeros_hh = jnp.zeros((H, H), f32)
    w_gru_h = jnp.concatenate(
        [w_hh[0:H].T, w_hh[H:2 * H].T, zeros_hh, w_hh[2 * H:3 * H].T], axis=1)
    w_h = jnp.concatenate([w_gru_h, attn_w[:, H:].T], axis=1)             # (H, 4H+L)
    b_gru = jnp.concatenate([b_ih[0:H] + b_hh[0:H],
                             b_ih[H:2 * H] + b_hh[H:2 * H],
                             b_ih[2 * H:3 * H],
                             b_hh[2 * H:3 * H]])                          # (4H,)
    b_h = jnp.concatenate([b_gru, jnp.zeros((L,), f32)])[None, :]         # (1, 4H+L)

    # post-relu x-dot: W_gru_x (r|z|n|0), 128 aligned columns
    w_x = jnp.concatenate(
        [w_ih[0:H].T, w_ih[H:2 * H].T, w_ih[2 * H:3 * H].T, zeros_hh], axis=1)

    return {"emb_table": params["emb_table"].astype(f32),
            "w_pro": w_pro, "b_pro": b_pro,
            "w_h": w_h, "b_h": b_h, "w_x": w_x,
            "w_ca": comb_w[:, H:].T,                                      # (H, H)
            "w_out": out_w.T, "b_out": out_b[None, :]}


@jax.jit
def attn_decoder_forward_seq(tokens, hidden, encoder_outputs, packed):
    """Run T decoder steps (teacher forcing) inside one Pallas kernel.

    tokens: (T,) int32; hidden: (1,1,H) f32; encoder_outputs: (L,H) f32.
    Returns per-step (log_probs (T,V), hidden (T,H), attn_weights (T,L)).
    With T=1 this is exactly the module's forward().
    """
    f32 = jnp.float32
    t_steps = tokens.shape[0]
    t_pad = _round_up(max(t_steps, 1), 8)      # unmasked epilogue stores

    emb_seq = packed["emb_table"][tokens].astype(f32)                 # (T, H)
    emb_pad = jnp.pad(emb_seq, ((0, t_pad - t_steps), (0, 0)))        # (T_pad, H)

    vmem = pl.BlockSpec(memory_space=pltpu.MemorySpace.VMEM)
    out = pl.pallas_call(
        attn_decoder_seq_kernel,
        out_shape=jax.ShapeDtypeStruct((t_pad, OUT_WIDTH), jnp.float32),
        in_specs=[vmem] * 11,
        out_specs=vmem,
        scratch_shapes=[pltpu.VMEM((t_pad, L), jnp.float32),   # pre_att
                        pltpu.VMEM((t_pad, H), jnp.float32),   # pre_comb
                        pltpu.VMEM((t_pad, H), jnp.float32),   # h_hist
                        pltpu.VMEM((t_pad, L), jnp.float32)],  # e_hist
    )(encoder_outputs.astype(f32), hidden[0].astype(f32), emb_pad,
      packed["w_pro"], packed["b_pro"], packed["w_h"], packed["b_h"],
      packed["w_x"], packed["w_ca"], packed["w_out"], packed["b_out"])

    logp = out[:t_steps, 0:V]
    hid = out[:t_steps, V:V + H]
    attn_w = out[:t_steps, V + H:V + H + L]
    return logp, hid, attn_w


def _reference_forward_seq(tokens, hidden, encoder_outputs, params):
    """Pure-JAX reference: loop the original per-step forward T times."""
    h = hidden[0]
    logps, hs, aws = [], [], []
    for t in range(tokens.shape[0]):
        emb = params["emb_table"][tokens[t:t + 1]]
        att = jnp.concatenate([emb, h], axis=1) @ params["attn_w"].T + params["attn_b"]
        aw = jax.nn.softmax(att, axis=-1)
        applied = aw @ encoder_outputs
        x = jnp.concatenate([emb, applied], axis=1) @ params["comb_w"].T + params["comb_b"]
        for _ in range(N_LAYERS):
            x = jnp.maximum(x, 0.0)
            gi = x @ params["gru_w_ih"].T + params["gru_b_ih"]
            gh = h @ params["gru_w_hh"].T + params["gru_b_hh"]
            r = jax.nn.sigmoid(gi[:, :H] + gh[:, :H])
            z = jax.nn.sigmoid(gi[:, H:2 * H] + gh[:, H:2 * H])
            n = jnp.tanh(gi[:, 2 * H:] + r * gh[:, 2 * H:])
            h = (1.0 - z) * n + z * h
            x = h
        logits = x @ params["out_w"].T + params["out_b"]
        logps.append(jax.nn.log_softmax(logits, axis=-1))
        hs.append(h)
        aws.append(aw)
    return (jnp.concatenate(logps, 0), jnp.concatenate(hs, 0),
            jnp.concatenate(aws, 0))


if __name__ == "__main__":
    key = jax.random.PRNGKey(0)
    ks = jax.random.split(key, 12)

    def u(k, shape, fan_in):
        bound = 1.0 / np.sqrt(fan_in)
        return jax.random.uniform(k, shape, jnp.float32, -bound, bound)

    params = {
        "emb_table": jax.random.normal(ks[0], (V, H), jnp.float32),
        "attn_w": u(ks[1], (L, 2 * H), 2 * H), "attn_b": u(ks[2], (L,), 2 * H),
        "comb_w": u(ks[3], (H, 2 * H), 2 * H), "comb_b": u(ks[4], (H,), 2 * H),
        "gru_w_ih": u(ks[5], (3 * H, H), H), "gru_w_hh": u(ks[6], (3 * H, H), H),
        "gru_b_ih": u(ks[7], (3 * H,), H), "gru_b_hh": u(ks[8], (3 * H,), H),
        "out_w": u(ks[9], (V, H), H), "out_b": u(ks[10], (V,), H),
    }
    packed = pack_params(params)                     # one-time host-side packing

    tokens = jnp.array([3, 7, 1, 5], dtype=jnp.int32)    # T = 4 decode steps
    hidden = jnp.zeros((1, 1, H), jnp.float32)
    encoder_outputs = jax.random.normal(ks[11], (L, H), jnp.float32)

    logp, hid_seq, attn_w = attn_decoder_forward_seq(
        tokens, hidden, encoder_outputs, packed)
    jax.block_until_ready((logp, hid_seq, attn_w))

    ref_logp, ref_hid, ref_aw = _reference_forward_seq(
        tokens, hidden, encoder_outputs, params)
    np.testing.assert_allclose(np.asarray(logp), np.asarray(ref_logp),
                               rtol=1e-4, atol=1e-4)
    np.testing.assert_allclose(np.asarray(hid_seq), np.asarray(ref_hid),
                               rtol=1e-4, atol=1e-4)
    np.testing.assert_allclose(np.asarray(attn_w), np.asarray(ref_aw),
                               rtol=1e-4, atol=1e-4)
    print("KERNEL_OK")
</pallas_src>

<mosaic_0001>
module attributes {stable_mosaic.version = 11 : i64} {
  func.func @attn_decoder_seq_kernel(%arg0: memref<16x32xf32, #tpu.memory_space<vmem>>, %arg1: memref<1x32xf32, #tpu.memory_space<vmem>>, %arg2: memref<8x32xf32, #tpu.memory_space<vmem>>, %arg3: memref<32x48xf32, #tpu.memory_space<vmem>>, %arg4: memref<1x48xf32, #tpu.memory_space<vmem>>, %arg5: memref<32x144xf32, #tpu.memory_space<vmem>>, %arg6: memref<1x144xf32, #tpu.memory_space<vmem>>, %arg7: memref<32x128xf32, #tpu.memory_space<vmem>>, %arg8: memref<32x32xf32, #tpu.memory_space<vmem>>, %arg9: memref<32x64xf32, #tpu.memory_space<vmem>>, %arg10: memref<1x64xf32, #tpu.memory_space<vmem>>, %arg11: memref<8x128xf32, #tpu.memory_space<vmem>>, %arg12: memref<8x16xf32, #tpu.memory_space<vmem>>, %arg13: memref<8x32xf32, #tpu.memory_space<vmem>>, %arg14: memref<8x32xf32, #tpu.memory_space<vmem>>, %arg15: memref<8x16xf32, #tpu.memory_space<vmem>>) attributes {dimension_semantics = [], scalar_prefetch = 0 : i64, scratch_operands = 4 : i64, tpu.core_type = #tpu.core_type<tc>} {
    %c0 = arith.constant 0 : index
    %c0_0 = arith.constant 0 : index
    %0 = vector.load %arg2[%c0, %c0_0] : memref<8x32xf32, #tpu.memory_space<vmem>>, vector<8x32xf32>
    %c0_1 = arith.constant 0 : index
    %c0_2 = arith.constant 0 : index
    %1 = vector.load %arg3[%c0_1, %c0_2] : memref<32x48xf32, #tpu.memory_space<vmem>>, vector<32x48xf32>
    %cst = arith.constant dense<0.000000e+00> : vector<8x48xf32>
    %2 = tpu.matmul %0, %1, %cst {dimension_numbers = #tpu.dot_dimension_numbers<[1], [0], [0], [1], [0, 0, 1, 1], [], []>} : vector<8x32xf32>, vector<32x48xf32>, vector<8x48xf32> -> vector<8x48xf32>
    %c0_3 = arith.constant 0 : index
    %c0_4 = arith.constant 0 : index
    %3 = vector.load %arg4[%c0_3, %c0_4] : memref<1x48xf32, #tpu.memory_space<vmem>>, vector<1x48xf32>
    %4 = vector.broadcast %3 : vector<1x48xf32> to vector<8x48xf32>
    %5 = arith.addf %2, %4 : vector<8x48xf32>
    %6 = vector.extract_strided_slice %5 {offsets = [0, 0], sizes = [8, 16], strides = [1, 1]} : vector<8x48xf32> to vector<8x16xf32>
    %c0_5 = arith.constant 0 : index
    %c0_6 = arith.constant 0 : index
    %7 = vector.load %arg12[%c0_5, %c0_6] : memref<8x16xf32, #tpu.memory_space<vmem>>, vector<8x16xf32>
    tpu.vector_store %arg12[%c0_5, %c0_6], %6 {strides = array<i32>} : memref<8x16xf32, #tpu.memory_space<vmem>>, vector<8x16xf32>,
    %8 = vector.extract_strided_slice %5 {offsets = [0, 16], sizes = [8, 32], strides = [1, 1]} : vector<8x48xf32> to vector<8x32xf32>
    %c0_7 = arith.constant 0 : index
    %c0_8 = arith.constant 0 : index
    %9 = vector.load %arg13[%c0_7, %c0_8] : memref<8x32xf32, #tpu.memory_space<vmem>>, vector<8x32xf32>
    tpu.vector_store %arg13[%c0_7, %c0_8], %8 {strides = array<i32>} : memref<8x32xf32, #tpu.memory_space<vmem>>, vector<8x32xf32>,
    %c0_9 = arith.constant 0 : index
    %c0_10 = arith.constant 0 : index
    %10 = vector.load %arg1[%c0_9, %c0_10] : memref<1x32xf32, #tpu.memory_space<vmem>>, vector<1x32xf32>
    %c0_i32 = arith.constant 0 : i32
    %c0_11 = arith.constant 0 : index
    %c0_12 = arith.constant 0 : index
    %11 = vector.load %arg5[%c0_11, %c0_12] : memref<32x144xf32, #tpu.memory_space<vmem>>, vector<32x144xf32>
    %cst_13 = arith.constant dense<0.000000e+00> : vector<1x144xf32>
    %12 = tpu.matmul %10, %11, %cst_13 {dimension_numbers = #tpu.dot_dimension_numbers<[1], [0], [0], [1], [0, 0, 1, 1], [], []>} : vector<1x32xf32>, vector<32x144xf32>, vector<1x144xf32> -> vector<1x144xf32>
    %c0_14 = arith.constant 0 : index
    %c0_15 = arith.constant 0 : index
    %13 = vector.load %arg6[%c0_14, %c0_15] : memref<1x144xf32, #tpu.memory_space<vmem>>, vector<1x144xf32>
    %14 = arith.addf %12, %13 : vector<1x144xf32>
    %15 = vector.extract_strided_slice %14 {offsets = [0, 0], sizes = [1, 128], strides = [1, 1]} : vector<1x144xf32> to vector<1x128xf32>
    %16 = arith.index_cast %c0_i32 : i32 to index
    %c0_16 = arith.constant 0 : index
    %17 = vector.load %arg12[%16, %c0_16] : memref<8x16xf32, #tpu.memory_space<vmem>>, vector<1x16xf32>
    %18 = vector.extract_strided_slice %14 {offsets = [0, 128], sizes = [1, 16], strides = [1, 1]} : vector<1x144xf32> to vector<1x16xf32>
    %19 = arith.addf %17, %18 : vector<1x16xf32>
    %cst_17 = arith.constant dense<0xFF800000> : vector<1xf32>
    %20 = vector.multi_reduction <maximumf>, %19, %cst_17 [1] : vector<1x16xf32> to vector<1xf32>
    %21 = vector.shape_cast %20 : vector<1xf32> to vector<1x1xf32>
    %22 = vector.broadcast %21 : vector<1x1xf32> to vector<1x16xf32>
    %23 = arith.subf %19, %22 : vector<1x16xf32>
    %24 = math.exp %23 : vector<1x16xf32>
    %cst_18 = arith.constant dense<0.000000e+00> : vector<1xf32>
    %25 = vector.multi_reduction <add>, %24, %cst_18 [1] : vector<1x16xf32> to vector<1xf32>
    %26 = vector.shape_cast %25 : vector<1xf32> to vector<1x1xf32>
    %27 = tpu.reciprocal %26 {approx = true} : vector<1x1xf32> -> vector<1x1xf32>
    %28 = arith.mulf %26, %27 : vector<1x1xf32>
    %cst_19 = arith.constant 2.000000e+00 : f32
    %29 = vector.broadcast %cst_19 : f32 to vector<1x1xf32>
    %30 = arith.subf %29, %28 : vector<1x1xf32>
    %31 = arith.mulf %27, %30 : vector<1x1xf32>
    %c0_20 = arith.constant 0 : index
    %c0_21 = arith.constant 0 : index
    %32 = vector.load %arg0[%c0_20, %c0_21] : memref<16x32xf32, #tpu.memory_space<vmem>>, vector<16x32xf32>
    %cst_22 = arith.constant dense<0.000000e+00> : vector<1x32xf32>
    %33 = tpu.matmul %24, %32, %cst_22 {dimension_numbers = #tpu.dot_dimension_numbers<[1], [0], [0], [1], [0, 0, 1, 1], [], []>} : vector<1x16xf32>, vector<16x32xf32>, vector<1x32xf32> -> vector<1x32xf32>
    %34 = vector.broadcast %31 : vector<1x1xf32> to vector<1x32xf32>
    %35 = arith.mulf %33, %34 : vector<1x32xf32>
    %36 = arith.index_cast %c0_i32 : i32 to index
    %c0_23 = arith.constant 0 : index
    %37 = vector.load %arg13[%36, %c0_23] : memref<8x32xf32, #tpu.memory_space<vmem>>, vector<1x32xf32>
    %c0_24 = arith.constant 0 : index
    %c0_25 = arith.constant 0 : index
    %38 = vector.load %arg8[%c0_24, %c0_25] : memref<32x32xf32, #tpu.memory_space<vmem>>, vector<32x32xf32>
    %cst_26 = arith.constant dense<0.000000e+00> : vector<1x32xf32>
    %39 = tpu.matmul %35, %38, %cst_26 {dimension_numbers = #tpu.dot_dimension_numbers<[1], [0], [0], [1], [0, 0, 1, 1], [], []>} : vector<1x32xf32>, vector<32x32xf32>, vector<1x32xf32> -> vector<1x32xf32>
    %40 = arith.addf %37, %39 : vector<1x32xf32>
    %cst_27 = arith.constant 0.000000e+00 : f32
    %41 = vector.broadcast %cst_27 : f32 to vector<1x32xf32>
    %42 = arith.maximumf %40, %41 : vector<1x32xf32>
    %c0_28 = arith.constant 0 : index
    %c0_29 = arith.constant 0 : index
    %43 = vector.load %arg7[%c0_28, %c0_29] : memref<32x128xf32, #tpu.memory_space<vmem>>, vector<32x128xf32>
    %cst_30 = arith.constant dense<0.000000e+00> : vector<1x128xf32>
    %44 = tpu.matmul %42, %43, %cst_30 {dimension_numbers = #tpu.dot_dimension_numbers<[1], [0], [0], [1], [0, 0, 1, 1], [], []>} : vector<1x32xf32>, vector<32x128xf32>, vector<1x128xf32> -> vector<1x128xf32>
    %45 = arith.addf %15, %44 : vector<1x128xf32>
    %46 = vector.extract_strided_slice %45 {offsets = [0, 0], sizes = [1, 32], strides = [1, 1]} : vector<1x128xf32> to vector<1x32xf32>
    %47 = arith.negf %46 : vector<1x32xf32>
    %48 = math.exp %47 : vector<1x32xf32>
    %cst_31 = arith.constant 1.000000e+00 : f32
    %49 = vector.broadcast %cst_31 : f32 to vector<1x32xf32>
    %50 = arith.addf %49, %48 : vector<1x32xf32>
    %51 = arith.divf %49, %50 : vector<1x32xf32>
    %52 = vector.extract_strided_slice %45 {offsets = [0, 32], sizes = [1, 32], strides = [1, 1]} : vector<1x128xf32> to vector<1x32xf32>
    %53 = arith.negf %52 : vector<1x32xf32>
    %54 = math.exp %53 : vector<1x32xf32>
    %cst_32 = arith.constant 1.000000e+00 : f32
    %55 = vector.broadcast %cst_32 : f32 to vector<1x32xf32>
    %56 = arith.addf %55, %54 : vector<1x32xf32>
    %57 = arith.divf %55, %56 : vector<1x32xf32>
    %58 = vector.extract_strided_slice %45 {offsets = [0, 64], sizes = [1, 32], strides = [1, 1]} : vector<1x128xf32> to vector<1x32xf32>
    %59 = vector.extract_strided_slice %45 {offsets = [0, 96], sizes = [1, 32], strides = [1, 1]} : vector<1x128xf32> to vector<1x32xf32>
    %60 = arith.mulf %51, %59 : vector<1x32xf32>
    %61 = arith.addf %58, %60 : vector<1x32xf32>
    %62 = math.tanh %61 : vector<1x32xf32>
    %cst_33 = arith.constant 1.000000e+00 : f32
    %63 = vector.broadcast %cst_33 : f32 to vector<1x32xf32>
    %64 = arith.subf %63, %57 : vector<1x32xf32>
    %65 = arith.mulf %64, %62 : vector<1x32xf32>
    %66 = arith.mulf %57, %10 : vector<1x32xf32>
    %67 = arith.addf %65, %66 : vector<1x32xf32>
    %68 = arith.index_cast %c0_i32 : i32 to index
    %c0_34 = arith.constant 0 : index
    %69 = vector.load %arg14[%68, %c0_34] : memref<8x32xf32, #tpu.memory_space<vmem>>, vector<1x32xf32>
    tpu.vector_store %arg14[%68, %c0_34], %67 {strides = array<i32>} : memref<8x32xf32, #tpu.memory_space<vmem>>, vector<1x32xf32>,
    %70 = arith.index_cast %c0_i32 : i32 to index
    %c0_35 = arith.constant 0 : index
    %71 = vector.load %arg15[%70, %c0_35] : memref<8x16xf32, #tpu.memory_space<vmem>>, vector<1x16xf32>
    tpu.vector_store %arg15[%70, %c0_35], %24 {strides = array<i32>} : memref<8x16xf32, #tpu.memory_space<vmem>>, vector<1x16xf32>,
    %c1_i32 = arith.constant 1 : i32
    %c0_36 = arith.constant 0 : index
    %c0_37 = arith.constant 0 : index
    %72 = vector.load %arg5[%c0_36, %c0_37] : memref<32x144xf32, #tpu.memory_space<vmem>>, vector<32x144xf32>
    %cst_38 = arith.constant dense<0.000000e+00> : vector<1x144xf32>
    %73 = tpu.matmul %67, %72, %cst_38 {dimension_numbers = #tpu.dot_dimension_numbers<[1], [0], [0], [1], [0, 0, 1, 1], [], []>} : vector<1x32xf32>, vector<32x144xf32>, vector<1x144xf32> -> vector<1x144xf32>
    %c0_39 = arith.constant 0 : index
    %c0_40 = arith.constant 0 : index
    %74 = vector.load %arg6[%c0_39, %c0_40] : memref<1x144xf32, #tpu.memory_space<vmem>>, vector<1x144xf32>
    %75 = arith.addf %73, %74 : vector<1x144xf32>
    %76 = vector.extract_strided_slice %75 {offsets = [0, 0], sizes = [1, 128], strides = [1, 1]} : vector<1x144xf32> to vector<1x128xf32>
    %77 = arith.index_cast %c1_i32 : i32 to index
    %c0_41 = arith.constant 0 : index
    %78 = vector.load %arg12[%77, %c0_41] : memref<8x16xf32, #tpu.memory_space<vmem>>, vector<1x16xf32>
    %79 = vector.extract_strided_slice %75 {offsets = [0, 128], sizes = [1, 16], strides = [1, 1]} : vector<1x144xf32> to vector<1x16xf32>
    %80 = arith.addf %78, %79 : vector<1x16xf32>
    %cst_42 = arith.constant dense<0xFF800000> : vector<1xf32>
    %81 = vector.multi_reduction <maximumf>, %80, %cst_42 [1] : vector<1x16xf32> to vector<1xf32>
    %82 = vector.shape_cast %81 : vector<1xf32> to vector<1x1xf32>
    %83 = vector.broadcast %82 : vector<1x1xf32> to vector<1x16xf32>
    %84 = arith.subf %80, %83 : vector<1x16xf32>
    %85 = math.exp %84 : vector<1x16xf32>
    %cst_43 = arith.constant dense<0.000000e+00> : vector<1xf32>
    %86 = vector.multi_reduction <add>, %85, %cst_43 [1] : vector<1x16xf32> to vector<1xf32>
    %87 = vector.shape_cast %86 : vector<1xf32> to vector<1x1xf32>
    %88 = tpu.reciprocal %87 {approx = true} : vector<1x1xf32> -> vector<1x1xf32>
    %89 = arith.mulf %87, %88 : vector<1x1xf32>
    %cst_44 = arith.constant 2.000000e+00 : f32
    %90 = vector.broadcast %cst_44 : f32 to vector<1x1xf32>
    %91 = arith.subf %90, %89 : vector<1x1xf32>
    %92 = arith.mulf %88, %91 : vector<1x1xf32>
    %c0_45 = arith.constant 0 : index
    %c0_46 = arith.constant 0 : index
    %93 = vector.load %arg0[%c0_45, %c0_46] : memref<16x32xf32, #tpu.memory_space<vmem>>, vector<16x32xf32>
    %cst_47 = arith.constant dense<0.000000e+00> : vector<1x32xf32>
    %94 = tpu.matmul %85, %93, %cst_47 {dimension_numbers = #tpu.dot_dimension_numbers<[1], [0], [0], [1], [0, 0, 1, 1], [], []>} : vector<1x16xf32>, vector<16x32xf32>, vector<1x32xf32> -> vector<1x32xf32>
    %95 = vector.broadcast %92 : vector<1x1xf32> to vector<1x32xf32>
    %96 = arith.mulf %94, %95 : vector<1x32xf32>
    %97 = arith.index_cast %c1_i32 : i32 to index
    %c0_48 = arith.constant 0 : index
    %98 = vector.load %arg13[%97, %c0_48] : memref<8x32xf32, #tpu.memory_space<vmem>>, vector<1x32xf32>
    %c0_49 = arith.constant 0 : index
    %c0_50 = arith.constant 0 : index
    %99 = vector.load %arg8[%c0_49, %c0_50] : memref<32x32xf32, #tpu.memory_space<vmem>>, vector<32x32xf32>
    %cst_51 = arith.constant dense<0.000000e+00> : vector<1x32xf32>
    %100 = tpu.matmul %96, %99, %cst_51 {dimension_numbers = #tpu.dot_dimension_numbers<[1], [0], [0], [1], [0, 0, 1, 1], [], []>} : vector<1x32xf32>, vector<32x32xf32>, vector<1x32xf32> -> vector<1x32xf32>
    %101 = arith.addf %98, %100 : vector<1x32xf32>
    %cst_52 = arith.constant 0.000000e+00 : f32
    %102 = vector.broadcast %cst_52 : f32 to vector<1x32xf32>
    %103 = arith.maximumf %101, %102 : vector<1x32xf32>
    %c0_53 = arith.constant 0 : index
    %c0_54 = arith.constant 0 : index
    %104 = vector.load %arg7[%c0_53, %c0_54] : memref<32x128xf32, #tpu.memory_space<vmem>>, vector<32x128xf32>
    %cst_55 = arith.constant dense<0.000000e+00> : vector<1x128xf32>
    %105 = tpu.matmul %103, %104, %cst_55 {dimension_numbers = #tpu.dot_dimension_numbers<[1], [0], [0], [1], [0, 0, 1, 1], [], []>} : vector<1x32xf32>, vector<32x128xf32>, vector<1x128xf32> -> vector<1x128xf32>
    %106 = arith.addf %76, %105 : vector<1x128xf32>
    %107 = vector.extract_strided_slice %106 {offsets = [0, 0], sizes = [1, 32], strides = [1, 1]} : vector<1x128xf32> to vector<1x32xf32>
    %108 = arith.negf %107 : vector<1x32xf32>
    %109 = math.exp %108 : vector<1x32xf32>
    %cst_56 = arith.constant 1.000000e+00 : f32
    %110 = vector.broadcast %cst_56 : f32 to vector<1x32xf32>
    %111 = arith.addf %110, %109 : vector<1x32xf32>
    %112 = arith.divf %110, %111 : vector<1x32xf32>
    %113 = vector.extract_strided_slice %106 {offsets = [0, 32], sizes = [1, 32], strides = [1, 1]} : vector<1x128xf32> to vector<1x32xf32>
    %114 = arith.negf %113 : vector<1x32xf32>
    %115 = math.exp %114 : vector<1x32xf32>
    %cst_57 = arith.constant 1.000000e+00 : f32
    %116 = vector.broadcast %cst_57 : f32 to vector<1x32xf32>
    %117 = arith.addf %116, %115 : vector<1x32xf32>
    %118 = arith.divf %116, %117 : vector<1x32xf32>
    %119 = vector.extract_strided_slice %106 {offsets = [0, 64], sizes = [1, 32], strides = [1, 1]} : vector<1x128xf32> to vector<1x32xf32>
    %120 = vector.extract_strided_slice %106 {offsets = [0, 96], sizes = [1, 32], strides = [1, 1]} : vector<1x128xf32> to vector<1x32xf32>
    %121 = arith.mulf %112, %120 : vector<1x32xf32>
    %122 = arith.addf %119, %121 : vector<1x32xf32>
    %123 = math.tanh %122 : vector<1x32xf32>
    %cst_58 = arith.constant 1.000000e+00 : f32
    %124 = vector.broadcast %cst_58 : f32 to vector<1x32xf32>
    %125 = arith.subf %124, %118 : vector<1x32xf32>
    %126 = arith.mulf %125, %123 : vector<1x32xf32>
    %127 = arith.mulf %118, %67 : vector<1x32xf32>
    %128 = arith.addf %126, %127 : vector<1x32xf32>
    %129 = arith.index_cast %c1_i32 : i32 to index
    %c0_59 = arith.constant 0 : index
    %130 = vector.load %arg14[%129, %c0_59] : memref<8x32xf32, #tpu.memory_space<vmem>>, vector<1x32xf32>
    tpu.vector_store %arg14[%129, %c0_59], %128 {strides = array<i32>} : memref<8x32xf32, #tpu.memory_space<vmem>>, vector<1x32xf32>,
    %131 = arith.index_cast %c1_i32 : i32 to index
    %c0_60 = arith.constant 0 : index
    %132 = vector.load %arg15[%131, %c0_60] : memref<8x16xf32, #tpu.memory_space<vmem>>, vector<1x16xf32>
    tpu.vector_store %arg15[%131, %c0_60], %85 {strides = array<i32>} : memref<8x16xf32, #tpu.memory_space<vmem>>, vector<1x16xf32>,
    %c2_i32 = arith.constant 2 : i32
    %c0_61 = arith.constant 0 : index
    %c0_62 = arith.constant 0 : index
    %133 = vector.load %arg5[%c0_61, %c0_62] : memref<32x144xf32, #tpu.memory_space<vmem>>, vector<32x144xf32>
    %cst_63 = arith.constant dense<0.000000e+00> : vector<1x144xf32>
    %134 = tpu.matmul %128, %133, %cst_63 {dimension_numbers = #tpu.dot_dimension_numbers<[1], [0], [0], [1], [0, 0, 1, 1], [], []>} : vector<1x32xf32>, vector<32x144xf32>, vector<1x144xf32> -> vector<1x144xf32>
    %c0_64 = arith.constant 0 : index
    %c0_65 = arith.constant 0 : index
    %135 = vector.load %arg6[%c0_64, %c0_65] : memref<1x144xf32, #tpu.memory_space<vmem>>, vector<1x144xf32>
    %136 = arith.addf %134, %135 : vector<1x144xf32>
    %137 = vector.extract_strided_slice %136 {offsets = [0, 0], sizes = [1, 128], strides = [1, 1]} : vector<1x144xf32> to vector<1x128xf32>
    %138 = arith.index_cast %c2_i32 : i32 to index
    %c0_66 = arith.constant 0 : index
    %139 = vector.load %arg12[%138, %c0_66] : memref<8x16xf32, #tpu.memory_space<vmem>>, vector<1x16xf32>
    %140 = vector.extract_strided_slice %136 {offsets = [0, 128], sizes = [1, 16], strides = [1, 1]} : vector<1x144xf32> to vector<1x16xf32>
    %141 = arith.addf %139, %140 : vector<1x16xf32>
    %cst_67 = arith.constant dense<0xFF800000> : vector<1xf32>
    %142 = vector.multi_reduction <maximumf>, %141, %cst_67 [1] : vector<1x16xf32> to vector<1xf32>
    %143 = vector.shape_cast %142 : vector<1xf32> to vector<1x1xf32>
    %144 = vector.broadcast %143 : vector<1x1xf32> to vector<1x16xf32>
    %145 = arith.subf %141, %144 : vector<1x16xf32>
    %146 = math.exp %145 : vector<1x16xf32>
    %cst_68 = arith.constant dense<0.000000e+00> : vector<1xf32>
    %147 = vector.multi_reduction <add>, %146, %cst_68 [1] : vector<1x16xf32> to vector<1xf32>
    %148 = vector.shape_cast %147 : vector<1xf32> to vector<1x1xf32>
    %149 = tpu.reciprocal %148 {approx = true} : vector<1x1xf32> -> vector<1x1xf32>
    %150 = arith.mulf %148, %149 : vector<1x1xf32>
    %cst_69 = arith.constant 2.000000e+00 : f32
    %151 = vector.broadcast %cst_69 : f32 to vector<1x1xf32>
    %152 = arith.subf %151, %150 : vector<1x1xf32>
    %153 = arith.mulf %149, %152 : vector<1x1xf32>
    %c0_70 = arith.constant 0 : index
    %c0_71 = arith.constant 0 : index
    %154 = vector.load %arg0[%c0_70, %c0_71] : memref<16x32xf32, #tpu.memory_space<vmem>>, vector<16x32xf32>
    %cst_72 = arith.constant dense<0.000000e+00> : vector<1x32xf32>
    %155 = tpu.matmul %146, %154, %cst_72 {dimension_numbers = #tpu.dot_dimension_numbers<[1], [0], [0], [1], [0, 0, 1, 1], [], []>} : vector<1x16xf32>, vector<16x32xf32>, vector<1x32xf32> -> vector<1x32xf32>
    %156 = vector.broadcast %153 : vector<1x1xf32> to vector<1x32xf32>
    %157 = arith.mulf %155, %156 : vector<1x32xf32>
    %158 = arith.index_cast %c2_i32 : i32 to index
    %c0_73 = arith.constant 0 : index
    %159 = vector.load %arg13[%158, %c0_73] : memref<8x32xf32, #tpu.memory_space<vmem>>, vector<1x32xf32>
    %c0_74 = arith.constant 0 : index
    %c0_75 = arith.constant 0 : index
    %160 = vector.load %arg8[%c0_74, %c0_75] : memref<32x32xf32, #tpu.memory_space<vmem>>, vector<32x32xf32>
    %cst_76 = arith.constant dense<0.000000e+00> : vector<1x32xf32>
    %161 = tpu.matmul %157, %160, %cst_76 {dimension_numbers = #tpu.dot_dimension_numbers<[1], [0], [0], [1], [0, 0, 1, 1], [], []>} : vector<1x32xf32>, vector<32x32xf32>, vector<1x32xf32> -> vector<1x32xf32>
    %162 = arith.addf %159, %161 : vector<1x32xf32>
    %cst_77 = arith.constant 0.000000e+00 : f32
    %163 = vector.broadcast %cst_77 : f32 to vector<1x32xf32>
    %164 = arith.maximumf %162, %163 : vector<1x32xf32>
    %c0_78 = arith.constant 0 : index
    %c0_79 = arith.constant 0 : index
    %165 = vector.load %arg7[%c0_78, %c0_79] : memref<32x128xf32, #tpu.memory_space<vmem>>, vector<32x128xf32>
    %cst_80 = arith.constant dense<0.000000e+00> : vector<1x128xf32>
    %166 = tpu.matmul %164, %165, %cst_80 {dimension_numbers = #tpu.dot_dimension_numbers<[1], [0], [0], [1], [0, 0, 1, 1], [], []>} : vector<1x32xf32>, vector<32x128xf32>, vector<1x128xf32> -> vector<1x128xf32>
    %167 = arith.addf %137, %166 : vector<1x128xf32>
    %168 = vector.extract_strided_slice %167 {offsets = [0, 0], sizes = [1, 32], strides = [1, 1]} : vector<1x128xf32> to vector<1x32xf32>
    %169 = arith.negf %168 : vector<1x32xf32>
    %170 = math.exp %169 : vector<1x32xf32>
    %cst_81 = arith.constant 1.000000e+00 : f32
    %171 = vector.broadcast %cst_81 : f32 to vector<1x32xf32>
    %172 = arith.addf %171, %170 : vector<1x32xf32>
    %173 = arith.divf %171, %172 : vector<1x32xf32>
    %174 = vector.extract_strided_slice %167 {offsets = [0, 32], sizes = [1, 32], strides = [1, 1]} : vector<1x128xf32> to vector<1x32xf32>
    %175 = arith.negf %174 : vector<1x32xf32>
    %176 = math.exp %175 : vector<1x32xf32>
    %cst_82 = arith.constant 1.000000e+00 : f32
    %177 = vector.broadcast %cst_82 : f32 to vector<1x32xf32>
    %178 = arith.addf %177, %176 : vector<1x32xf32>
    %179 = arith.divf %177, %178 : vector<1x32xf32>
    %180 = vector.extract_strided_slice %167 {offsets = [0, 64], sizes = [1, 32], strides = [1, 1]} : vector<1x128xf32> to vector<1x32xf32>
    %181 = vector.extract_strided_slice %167 {offsets = [0, 96], sizes = [1, 32], strides = [1, 1]} : vector<1x128xf32> to vector<1x32xf32>
    %182 = arith.mulf %173, %181 : vector<1x32xf32>
    %183 = arith.addf %180, %182 : vector<1x32xf32>
    %184 = math.tanh %183 : vector<1x32xf32>
    %cst_83 = arith.constant 1.000000e+00 : f32
    %185 = vector.broadcast %cst_83 : f32 to vector<1x32xf32>
    %186 = arith.subf %185, %179 : vector<1x32xf32>
    %187 = arith.mulf %186, %184 : vector<1x32xf32>
    %188 = arith.mulf %179, %128 : vector<1x32xf32>
    %189 = arith.addf %187, %188 : vector<1x32xf32>
    %190 = arith.index_cast %c2_i32 : i32 to index
    %c0_84 = arith.constant 0 : index
    %191 = vector.load %arg14[%190, %c0_84] : memref<8x32xf32, #tpu.memory_space<vmem>>, vector<1x32xf32>
    tpu.vector_store %arg14[%190, %c0_84], %189 {strides = array<i32>} : memref<8x32xf32, #tpu.memory_space<vmem>>, vector<1x32xf32>,
    %192 = arith.index_cast %c2_i32 : i32 to index
    %c0_85 = arith.constant 0 : index
    %193 = vector.load %arg15[%192, %c0_85] : memref<8x16xf32, #tpu.memory_space<vmem>>, vector<1x16xf32>
    tpu.vector_store %arg15[%192, %c0_85], %146 {strides = array<i32>} : memref<8x16xf32, #tpu.memory_space<vmem>>, vector<1x16xf32>,
    %c3_i32 = arith.constant 3 : i32
    %c0_86 = arith.constant 0 : index
    %c0_87 = arith.constant 0 : index
    %194 = vector.load %arg5[%c0_86, %c0_87] : memref<32x144xf32, #tpu.memory_space<vmem>>, vector<32x144xf32>
    %cst_88 = arith.constant dense<0.000000e+00> : vector<1x144xf32>
    %195 = tpu.matmul %189, %194, %cst_88 {dimension_numbers = #tpu.dot_dimension_numbers<[1], [0], [0], [1], [0, 0, 1, 1], [], []>} : vector<1x32xf32>, vector<32x144xf32>, vector<1x144xf32> -> vector<1x144xf32>
    %c0_89 = arith.constant 0 : index
    %c0_90 = arith.constant 0 : index
    %196 = vector.load %arg6[%c0_89, %c0_90] : memref<1x144xf32, #tpu.memory_space<vmem>>, vector<1x144xf32>
    %197 = arith.addf %195, %196 : vector<1x144xf32>
    %198 = vector.extract_strided_slice %197 {offsets = [0, 0], sizes = [1, 128], strides = [1, 1]} : vector<1x144xf32> to vector<1x128xf32>
    %199 = arith.index_cast %c3_i32 : i32 to index
    %c0_91 = arith.constant 0 : index
    %200 = vector.load %arg12[%199, %c0_91] : memref<8x16xf32, #tpu.memory_space<vmem>>, vector<1x16xf32>
    %201 = vector.extract_strided_slice %197 {offsets = [0, 128], sizes = [1, 16], strides = [1, 1]} : vector<1x144xf32> to vector<1x16xf32>
    %202 = arith.addf %200, %201 : vector<1x16xf32>
    %cst_92 = arith.constant dense<0xFF800000> : vector<1xf32>
    %203 = vector.multi_reduction <maximumf>, %202, %cst_92 [1] : vector<1x16xf32> to vector<1xf32>
    %204 = vector.shape_cast %203 : vector<1xf32> to vector<1x1xf32>
    %205 = vector.broadcast %204 : vector<1x1xf32> to vector<1x16xf32>
    %206 = arith.subf %202, %205 : vector<1x16xf32>
    %207 = math.exp %206 : vector<1x16xf32>
    %cst_93 = arith.constant dense<0.000000e+00> : vector<1xf32>
    %208 = vector.multi_reduction <add>, %207, %cst_93 [1] : vector<1x16xf32> to vector<1xf32>
    %209 = vector.shape_cast %208 : vector<1xf32> to vector<1x1xf32>
    %210 = tpu.reciprocal %209 {approx = true} : vector<1x1xf32> -> vector<1x1xf32>
    %211 = arith.mulf %209, %210 : vector<1x1xf32>
    %cst_94 = arith.constant 2.000000e+00 : f32
    %212 = vector.broadcast %cst_94 : f32 to vector<1x1xf32>
    %213 = arith.subf %212, %211 : vector<1x1xf32>
    %214 = arith.mulf %210, %213 : vector<1x1xf32>
    %c0_95 = arith.constant 0 : index
    %c0_96 = arith.constant 0 : index
    %215 = vector.load %arg0[%c0_95, %c0_96] : memref<16x32xf32, #tpu.memory_space<vmem>>, vector<16x32xf32>
    %cst_97 = arith.constant dense<0.000000e+00> : vector<1x32xf32>
    %216 = tpu.matmul %207, %215, %cst_97 {dimension_numbers = #tpu.dot_dimension_numbers<[1], [0], [0], [1], [0, 0, 1, 1], [], []>} : vector<1x16xf32>, vector<16x32xf32>, vector<1x32xf32> -> vector<1x32xf32>
    %217 = vector.broadcast %214 : vector<1x1xf32> to vector<1x32xf32>
    %218 = arith.mulf %216, %217 : vector<1x32xf32>
    %219 = arith.index_cast %c3_i32 : i32 to index
    %c0_98 = arith.constant 0 : index
    %220 = vector.load %arg13[%219, %c0_98] : memref<8x32xf32, #tpu.memory_space<vmem>>, vector<1x32xf32>
    %c0_99 = arith.constant 0 : index
    %c0_100 = arith.constant 0 : index
    %221 = vector.load %arg8[%c0_99, %c0_100] : memref<32x32xf32, #tpu.memory_space<vmem>>, vector<32x32xf32>
    %cst_101 = arith.constant dense<0.000000e+00> : vector<1x32xf32>
    %222 = tpu.matmul %218, %221, %cst_101 {dimension_numbers = #tpu.dot_dimension_numbers<[1], [0], [0], [1], [0, 0, 1, 1], [], []>} : vector<1x32xf32>, vector<32x32xf32>, vector<1x32xf32> -> vector<1x32xf32>
    %223 = arith.addf %220, %222 : vector<1x32xf32>
    %cst_102 = arith.constant 0.000000e+00 : f32
    %224 = vector.broadcast %cst_102 : f32 to vector<1x32xf32>
    %225 = arith.maximumf %223, %224 : vector<1x32xf32>
    %c0_103 = arith.constant 0 : index
    %c0_104 = arith.constant 0 : index
    %226 = vector.load %arg7[%c0_103, %c0_104] : memref<32x128xf32, #tpu.memory_space<vmem>>, vector<32x128xf32>
    %cst_105 = arith.constant dense<0.000000e+00> : vector<1x128xf32>
    %227 = tpu.matmul %225, %226, %cst_105 {dimension_numbers = #tpu.dot_dimension_numbers<[1], [0], [0], [1], [0, 0, 1, 1], [], []>} : vector<1x32xf32>, vector<32x128xf32>, vector<1x128xf32> -> vector<1x128xf32>
    %228 = arith.addf %198, %227 : vector<1x128xf32>
    %229 = vector.extract_strided_slice %228 {offsets = [0, 0], sizes = [1, 32], strides = [1, 1]} : vector<1x128xf32> to vector<1x32xf32>
    %230 = arith.negf %229 : vector<1x32xf32>
    %231 = math.exp %230 : vector<1x32xf32>
    %cst_106 = arith.constant 1.000000e+00 : f32
    %232 = vector.broadcast %cst_106 : f32 to vector<1x32xf32>
    %233 = arith.addf %232, %231 : vector<1x32xf32>
    %234 = arith.divf %232, %233 : vector<1x32xf32>
    %235 = vector.extract_strided_slice %228 {offsets = [0, 32], sizes = [1, 32], strides = [1, 1]} : vector<1x128xf32> to vector<1x32xf32>
    %236 = arith.negf %235 : vector<1x32xf32>
    %237 = math.exp %236 : vector<1x32xf32>
    %cst_107 = arith.constant 1.000000e+00 : f32
    %238 = vector.broadcast %cst_107 : f32 to vector<1x32xf32>
    %239 = arith.addf %238, %237 : vector<1x32xf32>
    %240 = arith.divf %238, %239 : vector<1x32xf32>
    %241 = vector.extract_strided_slice %228 {offsets = [0, 64], sizes = [1, 32], strides = [1, 1]} : vector<1x128xf32> to vector<1x32xf32>
    %242 = vector.extract_strided_slice %228 {offsets = [0, 96], sizes = [1, 32], strides = [1, 1]} : vector<1x128xf32> to vector<1x32xf32>
    %243 = arith.mulf %234, %242 : vector<1x32xf32>
    %244 = arith.addf %241, %243 : vector<1x32xf32>
    %245 = math.tanh %244 : vector<1x32xf32>
    %cst_108 = arith.constant 1.000000e+00 : f32
    %246 = vector.broadcast %cst_108 : f32 to vector<1x32xf32>
    %247 = arith.subf %246, %240 : vector<1x32xf32>
    %248 = arith.mulf %247, %245 : vector<1x32xf32>
    %249 = arith.mulf %240, %189 : vector<1x32xf32>
    %250 = arith.addf %248, %249 : vector<1x32xf32>
    %251 = arith.index_cast %c3_i32 : i32 to index
    %c0_109 = arith.constant 0 : index
    %252 = vector.load %arg14[%251, %c0_109] : memref<8x32xf32, #tpu.memory_space<vmem>>, vector<1x32xf32>
    tpu.vector_store %arg14[%251, %c0_109], %250 {strides = array<i32>} : memref<8x32xf32, #tpu.memory_space<vmem>>, vector<1x32xf32>,
    %253 = arith.index_cast %c3_i32 : i32 to index
    %c0_110 = arith.constant 0 : index
    %254 = vector.load %arg15[%253, %c0_110] : memref<8x16xf32, #tpu.memory_space<vmem>>, vector<1x16xf32>
    tpu.vector_store %arg15[%253, %c0_110], %207 {strides = array<i32>} : memref<8x16xf32, #tpu.memory_space<vmem>>, vector<1x16xf32>,
    %c4_i32 = arith.constant 4 : i32
    %c0_111 = arith.constant 0 : index
    %c0_112 = arith.constant 0 : index
    %255 = vector.load %arg5[%c0_111, %c0_112] : memref<32x144xf32, #tpu.memory_space<vmem>>, vector<32x144xf32>
    %cst_113 = arith.constant dense<0.000000e+00> : vector<1x144xf32>
    %256 = tpu.matmul %250, %255, %cst_113 {dimension_numbers = #tpu.dot_dimension_numbers<[1], [0], [0], [1], [0, 0, 1, 1], [], []>} : vector<1x32xf32>, vector<32x144xf32>, vector<1x144xf32> -> vector<1x144xf32>
    %c0_114 = arith.constant 0 : index
    %c0_115 = arith.constant 0 : index
    %257 = vector.load %arg6[%c0_114, %c0_115] : memref<1x144xf32, #tpu.memory_space<vmem>>, vector<1x144xf32>
    %258 = arith.addf %256, %257 : vector<1x144xf32>
    %259 = vector.extract_strided_slice %258 {offsets = [0, 0], sizes = [1, 128], strides = [1, 1]} : vector<1x144xf32> to vector<1x128xf32>
    %260 = arith.index_cast %c4_i32 : i32 to index
    %c0_116 = arith.constant 0 : index
    %261 = vector.load %arg12[%260, %c0_116] : memref<8x16xf32, #tpu.memory_space<vmem>>, vector<1x16xf32>
    %262 = vector.extract_strided_slice %258 {offsets = [0, 128], sizes = [1, 16], strides = [1, 1]} : vector<1x144xf32> to vector<1x16xf32>
    %263 = arith.addf %261, %262 : vector<1x16xf32>
    %cst_117 = arith.constant dense<0xFF800000> : vector<1xf32>
    %264 = vector.multi_reduction <maximumf>, %263, %cst_117 [1] : vector<1x16xf32> to vector<1xf32>
    %265 = vector.shape_cast %264 : vector<1xf32> to vector<1x1xf32>
    %266 = vector.broadcast %265 : vector<1x1xf32> to vector<1x16xf32>
    %267 = arith.subf %263, %266 : vector<1x16xf32>
    %268 = math.exp %267 : vector<1x16xf32>
    %cst_118 = arith.constant dense<0.000000e+00> : vector<1xf32>
    %269 = vector.multi_reduction <add>, %268, %cst_118 [1] : vector<1x16xf32> to vector<1xf32>
    %270 = vector.shape_cast %269 : vector<1xf32> to vector<1x1xf32>
    %271 = tpu.reciprocal %270 {approx = true} : vector<1x1xf32> -> vector<1x1xf32>
    %272 = arith.mulf %270, %271 : vector<1x1xf32>
    %cst_119 = arith.constant 2.000000e+00 : f32
    %273 = vector.broadcast %cst_119 : f32 to vector<1x1xf32>
    %274 = arith.subf %273, %272 : vector<1x1xf32>
    %275 = arith.mulf %271, %274 : vector<1x1xf32>
    %c0_120 = arith.constant 0 : index
    %c0_121 = arith.constant 0 : index
    %276 = vector.load %arg0[%c0_120, %c0_121] : memref<16x32xf32, #tpu.memory_space<vmem>>, vector<16x32xf32>
    %cst_122 = arith.constant dense<0.000000e+00> : vector<1x32xf32>
    %277 = tpu.matmul %268, %276, %cst_122 {dimension_numbers = #tpu.dot_dimension_numbers<[1], [0], [0], [1], [0, 0, 1, 1], [], []>} : vector<1x16xf32>, vector<16x32xf32>, vector<1x32xf32> -> vector<1x32xf32>
    %278 = vector.broadcast %275 : vector<1x1xf32> to vector<1x32xf32>
    %279 = arith.mulf %277, %278 : vector<1x32xf32>
    %280 = arith.index_cast %c4_i32 : i32 to index
    %c0_123 = arith.constant 0 : index
    %281 = vector.load %arg13[%280, %c0_123] : memref<8x32xf32, #tpu.memory_space<vmem>>, vector<1x32xf32>
    %c0_124 = arith.constant 0 : index
    %c0_125 = arith.constant 0 : index
    %282 = vector.load %arg8[%c0_124, %c0_125] : memref<32x32xf32, #tpu.memory_space<vmem>>, vector<32x32xf32>
    %cst_126 = arith.constant dense<0.000000e+00> : vector<1x32xf32>
    %283 = tpu.matmul %279, %282, %cst_126 {dimension_numbers = #tpu.dot_dimension_numbers<[1], [0], [0], [1], [0, 0, 1, 1], [], []>} : vector<1x32xf32>, vector<32x32xf32>, vector<1x32xf32> -> vector<1x32xf32>
    %284 = arith.addf %281, %283 : vector<1x32xf32>
    %cst_127 = arith.constant 0.000000e+00 : f32
    %285 = vector.broadcast %cst_127 : f32 to vector<1x32xf32>
    %286 = arith.maximumf %284, %285 : vector<1x32xf32>
    %c0_128 = arith.constant 0 : index
    %c0_129 = arith.constant 0 : index
    %287 = vector.load %arg7[%c0_128, %c0_129] : memref<32x128xf32, #tpu.memory_space<vmem>>, vector<32x128xf32>
    %cst_130 = arith.constant dense<0.000000e+00> : vector<1x128xf32>
    %288 = tpu.matmul %286, %287, %cst_130 {dimension_numbers = #tpu.dot_dimension_numbers<[1], [0], [0], [1], [0, 0, 1, 1], [], []>} : vector<1x32xf32>, vector<32x128xf32>, vector<1x128xf32> -> vector<1x128xf32>
    %289 = arith.addf %259, %288 : vector<1x128xf32>
    %290 = vector.extract_strided_slice %289 {offsets = [0, 0], sizes = [1, 32], strides = [1, 1]} : vector<1x128xf32> to vector<1x32xf32>
    %291 = arith.negf %290 : vector<1x32xf32>
    %292 = math.exp %291 : vector<1x32xf32>
    %cst_131 = arith.constant 1.000000e+00 : f32
    %293 = vector.broadcast %cst_131 : f32 to vector<1x32xf32>
    %294 = arith.addf %293, %292 : vector<1x32xf32>
    %295 = arith.divf %293, %294 : vector<1x32xf32>
    %296 = vector.extract_strided_slice %289 {offsets = [0, 32], sizes = [1, 32], strides = [1, 1]} : vector<1x128xf32> to vector<1x32xf32>
    %297 = arith.negf %296 : vector<1x32xf32>
    %298 = math.exp %297 : vector<1x32xf32>
    %cst_132 = arith.constant 1.000000e+00 : f32
    %299 = vector.broadcast %cst_132 : f32 to vector<1x32xf32>
    %300 = arith.addf %299, %298 : vector<1x32xf32>
    %301 = arith.divf %299, %300 : vector<1x32xf32>
    %302 = vector.extract_strided_slice %289 {offsets = [0, 64], sizes = [1, 32], strides = [1, 1]} : vector<1x128xf32> to vector<1x32xf32>
    %303 = vector.extract_strided_slice %289 {offsets = [0, 96], sizes = [1, 32], strides = [1, 1]} : vector<1x128xf32> to vector<1x32xf32>
    %304 = arith.mulf %295, %303 : vector<1x32xf32>
    %305 = arith.addf %302, %304 : vector<1x32xf32>
    %306 = math.tanh %305 : vector<1x32xf32>
    %cst_133 = arith.constant 1.000000e+00 : f32
    %307 = vector.broadcast %cst_133 : f32 to vector<1x32xf32>
    %308 = arith.subf %307, %301 : vector<1x32xf32>
    %309 = arith.mulf %308, %306 : vector<1x32xf32>
    %310 = arith.mulf %301, %250 : vector<1x32xf32>
    %311 = arith.addf %309, %310 : vector<1x32xf32>
    %312 = arith.index_cast %c4_i32 : i32 to index
    %c0_134 = arith.constant 0 : index
    %313 = vector.load %arg14[%312, %c0_134] : memref<8x32xf32, #tpu.memory_space<vmem>>, vector<1x32xf32>
    tpu.vector_store %arg14[%312, %c0_134], %311 {strides = array<i32>} : memref<8x32xf32, #tpu.memory_space<vmem>>, vector<1x32xf32>,
    %314 = arith.index_cast %c4_i32 : i32 to index
    %c0_135 = arith.constant 0 : index
    %315 = vector.load %arg15[%314, %c0_135] : memref<8x16xf32, #tpu.memory_space<vmem>>, vector<1x16xf32>
    tpu.vector_store %arg15[%314, %c0_135], %268 {strides = array<i32>} : memref<8x16xf32, #tpu.memory_space<vmem>>, vector<1x16xf32>,
    %c5_i32 = arith.constant 5 : i32
    %c0_136 = arith.constant 0 : index
    %c0_137 = arith.constant 0 : index
    %316 = vector.load %arg5[%c0_136, %c0_137] : memref<32x144xf32, #tpu.memory_space<vmem>>, vector<32x144xf32>
    %cst_138 = arith.constant dense<0.000000e+00> : vector<1x144xf32>
    %317 = tpu.matmul %311, %316, %cst_138 {dimension_numbers = #tpu.dot_dimension_numbers<[1], [0], [0], [1], [0, 0, 1, 1], [], []>} : vector<1x32xf32>, vector<32x144xf32>, vector<1x144xf32> -> vector<1x144xf32>
    %c0_139 = arith.constant 0 : index
    %c0_140 = arith.constant 0 : index
    %318 = vector.load %arg6[%c0_139, %c0_140] : memref<1x144xf32, #tpu.memory_space<vmem>>, vector<1x144xf32>
    %319 = arith.addf %317, %318 : vector<1x144xf32>
    %320 = vector.extract_strided_slice %319 {offsets = [0, 0], sizes = [1, 128], strides = [1, 1]} : vector<1x144xf32> to vector<1x128xf32>
    %321 = arith.index_cast %c5_i32 : i32 to index
    %c0_141 = arith.constant 0 : index
    %322 = vector.load %arg12[%321, %c0_141] : memref<8x16xf32, #tpu.memory_space<vmem>>, vector<1x16xf32>
    %323 = vector.extract_strided_slice %319 {offsets = [0, 128], sizes = [1, 16], strides = [1, 1]} : vector<1x144xf32> to vector<1x16xf32>
    %324 = arith.addf %322, %323 : vector<1x16xf32>
    %cst_142 = arith.constant dense<0xFF800000> : vector<1xf32>
    %325 = vector.multi_reduction <maximumf>, %324, %cst_142 [1] : vector<1x16xf32> to vector<1xf32>
    %326 = vector.shape_cast %325 : vector<1xf32> to vector<1x1xf32>
    %327 = vector.broadcast %326 : vector<1x1xf32> to vector<1x16xf32>
    %328 = arith.subf %324, %327 : vector<1x16xf32>
    %329 = math.exp %328 : vector<1x16xf32>
    %cst_143 = arith.constant dense<0.000000e+00> : vector<1xf32>
    %330 = vector.multi_reduction <add>, %329, %cst_143 [1] : vector<1x16xf32> to vector<1xf32>
    %331 = vector.shape_cast %330 : vector<1xf32> to vector<1x1xf32>
    %332 = tpu.reciprocal %331 {approx = true} : vector<1x1xf32> -> vector<1x1xf32>
    %333 = arith.mulf %331, %332 : vector<1x1xf32>
    %cst_144 = arith.constant 2.000000e+00 : f32
    %334 = vector.broadcast %cst_144 : f32 to vector<1x1xf32>
    %335 = arith.subf %334, %333 : vector<1x1xf32>
    %336 = arith.mulf %332, %335 : vector<1x1xf32>
    %c0_145 = arith.constant 0 : index
    %c0_146 = arith.constant 0 : index
    %337 = vector.load %arg0[%c0_145, %c0_146] : memref<16x32xf32, #tpu.memory_space<vmem>>, vector<16x32xf32>
    %cst_147 = arith.constant dense<0.000000e+00> : vector<1x32xf32>
    %338 = tpu.matmul %329, %337, %cst_147 {dimension_numbers = #tpu.dot_dimension_numbers<[1], [0], [0], [1], [0, 0, 1, 1], [], []>} : vector<1x16xf32>, vector<16x32xf32>, vector<1x32xf32> -> vector<1x32xf32>
    %339 = vector.broadcast %336 : vector<1x1xf32> to vector<1x32xf32>
    %340 = arith.mulf %338, %339 : vector<1x32xf32>
    %341 = arith.index_cast %c5_i32 : i32 to index
    %c0_148 = arith.constant 0 : index
    %342 = vector.load %arg13[%341, %c0_148] : memref<8x32xf32, #tpu.memory_space<vmem>>, vector<1x32xf32>
    %c0_149 = arith.constant 0 : index
    %c0_150 = arith.constant 0 : index
    %343 = vector.load %arg8[%c0_149, %c0_150] : memref<32x32xf32, #tpu.memory_space<vmem>>, vector<32x32xf32>
    %cst_151 = arith.constant dense<0.000000e+00> : vector<1x32xf32>
    %344 = tpu.matmul %340, %343, %cst_151 {dimension_numbers = #tpu.dot_dimension_numbers<[1], [0], [0], [1], [0, 0, 1, 1], [], []>} : vector<1x32xf32>, vector<32x32xf32>, vector<1x32xf32> -> vector<1x32xf32>
    %345 = arith.addf %342, %344 : vector<1x32xf32>
    %cst_152 = arith.constant 0.000000e+00 : f32
    %346 = vector.broadcast %cst_152 : f32 to vector<1x32xf32>
    %347 = arith.maximumf %345, %346 : vector<1x32xf32>
    %c0_153 = arith.constant 0 : index
    %c0_154 = arith.constant 0 : index
    %348 = vector.load %arg7[%c0_153, %c0_154] : memref<32x128xf32, #tpu.memory_space<vmem>>, vector<32x128xf32>
    %cst_155 = arith.constant dense<0.000000e+00> : vector<1x128xf32>
    %349 = tpu.matmul %347, %348, %cst_155 {dimension_numbers = #tpu.dot_dimension_numbers<[1], [0], [0], [1], [0, 0, 1, 1], [], []>} : vector<1x32xf32>, vector<32x128xf32>, vector<1x128xf32> -> vector<1x128xf32>
    %350 = arith.addf %320, %349 : vector<1x128xf32>
    %351 = vector.extract_strided_slice %350 {offsets = [0, 0], sizes = [1, 32], strides = [1, 1]} : vector<1x128xf32> to vector<1x32xf32>
    %352 = arith.negf %351 : vector<1x32xf32>
    %353 = math.exp %352 : vector<1x32xf32>
    %cst_156 = arith.constant 1.000000e+00 : f32
    %354 = vector.broadcast %cst_156 : f32 to vector<1x32xf32>
    %355 = arith.addf %354, %353 : vector<1x32xf32>
    %356 = arith.divf %354, %355 : vector<1x32xf32>
    %357 = vector.extract_strided_slice %350 {offsets = [0, 32], sizes = [1, 32], strides = [1, 1]} : vector<1x128xf32> to vector<1x32xf32>
    %358 = arith.negf %357 : vector<1x32xf32>
    %359 = math.exp %358 : vector<1x32xf32>
    %cst_157 = arith.constant 1.000000e+00 : f32
    %360 = vector.broadcast %cst_157 : f32 to vector<1x32xf32>
    %361 = arith.addf %360, %359 : vector<1x32xf32>
    %362 = arith.divf %360, %361 : vector<1x32xf32>
    %363 = vector.extract_strided_slice %350 {offsets = [0, 64], sizes = [1, 32], strides = [1, 1]} : vector<1x128xf32> to vector<1x32xf32>
    %364 = vector.extract_strided_slice %350 {offsets = [0, 96], sizes = [1, 32], strides = [1, 1]} : vector<1x128xf32> to vector<1x32xf32>
    %365 = arith.mulf %356, %364 : vector<1x32xf32>
    %366 = arith.addf %363, %365 : vector<1x32xf32>
    %367 = math.tanh %366 : vector<1x32xf32>
    %cst_158 = arith.constant 1.000000e+00 : f32
    %368 = vector.broadcast %cst_158 : f32 to vector<1x32xf32>
    %369 = arith.subf %368, %362 : vector<1x32xf32>
    %370 = arith.mulf %369, %367 : vector<1x32xf32>
    %371 = arith.mulf %362, %311 : vector<1x32xf32>
    %372 = arith.addf %370, %371 : vector<1x32xf32>
    %373 = arith.index_cast %c5_i32 : i32 to index
    %c0_159 = arith.constant 0 : index
    %374 = vector.load %arg14[%373, %c0_159] : memref<8x32xf32, #tpu.memory_space<vmem>>, vector<1x32xf32>
    tpu.vector_store %arg14[%373, %c0_159], %372 {strides = array<i32>} : memref<8x32xf32, #tpu.memory_space<vmem>>, vector<1x32xf32>,
    %375 = arith.index_cast %c5_i32 : i32 to index
    %c0_160 = arith.constant 0 : index
    %376 = vector.load %arg15[%375, %c0_160] : memref<8x16xf32, #tpu.memory_space<vmem>>, vector<1x16xf32>
    tpu.vector_store %arg15[%375, %c0_160], %329 {strides = array<i32>} : memref<8x16xf32, #tpu.memory_space<vmem>>, vector<1x16xf32>,
    %c6_i32 = arith.constant 6 : i32
    %c0_161 = arith.constant 0 : index
    %c0_162 = arith.constant 0 : index
    %377 = vector.load %arg5[%c0_161, %c0_162] : memref<32x144xf32, #tpu.memory_space<vmem>>, vector<32x144xf32>
    %cst_163 = arith.constant dense<0.000000e+00> : vector<1x144xf32>
    %378 = tpu.matmul %372, %377, %cst_163 {dimension_numbers = #tpu.dot_dimension_numbers<[1], [0], [0], [1], [0, 0, 1, 1], [], []>} : vector<1x32xf32>, vector<32x144xf32>, vector<1x144xf32> -> vector<1x144xf32>
    %c0_164 = arith.constant 0 : index
    %c0_165 = arith.constant 0 : index
    %379 = vector.load %arg6[%c0_164, %c0_165] : memref<1x144xf32, #tpu.memory_space<vmem>>, vector<1x144xf32>
    %380 = arith.addf %378, %379 : vector<1x144xf32>
    %381 = vector.extract_strided_slice %380 {offsets = [0, 0], sizes = [1, 128], strides = [1, 1]} : vector<1x144xf32> to vector<1x128xf32>
    %382 = arith.index_cast %c6_i32 : i32 to index
    %c0_166 = arith.constant 0 : index
    %383 = vector.load %arg12[%382, %c0_166] : memref<8x16xf32, #tpu.memory_space<vmem>>, vector<1x16xf32>
    %384 = vector.extract_strided_slice %380 {offsets = [0, 128], sizes = [1, 16], strides = [1, 1]} : vector<1x144xf32> to vector<1x16xf32>
    %385 = arith.addf %383, %384 : vector<1x16xf32>
    %cst_167 = arith.constant dense<0xFF800000> : vector<1xf32>
    %386 = vector.multi_reduction <maximumf>, %385, %cst_167 [1] : vector<1x16xf32> to vector<1xf32>
    %387 = vector.shape_cast %386 : vector<1xf32> to vector<1x1xf32>
    %388 = vector.broadcast %387 : vector<1x1xf32> to vector<1x16xf32>
    %389 = arith.subf %385, %388 : vector<1x16xf32>
    %390 = math.exp %389 : vector<1x16xf32>
    %cst_168 = arith.constant dense<0.000000e+00> : vector<1xf32>
    %391 = vector.multi_reduction <add>, %390, %cst_168 [1] : vector<1x16xf32> to vector<1xf32>
    %392 = vector.shape_cast %391 : vector<1xf32> to vector<1x1xf32>
    %393 = tpu.reciprocal %392 {approx = true} : vector<1x1xf32> -> vector<1x1xf32>
    %394 = arith.mulf %392, %393 : vector<1x1xf32>
    %cst_169 = arith.constant 2.000000e+00 : f32
    %395 = vector.broadcast %cst_169 : f32 to vector<1x1xf32>
    %396 = arith.subf %395, %394 : vector<1x1xf32>
    %397 = arith.mulf %393, %396 : vector<1x1xf32>
    %c0_170 = arith.constant 0 : index
    %c0_171 = arith.constant 0 : index
    %398 = vector.load %arg0[%c0_170, %c0_171] : memref<16x32xf32, #tpu.memory_space<vmem>>, vector<16x32xf32>
    %cst_172 = arith.constant dense<0.000000e+00> : vector<1x32xf32>
    %399 = tpu.matmul %390, %398, %cst_172 {dimension_numbers = #tpu.dot_dimension_numbers<[1], [0], [0], [1], [0, 0, 1, 1], [], []>} : vector<1x16xf32>, vector<16x32xf32>, vector<1x32xf32> -> vector<1x32xf32>
    %400 = vector.broadcast %397 : vector<1x1xf32> to vector<1x32xf32>
    %401 = arith.mulf %399, %400 : vector<1x32xf32>
    %402 = arith.index_cast %c6_i32 : i32 to index
    %c0_173 = arith.constant 0 : index
    %403 = vector.load %arg13[%402, %c0_173] : memref<8x32xf32, #tpu.memory_space<vmem>>, vector<1x32xf32>
    %c0_174 = arith.constant 0 : index
    %c0_175 = arith.constant 0 : index
    %404 = vector.load %arg8[%c0_174, %c0_175] : memref<32x32xf32, #tpu.memory_space<vmem>>, vector<32x32xf32>
    %cst_176 = arith.constant dense<0.000000e+00> : vector<1x32xf32>
    %405 = tpu.matmul %401, %404, %cst_176 {dimension_numbers = #tpu.dot_dimension_numbers<[1], [0], [0], [1], [0, 0, 1, 1], [], []>} : vector<1x32xf32>, vector<32x32xf32>, vector<1x32xf32> -> vector<1x32xf32>
    %406 = arith.addf %403, %405 : vector<1x32xf32>
    %cst_177 = arith.constant 0.000000e+00 : f32
    %407 = vector.broadcast %cst_177 : f32 to vector<1x32xf32>
    %408 = arith.maximumf %406, %407 : vector<1x32xf32>
    %c0_178 = arith.constant 0 : index
    %c0_179 = arith.constant 0 : index
    %409 = vector.load %arg7[%c0_178, %c0_179] : memref<32x128xf32, #tpu.memory_space<vmem>>, vector<32x128xf32>
    %cst_180 = arith.constant dense<0.000000e+00> : vector<1x128xf32>
    %410 = tpu.matmul %408, %409, %cst_180 {dimension_numbers = #tpu.dot_dimension_numbers<[1], [0], [0], [1], [0, 0, 1, 1], [], []>} : vector<1x32xf32>, vector<32x128xf32>, vector<1x128xf32> -> vector<1x128xf32>
    %411 = arith.addf %381, %410 : vector<1x128xf32>
    %412 = vector.extract_strided_slice %411 {offsets = [0, 0], sizes = [1, 32], strides = [1, 1]} : vector<1x128xf32> to vector<1x32xf32>
    %413 = arith.negf %412 : vector<1x32xf32>
    %414 = math.exp %413 : vector<1x32xf32>
    %cst_181 = arith.constant 1.000000e+00 : f32
    %415 = vector.broadcast %cst_181 : f32 to vector<1x32xf32>
    %416 = arith.addf %415, %414 : vector<1x32xf32>
    %417 = arith.divf %415, %416 : vector<1x32xf32>
    %418 = vector.extract_strided_slice %411 {offsets = [0, 32], sizes = [1, 32], strides = [1, 1]} : vector<1x128xf32> to vector<1x32xf32>
    %419 = arith.negf %418 : vector<1x32xf32>
    %420 = math.exp %419 : vector<1x32xf32>
    %cst_182 = arith.constant 1.000000e+00 : f32
    %421 = vector.broadcast %cst_182 : f32 to vector<1x32xf32>
    %422 = arith.addf %421, %420 : vector<1x32xf32>
    %423 = arith.divf %421, %422 : vector<1x32xf32>
    %424 = vector.extract_strided_slice %411 {offsets = [0, 64], sizes = [1, 32], strides = [1, 1]} : vector<1x128xf32> to vector<1x32xf32>
    %425 = vector.extract_strided_slice %411 {offsets = [0, 96], sizes = [1, 32], strides = [1, 1]} : vector<1x128xf32> to vector<1x32xf32>
    %426 = arith.mulf %417, %425 : vector<1x32xf32>
    %427 = arith.addf %424, %426 : vector<1x32xf32>
    %428 = math.tanh %427 : vector<1x32xf32>
    %cst_183 = arith.constant 1.000000e+00 : f32
    %429 = vector.broadcast %cst_183 : f32 to vector<1x32xf32>
    %430 = arith.subf %429, %423 : vector<1x32xf32>
    %431 = arith.mulf %430, %428 : vector<1x32xf32>
    %432 = arith.mulf %423, %372 : vector<1x32xf32>
    %433 = arith.addf %431, %432 : vector<1x32xf32>
    %434 = arith.index_cast %c6_i32 : i32 to index
    %c0_184 = arith.constant 0 : index
    %435 = vector.load %arg14[%434, %c0_184] : memref<8x32xf32, #tpu.memory_space<vmem>>, vector<1x32xf32>
    tpu.vector_store %arg14[%434, %c0_184], %433 {strides = array<i32>} : memref<8x32xf32, #tpu.memory_space<vmem>>, vector<1x32xf32>,
    %436 = arith.index_cast %c6_i32 : i32 to index
    %c0_185 = arith.constant 0 : index
    %437 = vector.load %arg15[%436, %c0_185] : memref<8x16xf32, #tpu.memory_space<vmem>>, vector<1x16xf32>
    tpu.vector_store %arg15[%436, %c0_185], %390 {strides = array<i32>} : memref<8x16xf32, #tpu.memory_space<vmem>>, vector<1x16xf32>,
    %c7_i32 = arith.constant 7 : i32
    %c0_186 = arith.constant 0 : index
    %c0_187 = arith.constant 0 : index
    %438 = vector.load %arg5[%c0_186, %c0_187] : memref<32x144xf32, #tpu.memory_space<vmem>>, vector<32x144xf32>
    %cst_188 = arith.constant dense<0.000000e+00> : vector<1x144xf32>
    %439 = tpu.matmul %433, %438, %cst_188 {dimension_numbers = #tpu.dot_dimension_numbers<[1], [0], [0], [1], [0, 0, 1, 1], [], []>} : vector<1x32xf32>, vector<32x144xf32>, vector<1x144xf32> -> vector<1x144xf32>
    %c0_189 = arith.constant 0 : index
    %c0_190 = arith.constant 0 : index
    %440 = vector.load %arg6[%c0_189, %c0_190] : memref<1x144xf32, #tpu.memory_space<vmem>>, vector<1x144xf32>
    %441 = arith.addf %439, %440 : vector<1x144xf32>
    %442 = vector.extract_strided_slice %441 {offsets = [0, 0], sizes = [1, 128], strides = [1, 1]} : vector<1x144xf32> to vector<1x128xf32>
    %443 = arith.index_cast %c7_i32 : i32 to index
    %c0_191 = arith.constant 0 : index
    %444 = vector.load %arg12[%443, %c0_191] : memref<8x16xf32, #tpu.memory_space<vmem>>, vector<1x16xf32>
    %445 = vector.extract_strided_slice %441 {offsets = [0, 128], sizes = [1, 16], strides = [1, 1]} : vector<1x144xf32> to vector<1x16xf32>
    %446 = arith.addf %444, %445 : vector<1x16xf32>
    %cst_192 = arith.constant dense<0xFF800000> : vector<1xf32>
    %447 = vector.multi_reduction <maximumf>, %446, %cst_192 [1] : vector<1x16xf32> to vector<1xf32>
    %448 = vector.shape_cast %447 : vector<1xf32> to vector<1x1xf32>
    %449 = vector.broadcast %448 : vector<1x1xf32> to vector<1x16xf32>
    %450 = arith.subf %446, %449 : vector<1x16xf32>
    %451 = math.exp %450 : vector<1x16xf32>
    %cst_193 = arith.constant dense<0.000000e+00> : vector<1xf32>
    %452 = vector.multi_reduction <add>, %451, %cst_193 [1] : vector<1x16xf32> to vector<1xf32>
    %453 = vector.shape_cast %452 : vector<1xf32> to vector<1x1xf32>
    %454 = tpu.reciprocal %453 {approx = true} : vector<1x1xf32> -> vector<1x1xf32>
    %455 = arith.mulf %453, %454 : vector<1x1xf32>
    %cst_194 = arith.constant 2.000000e+00 : f32
    %456 = vector.broadcast %cst_194 : f32 to vector<1x1xf32>
    %457 = arith.subf %456, %455 : vector<1x1xf32>
    %458 = arith.mulf %454, %457 : vector<1x1xf32>
    %c0_195 = arith.constant 0 : index
    %c0_196 = arith.constant 0 : index
    %459 = vector.load %arg0[%c0_195, %c0_196] : memref<16x32xf32, #tpu.memory_space<vmem>>, vector<16x32xf32>
    %cst_197 = arith.constant dense<0.000000e+00> : vector<1x32xf32>
    %460 = tpu.matmul %451, %459, %cst_197 {dimension_numbers = #tpu.dot_dimension_numbers<[1], [0], [0], [1], [0, 0, 1, 1], [], []>} : vector<1x16xf32>, vector<16x32xf32>, vector<1x32xf32> -> vector<1x32xf32>
    %461 = vector.broadcast %458 : vector<1x1xf32> to vector<1x32xf32>
    %462 = arith.mulf %460, %461 : vector<1x32xf32>
    %463 = arith.index_cast %c7_i32 : i32 to index
    %c0_198 = arith.constant 0 : index
    %464 = vector.load %arg13[%463, %c0_198] : memref<8x32xf32, #tpu.memory_space<vmem>>, vector<1x32xf32>
    %c0_199 = arith.constant 0 : index
    %c0_200 = arith.constant 0 : index
    %465 = vector.load %arg8[%c0_199, %c0_200] : memref<32x32xf32, #tpu.memory_space<vmem>>, vector<32x32xf32>
    %cst_201 = arith.constant dense<0.000000e+00> : vector<1x32xf32>
    %466 = tpu.matmul %462, %465, %cst_201 {dimension_numbers = #tpu.dot_dimension_numbers<[1], [0], [0], [1], [0, 0, 1, 1], [], []>} : vector<1x32xf32>, vector<32x32xf32>, vector<1x32xf32> -> vector<1x32xf32>
    %467 = arith.addf %464, %466 : vector<1x32xf32>
    %cst_202 = arith.constant 0.000000e+00 : f32
    %468 = vector.broadcast %cst_202 : f32 to vector<1x32xf32>
    %469 = arith.maximumf %467, %468 : vector<1x32xf32>
    %c0_203 = arith.constant 0 : index
    %c0_204 = arith.constant 0 : index
    %470 = vector.load %arg7[%c0_203, %c0_204] : memref<32x128xf32, #tpu.memory_space<vmem>>, vector<32x128xf32>
    %cst_205 = arith.constant dense<0.000000e+00> : vector<1x128xf32>
    %471 = tpu.matmul %469, %470, %cst_205 {dimension_numbers = #tpu.dot_dimension_numbers<[1], [0], [0], [1], [0, 0, 1, 1], [], []>} : vector<1x32xf32>, vector<32x128xf32>, vector<1x128xf32> -> vector<1x128xf32>
    %472 = arith.addf %442, %471 : vector<1x128xf32>
    %473 = vector.extract_strided_slice %472 {offsets = [0, 0], sizes = [1, 32], strides = [1, 1]} : vector<1x128xf32> to vector<1x32xf32>
    %474 = arith.negf %473 : vector<1x32xf32>
    %475 = math.exp %474 : vector<1x32xf32>
    %cst_206 = arith.constant 1.000000e+00 : f32
    %476 = vector.broadcast %cst_206 : f32 to vector<1x32xf32>
    %477 = arith.addf %476, %475 : vector<1x32xf32>
    %478 = arith.divf %476, %477 : vector<1x32xf32>
    %479 = vector.extract_strided_slice %472 {offsets = [0, 32], sizes = [1, 32], strides = [1, 1]} : vector<1x128xf32> to vector<1x32xf32>
    %480 = arith.negf %479 : vector<1x32xf32>
    %481 = math.exp %480 : vector<1x32xf32>
    %cst_207 = arith.constant 1.000000e+00 : f32
    %482 = vector.broadcast %cst_207 : f32 to vector<1x32xf32>
    %483 = arith.addf %482, %481 : vector<1x32xf32>
    %484 = arith.divf %482, %483 : vector<1x32xf32>
    %485 = vector.extract_strided_slice %472 {offsets = [0, 64], sizes = [1, 32], strides = [1, 1]} : vector<1x128xf32> to vector<1x32xf32>
    %486 = vector.extract_strided_slice %472 {offsets = [0, 96], sizes = [1, 32], strides = [1, 1]} : vector<1x128xf32> to vector<1x32xf32>
    %487 = arith.mulf %478, %486 : vector<1x32xf32>
    %488 = arith.addf %485, %487 : vector<1x32xf32>
    %489 = math.tanh %488 : vector<1x32xf32>
    %cst_208 = arith.constant 1.000000e+00 : f32
    %490 = vector.broadcast %cst_208 : f32 to vector<1x32xf32>
    %491 = arith.subf %490, %484 : vector<1x32xf32>
    %492 = arith.mulf %491, %489 : vector<1x32xf32>
    %493 = arith.mulf %484, %433 : vector<1x32xf32>
    %494 = arith.addf %492, %493 : vector<1x32xf32>
    %495 = arith.index_cast %c7_i32 : i32 to index
    %c0_209 = arith.constant 0 : index
    %496 = vector.load %arg14[%495, %c0_209] : memref<8x32xf32, #tpu.memory_space<vmem>>, vector<1x32xf32>
    tpu.vector_store %arg14[%495, %c0_209], %494 {strides = array<i32>} : memref<8x32xf32, #tpu.memory_space<vmem>>, vector<1x32xf32>,
    %497 = arith.index_cast %c7_i32 : i32 to index
    %c0_210 = arith.constant 0 : index
    %498 = vector.load %arg15[%497, %c0_210] : memref<8x16xf32, #tpu.memory_space<vmem>>, vector<1x16xf32>
    tpu.vector_store %arg15[%497, %c0_210], %451 {strides = array<i32>} : memref<8x16xf32, #tpu.memory_space<vmem>>, vector<1x16xf32>,
    %c8_i32 = arith.constant 8 : i32
    %c0_211 = arith.constant 0 : index
    %c0_212 = arith.constant 0 : index
    %499 = vector.load %arg14[%c0_211, %c0_212] : memref<8x32xf32, #tpu.memory_space<vmem>>, vector<8x32xf32>
    %c0_213 = arith.constant 0 : index
    %c0_214 = arith.constant 0 : index
    %500 = vector.load %arg9[%c0_213, %c0_214] : memref<32x64xf32, #tpu.memory_space<vmem>>, vector<32x64xf32>
    %cst_215 = arith.constant dense<0.000000e+00> : vector<8x64xf32>
    %501 = tpu.matmul %499, %500, %cst_215 {dimension_numbers = #tpu.dot_dimension_numbers<[1], [0], [0], [1], [0, 0, 1, 1], [], []>} : vector<8x32xf32>, vector<32x64xf32>, vector<8x64xf32> -> vector<8x64xf32>
    %c0_216 = arith.constant 0 : index
    %c0_217 = arith.constant 0 : index
    %502 = vector.load %arg10[%c0_216, %c0_217] : memref<1x64xf32, #tpu.memory_space<vmem>>, vector<1x64xf32>
    %503 = vector.broadcast %502 : vector<1x64xf32> to vector<8x64xf32>
    %504 = arith.addf %501, %503 : vector<8x64xf32>
    %cst_218 = arith.constant dense<0xFF800000> : vector<8xf32>
    %505 = vector.multi_reduction <maximumf>, %504, %cst_218 [1] : vector<8x64xf32> to vector<8xf32>
    %506 = vector.shape_cast %505 : vector<8xf32> to vector<8x1xf32>
    %507 = vector.broadcast %506 : vector<8x1xf32> to vector<8x64xf32>
    %508 = arith.subf %504, %507 : vector<8x64xf32>
    %509 = math.exp %508 : vector<8x64xf32>
    %cst_219 = arith.constant dense<0.000000e+00> : vector<8xf32>
    %510 = vector.multi_reduction <add>, %509, %cst_219 [1] : vector<8x64xf32> to vector<8xf32>
    %511 = vector.shape_cast %510 : vector<8xf32> to vector<8x1xf32>
    %512 = math.log %511 : vector<8x1xf32>
    %513 = vector.broadcast %512 : vector<8x1xf32> to vector<8x64xf32>
    %514 = arith.subf %508, %513 : vector<8x64xf32>
    %c0_220 = arith.constant 0 : index
    %c0_221 = arith.constant 0 : index
    %515 = vector.load %arg15[%c0_220, %c0_221] : memref<8x16xf32, #tpu.memory_space<vmem>>, vector<8x16xf32>
    %cst_222 = arith.constant dense<0.000000e+00> : vector<8xf32>
    %516 = vector.multi_reduction <add>, %515, %cst_222 [1] : vector<8x16xf32> to vector<8xf32>
    %517 = vector.shape_cast %516 : vector<8xf32> to vector<8x1xf32>
    %518 = vector.broadcast %517 : vector<8x1xf32> to vector<8x16xf32>
    %519 = arith.divf %515, %518 : vector<8x16xf32>
    %cst_223 = arith.constant 0.000000e+00 : f32
    %520 = vector.broadcast %cst_223 : f32 to vector<8x16xf32>
    %521 = tpu.concatenate %514, %499, %519, %520 in 1 : vector<8x64xf32>, vector<8x32xf32>, vector<8x16xf32>, vector<8x16xf32> -> vector<8x128xf32>
    %c0_224 = arith.constant 0 : index
    %c0_225 = arith.constant 0 : index
    %522 = vector.load %arg11[%c0_224, %c0_225] : memref<8x128xf32, #tpu.memory_space<vmem>>, vector<8x128xf32>
    tpu.vector_store %arg11[%c0_224, %c0_225], %521 {strides = array<i32>} : memref<8x128xf32, #tpu.memory_space<vmem>>, vector<8x128xf32>,
    return
  }
}

</mosaic_0001>

<llo_original>
// kernel: attn_decoder_forward_seq.1
$region0: #{attn_decoder_forward_seq.1}
  #allocation0 [shape = 'u32[]', space=smem, size = 0x4, offset = 0x4, fixed_abs, tag = 'smem constant byte address 0x4 - core index']
  #allocation1 [shape = 'u32[144,128]{1,0:T(1,128)}', space=vmem, size = 0x12000, scoped, tag = 'internal scratch']
  #allocation2 [shape = 'f32[8,16]{1,0:T(8,128)}', space=vmem, size = 0x1000, scoped, tag = 'scratch operand']
  #allocation3 [shape = 'f32[8,32]{1,0:T(8,128)}', space=vmem, size = 0x1000, scoped, tag = 'scratch operand']
  #allocation4 [shape = 'f32[8,32]{1,0:T(8,128)}', space=vmem, size = 0x1000, scoped, tag = 'scratch operand']
  #allocation5 [shape = 'f32[8,16]{1,0:T(8,128)}', space=vmem, size = 0x1000, scoped, tag = 'scratch operand']
  %s0 = inlined_call_operand.vmem [shape: f32[16,32], index: 0, kind: input, shape index: {}]
  %s1 = inlined_call_operand.vmem [shape: f32[1,32], index: 1, kind: input, shape index: {}]
  %s2 = inlined_call_operand.vmem [shape: f32[8,32], index: 2, kind: input, shape index: {}]
  %s3 = inlined_call_operand.vmem [shape: f32[32,48], index: 3, kind: input, shape index: {}]
  %s4 = inlined_call_operand.vmem [shape: f32[1,48], index: 4, kind: input, shape index: {}]
  %s5 = inlined_call_operand.vmem [shape: f32[32,144], index: 5, kind: input, shape index: {}]
  %s6 = inlined_call_operand.vmem [shape: f32[1,144], index: 6, kind: input, shape index: {}]
  %s7 = inlined_call_operand.vmem [shape: f32[32,128], index: 7, kind: input, shape index: {}]
  %s8 = inlined_call_operand.hbm [shape: f32[32,32], index: 8, kind: input, shape index: {}]
  %s9 = inlined_call_operand.hbm [shape: f32[32,64], index: 9, kind: input, shape index: {}]
  %s10 = inlined_call_operand.vmem [shape: f32[1,64], index: 10, kind: input, shape index: {}]
  %s11 = inlined_call_operand.vmem [shape: f32[8,128], index: 11, kind: output, shape index: {}]
  %s12 = sld [smem:[#allocation0]]
  $region62: #{attn_decoder_forward_seq.1} parent=0
    _
  %s14 = ssub.s32 1, %s12
  %s15 = scalar_select 0, %s14, %s12
  $region1: #{attn_decoder_forward_seq.1} parent=0
    #allocation6 [shape = 'u8[16384]{0}', space=vmem, size = 0x4000, scoped, tag = 'input window, operand 8, single buffered']
    #allocation7 [shape = 's32[1]{0}', space=sflag, size = 0x4, scoped, tag = 'scoped memory for attn_decoder_forward_seq.1']
    #allocation8 [shape = 'u8[16384]{0}', space=vmem, size = 0x4000, scoped, tag = 'input window, operand 9, single buffered']
    #allocation9 [shape = 's32[1]{0}', space=sflag, size = 0x4, scoped, tag = 'scoped memory for attn_decoder_forward_seq.1']
    %16 = vsyncpa [#allocation7], 0
    %17 = vsyncpa [#allocation9], 0
    // Predicated region
    $region2: #{attn_decoder_forward_seq.1} parent=1 // pred_check
      _
    $region3: #{attn_decoder_forward_seq.1} parent=1 // pred_check_branch
      %19 = sbr.rel (0) target = $region5
    $region4: #{attn_decoder_forward_seq.1} parent=1 // pred_region
      _
    $region5: #{attn_decoder_forward_seq.1} parent=1 // pred_fallthru
      _
    // Predicated region
    $region6: #{attn_decoder_forward_seq.1} parent=1 // pred_check
      _
    $region7: #{attn_decoder_forward_seq.1} parent=1 // pred_check_branch
      %21 = sbr.rel (0) target = $region9
    $region8: #{attn_decoder_forward_seq.1} parent=1 // pred_region
      _
    $region9: #{attn_decoder_forward_seq.1} parent=1 // pred_fallthru
      _
    // Predicated region
    $region10: #{attn_decoder_forward_seq.1} parent=1 // pred_check
      _
    $region11: #{attn_decoder_forward_seq.1} parent=1 // pred_check_branch
      %23 = sbr.rel (0) target = $region13
    $region12: #{attn_decoder_forward_seq.1} parent=1 // pred_region
      _
    $region13: #{attn_decoder_forward_seq.1} parent=1 // pred_fallthru
      _
    // Predicated region
    $region14: #{attn_decoder_forward_seq.1} parent=1 // pred_check
      _
    $region15: #{attn_decoder_forward_seq.1} parent=1 // pred_check_branch
      %25 = sbr.rel (0) target = $region17
    $region16: #{attn_decoder_forward_seq.1} parent=1 // pred_region
      _
    $region17: #{attn_decoder_forward_seq.1} parent=1 // pred_fallthru
      _
    // Predicated region
    $region18: #{attn_decoder_forward_seq.1} parent=1 // pred_check
      _
    $region19: #{attn_decoder_forward_seq.1} parent=1 // pred_check_branch
      %27 = sbr.rel (0) target = $region21
    $region20: #{attn_decoder_forward_seq.1} parent=1 // pred_region
      _
    $region21: #{attn_decoder_forward_seq.1} parent=1 // pred_fallthru
      _
    // Predicated region
    $region22: #{attn_decoder_forward_seq.1} parent=1 // pred_check
      _
    $region23: #{attn_decoder_forward_seq.1} parent=1 // pred_check_branch
      %29 = sbr.rel (0) target = $region25
    $region24: #{attn_decoder_forward_seq.1} parent=1 // pred_region
      _
    $region25: #{attn_decoder_forward_seq.1} parent=1 // pred_fallthru
      _
    // Predicated region
    $region26: #{attn_decoder_forward_seq.1} parent=1 // pred_check
      _
    $region27: #{attn_decoder_forward_seq.1} parent=1 // pred_check_branch
      %31 = sbr.rel (0) target = $region29
    $region28: #{attn_decoder_forward_seq.1} parent=1 // pred_region
      _
    $region29: #{attn_decoder_forward_seq.1} parent=1 // pred_fallthru
      _
    // Predicated region
    $region30: #{attn_decoder_forward_seq.1} parent=1 // pred_check
      _
    $region31: #{attn_decoder_forward_seq.1} parent=1 // pred_check_branch
      %33 = sbr.rel (0) target = $region33
    $region32: #{attn_decoder_forward_seq.1} parent=1 // pred_region
      _
    $region33: #{attn_decoder_forward_seq.1} parent=1 // pred_fallthru
      _
    // Predicated region
    $region34: #{attn_decoder_forward_seq.1} parent=1 // pred_check
      _
    $region35: #{attn_decoder_forward_seq.1} parent=1 // pred_check_branch
      %35 = sbr.rel (0) target = $region37
    $region36: #{attn_decoder_forward_seq.1} parent=1 // pred_region
      %s37 = ssub.s32 512, 512
      %38 = vsyncadd [#allocation7], %s37
      %s39 = sshll.u32 [#allocation6], 4
      %s40 = int_to_ptr.vmem [resolvable:$true] %s39
      %45 = dma.hbm_to_vmem [thread:$0]  %s8, 512, %s40, [#allocation7], 128, 128, 8
    $region37: #{attn_decoder_forward_seq.1} parent=1 // pred_fallthru
      _
    // Predicated region
    $region38: #{attn_decoder_forward_seq.1} parent=1 // pred_check
      _
    $region39: #{attn_decoder_forward_seq.1} parent=1 // pred_check_branch
      %47 = sbr.rel (0) target = $region41
    $region40: #{attn_decoder_forward_seq.1} parent=1 // pred_region
      %s49 = ssub.s32 512, 512
      %50 = vsyncadd [#allocation9], %s49
      %s51 = sshll.u32 [#allocation8], 4
      %s52 = int_to_ptr.vmem [resolvable:$true] %s51
      %57 = dma.hbm_to_vmem [thread:$0]  %s9, 512, %s52, [#allocation9], 128, 128, 8
    $region41: #{attn_decoder_forward_seq.1} parent=1 // pred_fallthru
      _
    // Predicated region
    $region42: #{attn_decoder_forward_seq.1} parent=1 // pred_check
      _
    $region43: #{attn_decoder_forward_seq.1} parent=1 // pred_check_branch
      %59 = sbr.rel (0) target = $region45
    $region44: #{attn_decoder_forward_seq.1} parent=1 // pred_region
      _
    $region45: #{attn_decoder_forward_seq.1} parent=1 // pred_fallthru
      _
    // Predicated region
    $region46: #{attn_decoder_forward_seq.1} parent=1 // pred_check
      _
    $region47: #{attn_decoder_forward_seq.1} parent=1 // pred_check_branch
      %61 = sbr.rel (0) target = $region49
    $region48: #{attn_decoder_forward_seq.1} parent=1 // pred_region
      %62 = dma.done [#allocation7], 512
    $region49: #{attn_decoder_forward_seq.1} parent=1 // pred_fallthru
      _
    // Predicated region
    $region50: #{attn_decoder_forward_seq.1} parent=1 // pred_check
      _
    $region51: #{attn_decoder_forward_seq.1} parent=1 // pred_check_branch
      %64 = sbr.rel (0) target = $region53
    $region52: #{attn_decoder_forward_seq.1} parent=1 // pred_region
      %65 = dma.done [#allocation9], 512
    $region53: #{attn_decoder_forward_seq.1} parent=1 // pred_fallthru
      _
    %v66 = vld [vmem:[%s2] sm:$0xff]
    %v67 = vld [vmem:[%s3] sm:$0xff]
    %v68 = vld [vmem:[%s3 + $0x8] sm:$0xff]
    %v69 = vld [vmem:[%s3 + $0x10] sm:$0xff]
    %v70 = vld [vmem:[%s3 + $0x18] sm:$0xff]
    %v71 = vld [vmem:[%s4] sm:$0x1]
    %v73 = vlaneseq
    %v74 = vshrl.u32 %v73, 7
    %v75 = vsub.s32 0, %v74
    %v76 = vrot.slane %v71, %v75
    %vm78 = vcmask 261120
    %v80 = vsel %vm78, %v66, 0
    %82 = vmatprep.subr.mxu0 0.0
    %83 = vmatpush1.msra.mxu0 %v67
    %84 = vmatprep.subr.mxu0 0.0
    %85 = vmatpush1.msra.mxu0 %v68
    %86 = vmatprep.subr.mxu0 0.0
    %87 = vmatpush1.msra.mxu0 %v69
    %88 = vmatprep.subr.mxu0 0.0
    %89 = vmatpush1.msra.mxu0 %v70
    %90 = vmatprep.subr.mxu0 0.0
    %91 = vmatpush1.msra.mxu0 0.0
    %92 = vmatprep.subr.mxu0 0.0
    %93 = vmatpush1.msra.mxu0 0.0
    %94 = vmatprep.subr.mxu0 0.0
    %95 = vmatpush1.msra.mxu0 0.0
    %96 = vmatprep.subr.mxu0 0.0
    %97 = vmatpush1.msra.mxu0 0.0
    %98 = vmatprep.subr.mxu0 0.0
    %99 = vmatpush1.msra.mxu0 0.0
    %100 = vmatprep.subr.mxu0 0.0
    %101 = vmatpush1.msra.mxu0 0.0
    %102 = vmatprep.subr.mxu0 0.0
    %103 = vmatpush1.msra.mxu0 0.0
    %104 = vmatprep.subr.mxu0 0.0
    %105 = vmatpush1.msra.mxu0 0.0
    %106 = vmatprep.subr.mxu0 0.0
    %107 = vmatpush1.msra.mxu0 0.0
    %108 = vmatprep.subr.mxu0 0.0
    %109 = vmatpush1.msra.mxu0 0.0
    %110 = vmatprep.subr.mxu0 0.0
    %111 = vmatpush1.msra.mxu0 0.0
    %112 = vmatprep.subr.mxu0 0.0
    %113 = vmatpush1.msra.mxu0 0.0
    %114 = vmatprep.subr.mxu0 0.0
    %115 = vmatpush1.msra.mxu0 0.0
    %116 = vmatprep.subr.mxu0 0.0
    %117 = vmatpush1.msra.mxu0 0.0
    %118 = vmatprep.subr.mxu0 0.0
    %119 = vmatpush1.msra.mxu0 0.0
    %120 = vmatprep.subr.mxu0 0.0
    %121 = vmatpush1.msra.mxu0 0.0
    %122 = vmatprep.subr.mxu0 0.0
    %123 = vmatpush1.msra.mxu0 0.0
    %124 = vmatprep.subr.mxu0 0.0
    %125 = vmatpush1.msra.mxu0 0.0
    %126 = vmatprep.subr.mxu0 0.0
    %127 = vmatpush1.msra.mxu0 0.0
    %128 = vmatprep.subr.mxu0 0.0
    %129 = vmatpush1.msra.mxu0 0.0
    %130 = vmatprep.subr.mxu0 0.0
    %131 = vmatpush1.msra.mxu0 0.0
    %132 = vmatprep.subr.mxu0 0.0
    %133 = vmatpush1.msra.mxu0 0.0
    %134 = vmatprep.subr.mxu0 0.0
    %135 = vmatpush1.msra.mxu0 0.0
    %136 = vmatprep.subr.mxu0 0.0
    %137 = vmatpush1.msra.mxu0 0.0
    %138 = vmatprep.subr.mxu0 0.0
    %139 = vmatpush1.msra.mxu0 0.0
    %140 = vmatprep.subr.mxu0 0.0
    %141 = vmatpush1.msra.mxu0 0.0
    %142 = vmatprep.subr.mxu0 0.0
    %143 = vmatpush1.msra.mxu0 0.0
    %144 = vmatprep.subr.mxu0 0.0
    %145 = vmatpush1.msra.mxu0 0.0
    %146 = vmatprep.mubr.f32.mxu0 0.0
    %147 = vmatmul.mubr.f32.gmra.mrb[0].mxu0 %v80
    %v148 = vpop.f32.mrb[0].mxu0
    %v149 = vadd.f32 %v76, %v148
    %v150 = vpop.f32.mrb[0].mxu0
    %151 = vdwg.mxu0
    %vm152 = vcmask 130048
    %153 = vst.msk [vmem:[#allocation2] sm:$0xff] %vm152, %v149
    %155 = vrot.lane.b32.xlu0 %v149, 112
    %v156 = vpop.permute.xlu0 %155
    %158 = vst.msk [vmem:[#allocation3] sm:$0xff] %vm78, %v156
    %v159 = vld [vmem:[%s1] sm:$0x1]
    %v160 = vld [vmem:[%s5] sm:$0xff]
    %v161 = vld [vmem:[%s5 + $0x8] sm:$0xff]
    %v162 = vld [vmem:[%s5 + $0x10] sm:$0xff]
    %v163 = vld [vmem:[%s5 + $0x18] sm:$0xff]
    %v164 = vld [vmem:[%s5 + $0x20] sm:$0xff]
    %v165 = vld [vmem:[%s5 + $0x28] sm:$0xff]
    %v166 = vld [vmem:[%s5 + $0x30] sm:$0xff]
    %v167 = vld [vmem:[%s5 + $0x38] sm:$0xff]
    %v168 = vld [vmem:[%s6] sm:$0x3]
    %v170 = vlaneseq
    %v171 = vshrl.u32 %v170, 7
    %v172 = vsub.s32 0, %v171
    %v173 = vrot.slane %v168, %v172
    %v174 = vlaneseq
    %v175 = vshrl.u32 %v174, 7
    %v176 = vsub.s32 1, %v175
    %v177 = vrot.slane %v168, %v176
    %v181 = vsel %vm78, %v159, 0
    %183 = vmatprep.subr.mxu0 %v161
    %184 = vmatpush1.msra.mxu0 %v160
    %185 = vmatprep.subr.mxu0 %v163
    %186 = vmatpush1.msra.mxu0 %v162
    %187 = vmatprep.subr.mxu0 %v165
    %188 = vmatpush1.msra.mxu0 %v164
    %189 = vmatprep.subr.mxu0 %v167
    %190 = vmatpush1.msra.mxu0 %v166
    %191 = vmatprep.subr.mxu0 0.0
    %192 = vmatpush1.msra.mxu0 0.0
    %193 = vmatprep.subr.mxu0 0.0
    %194 = vmatpush1.msra.mxu0 0.0
    %195 = vmatprep.subr.mxu0 0.0
    %196 = vmatpush1.msra.mxu0 0.0
    %197 = vmatprep.subr.mxu0 0.0
    %198 = vmatpush1.msra.mxu0 0.0
    %199 = vmatprep.subr.mxu0 0.0
    %200 = vmatpush1.msra.mxu0 0.0
    %201 = vmatprep.subr.mxu0 0.0
    %202 = vmatpush1.msra.mxu0 0.0
    %203 = vmatprep.subr.mxu0 0.0
    %204 = vmatpush1.msra.mxu0 0.0
    %205 = vmatprep.subr.mxu0 0.0
    %206 = vmatpush1.msra.mxu0 0.0
    %207 = vmatprep.subr.mxu0 0.0
    %208 = vmatpush1.msra.mxu0 0.0
    %209 = vmatprep.subr.mxu0 0.0
    %210 = vmatpush1.msra.mxu0 0.0
    %211 = vmatprep.subr.mxu0 0.0
    %212 = vmatpush1.msra.mxu0 0.0
    %213 = vmatprep.subr.mxu0 0.0
    %214 = vmatpush1.msra.mxu0 0.0
    %215 = vmatprep.subr.mxu0 0.0
    %216 = vmatpush1.msra.mxu0 0.0
    %217 = vmatprep.subr.mxu0 0.0
    %218 = vmatpush1.msra.mxu0 0.0
    %219 = vmatprep.subr.mxu0 0.0
    %220 = vmatpush1.msra.mxu0 0.0
    %221 = vmatprep.subr.mxu0 0.0
    %222 = vmatpush1.msra.mxu0 0.0
    %223 = vmatprep.subr.mxu0 0.0
    %224 = vmatpush1.msra.mxu0 0.0
    %225 = vmatprep.subr.mxu0 0.0
    %226 = vmatpush1.msra.mxu0 0.0
    %227 = vmatprep.subr.mxu0 0.0
    %228 = vmatpush1.msra.mxu0 0.0
    %229 = vmatprep.subr.mxu0 0.0
    %230 = vmatpush1.msra.mxu0 0.0
    %231 = vmatprep.subr.mxu0 0.0
    %232 = vmatpush1.msra.mxu0 0.0
    %233 = vmatprep.subr.mxu0 0.0
    %234 = vmatpush1.msra.mxu0 0.0
    %235 = vmatprep.subr.mxu0 0.0
    %236 = vmatpush1.msra.mxu0 0.0
    %237 = vmatprep.subr.mxu0 0.0
    %238 = vmatpush1.msra.mxu0 0.0
    %239 = vmatprep.subr.mxu0 0.0
    %240 = vmatpush1.msra.mxu0 0.0
    %241 = vmatprep.subr.mxu0 0.0
    %242 = vmatpush1.msra.mxu0 0.0
    %243 = vmatprep.subr.mxu0 0.0
    %244 = vmatpush1.msra.mxu0 0.0
    %245 = vmatprep.subr.mxu0 0.0
    %246 = vmatpush1.msra.mxu0 0.0
    %247 = vmatprep.mubr.f32.mxu0 0.0
    %248 = vmatmul.mubr.f32.gmra.mrb[0].mxu0 %v181
    %v249 = vpop.f32.mrb[0].mxu0
    %v250 = vadd.f32 %v173, %v249
    %v251 = vpop.f32.mrb[0].mxu0
    %v252 = vadd.f32 %v177, %v251
    %253 = vdwg.mxu0
    %v254 = vld [vmem:[#allocation2] sm:$0x1]
    %v255 = vadd.f32 %v254, %v252
    %vm256 = vcmask 122880
    %v257 = vsel %vm256, %v255, -inf
    %258 = vmax.xlane.f32.xlu0 %v257
    %v259 = vpop.xlane.xlu0 %258
    %v260 = vsub.f32 %v255, %v259
    %v261 = vmul.f32 %v260, 1.442695
    %v262 = vpow.pop %v261
    %v263 = vsel %vm256, %v262, 0.0
    %264 = vadd.xlane.f32.xlu0 %v263
    %v265 = vpop.xlane.xlu0 %264
    %v266 = vrcp.pop %v265
    %v267 = vmul.f32 %v265, %v266
    %v268 = vsub.f32 2.0, %v267
    %v269 = vmul.f32 %v266, %v268
    %v270 = vld [vmem:[%s0] sm:$0xff]
    %v271 = vld [vmem:[%s0 + $0x8] sm:$0xff]
    %v273 = vsel %vm152, %v262, 0
    %275 = vmatprep.subr.mxu0 0.0
    %276 = vmatpush1.msra.mxu0 %v270
    %277 = vmatprep.subr.mxu0 0.0
    %278 = vmatpush1.msra.mxu0 %v271
    %279 = vmatprep.subr.mxu0 0.0
    %280 = vmatpush1.msra.mxu0 0.0
    %281 = vmatprep.subr.mxu0 0.0
    %282 = vmatpush1.msra.mxu0 0.0
    %283 = vmatprep.subr.mxu0 0.0
    %284 = vmatpush1.msra.mxu0 0.0
    %285 = vmatprep.subr.mxu0 0.0
    %286 = vmatpush1.msra.mxu0 0.0
    %287 = vmatprep.subr.mxu0 0.0
    %288 = vmatpush1.msra.mxu0 0.0
    %289 = vmatprep.subr.mxu0 0.0
    %290 = vmatpush1.msra.mxu0 0.0
    %291 = vmatprep.subr.mxu0 0.0
    %292 = vmatpush1.msra.mxu0 0.0
    %293 = vmatprep.subr.mxu0 0.0
    %294 = vmatpush1.msra.mxu0 0.0
    %295 = vmatprep.subr.mxu0 0.0
    %296 = vmatpush1.msra.mxu0 0.0
    %297 = vmatprep.subr.mxu0 0.0
    %298 = vmatpush1.msra.mxu0 0.0
    %299 = vmatprep.subr.mxu0 0.0
    %300 = vmatpush1.msra.mxu0 0.0
    %301 = vmatprep.subr.mxu0 0.0
    %302 = vmatpush1.msra.mxu0 0.0
    %303 = vmatprep.subr.mxu0 0.0
    %304 = vmatpush1.msra.mxu0 0.0
    %305 = vmatprep.subr.mxu0 0.0
    %306 = vmatpush1.msra.mxu0 0.0
    %307 = vmatprep.subr.mxu0 0.0
    %308 = vmatpush1.msra.mxu0 0.0
    %309 = vmatprep.subr.mxu0 0.0
    %310 = vmatpush1.msra.mxu0 0.0
    %311 = vmatprep.subr.mxu0 0.0
    %312 = vmatpush1.msra.mxu0 0.0
    %313 = vmatprep.subr.mxu0 0.0
    %314 = vmatpush1.msra.mxu0 0.0
    %315 = vmatprep.subr.mxu0 0.0
    %316 = vmatpush1.msra.mxu0 0.0
    %317 = vmatprep.subr.mxu0 0.0
    %318 = vmatpush1.msra.mxu0 0.0
    %319 = vmatprep.subr.mxu0 0.0
    %320 = vmatpush1.msra.mxu0 0.0
    %321 = vmatprep.subr.mxu0 0.0
    %322 = vmatpush1.msra.mxu0 0.0
    %323 = vmatprep.subr.mxu0 0.0
    %324 = vmatpush1.msra.mxu0 0.0
    %325 = vmatprep.subr.mxu0 0.0
    %326 = vmatpush1.msra.mxu0 0.0
    %327 = vmatprep.subr.mxu0 0.0
    %328 = vmatpush1.msra.mxu0 0.0
    %329 = vmatprep.subr.mxu0 0.0
    %330 = vmatpush1.msra.mxu0 0.0
    %331 = vmatprep.subr.mxu0 0.0
    %332 = vmatpush1.msra.mxu0 0.0
    %333 = vmatprep.subr.mxu0 0.0
    %334 = vmatpush1.msra.mxu0 0.0
    %335 = vmatprep.subr.mxu0 0.0
    %336 = vmatpush1.msra.mxu0 0.0
    %337 = vmatprep.subr.mxu0 0.0
    %338 = vmatpush1.msra.mxu0 0.0
    %339 = vmatprep.mubr.f32.mxu0 0.0
    %340 = vmatmul.mubr.f32.gmra.mrb[0].mxu0 %v273
    %v341 = vpop.f32.mrb[0].mxu0
    %v342 = vadd.f32 0.0, %v341
    %v343 = vpop.f32.mrb[0].mxu0
    %344 = vdwg.mxu0
    %v345 = vmul.f32 %v342, %v269
    %v346 = vld [vmem:[#allocation3] sm:$0x1]
    %v347 = vld [vmem:[#allocation6] sm:$0xff]
    %v348 = vld [vmem:[#allocation6 + $0x8] sm:$0xff]
    %v349 = vld [vmem:[#allocation6 + $0x10] sm:$0xff]
    %v350 = vld [vmem:[#allocation6 + $0x18] sm:$0xff]
    %v352 = vsel %vm78, %v345, 0
    %354 = vmatprep.subr.mxu0 0.0
    %355 = vmatpush1.msra.mxu0 %v347
    %356 = vmatprep.subr.mxu0 0.0
    %357 = vmatpush1.msra.mxu0 %v348
    %358 = vmatprep.subr.mxu0 0.0
    %359 = vmatpush1.msra.mxu0 %v349
    %360 = vmatprep.subr.mxu0 0.0
    %361 = vmatpush1.msra.mxu0 %v350
    %362 = vmatprep.subr.mxu0 0.0
    %363 = vmatpush1.msra.mxu0 0.0
    %364 = vmatprep.subr.mxu0 0.0
    %365 = vmatpush1.msra.mxu0 0.0
    %366 = vmatprep.subr.mxu0 0.0
    %367 = vmatpush1.msra.mxu0 0.0
    %368 = vmatprep.subr.mxu0 0.0
    %369 = vmatpush1.msra.mxu0 0.0
    %370 = vmatprep.subr.mxu0 0.0
    %371 = vmatpush1.msra.mxu0 0.0
    %372 = vmatprep.subr.mxu0 0.0
    %373 = vmatpush1.msra.mxu0 0.0
    %374 = vmatprep.subr.mxu0 0.0
    %375 = vmatpush1.msra.mxu0 0.0
    %376 = vmatprep.subr.mxu0 0.0
    %377 = vmatpush1.msra.mxu0 0.0
    %378 = vmatprep.subr.mxu0 0.0
    %379 = vmatpush1.msra.mxu0 0.0
    %380 = vmatprep.subr.mxu0 0.0
    %381 = vmatpush1.msra.mxu0 0.0
    %382 = vmatprep.subr.mxu0 0.0
    %383 = vmatpush1.msra.mxu0 0.0
    %384 = vmatprep.subr.mxu0 0.0
    %385 = vmatpush1.msra.mxu0 0.0
    %386 = vmatprep.subr.mxu0 0.0
    %387 = vmatpush1.msra.mxu0 0.0
    %388 = vmatprep.subr.mxu0 0.0
    %389 = vmatpush1.msra.mxu0 0.0
    %390 = vmatprep.subr.mxu0 0.0
    %391 = vmatpush1.msra.mxu0 0.0
    %392 = vmatprep.subr.mxu0 0.0
    %393 = vmatpush1.msra.mxu0 0.0
    %394 = vmatprep.subr.mxu0 0.0
    %395 = vmatpush1.msra.mxu0 0.0
    %396 = vmatprep.subr.mxu0 0.0
    %397 = vmatpush1.msra.mxu0 0.0
    %398 = vmatprep.subr.mxu0 0.0
    %399 = vmatpush1.msra.mxu0 0.0
    %400 = vmatprep.subr.mxu0 0.0
    %401 = vmatpush1.msra.mxu0 0.0
    %402 = vmatprep.subr.mxu0 0.0
    %403 = vmatpush1.msra.mxu0 0.0
    %404 = vmatprep.subr.mxu0 0.0
    %405 = vmatpush1.msra.mxu0 0.0
    %406 = vmatprep.subr.mxu0 0.0
    %407 = vmatpush1.msra.mxu0 0.0
    %408 = vmatprep.subr.mxu0 0.0
    %409 = vmatpush1.msra.mxu0 0.0
    %410 = vmatprep.subr.mxu0 0.0
    %411 = vmatpush1.msra.mxu0 0.0
    %412 = vmatprep.subr.mxu0 0.0
    %413 = vmatpush1.msra.mxu0 0.0
    %414 = vmatprep.subr.mxu0 0.0
    %415 = vmatpush1.msra.mxu0 0.0
    %416 = vmatprep.subr.mxu0 0.0
    %417 = vmatpush1.msra.mxu0 0.0
    %418 = vmatprep.mubr.f32.mxu0 0.0
    %419 = vmatmul.mubr.f32.gmra.mrb[0].mxu0 %v352
    %v420 = vpop.f32.mrb[0].mxu0
    %v421 = vadd.f32 0.0, %v420
    %v422 = vpop.f32.mrb[0].mxu0
    %423 = vdwg.mxu0
    %v424 = vadd.f32 %v346, %v421
    %v425 = vmax.f32 %v424, 0.0
    %v426 = vld [vmem:[%s7] sm:$0xff]
    %v427 = vld [vmem:[%s7 + $0x8] sm:$0xff]
    %v428 = vld [vmem:[%s7 + $0x10] sm:$0xff]
    %v429 = vld [vmem:[%s7 + $0x18] sm:$0xff]
    %v431 = vsel %vm78, %v425, 0
    %433 = vmatprep.subr.mxu0 0.0
    %434 = vmatpush1.msra.mxu0 %v426
    %435 = vmatprep.subr.mxu0 0.0
    %436 = vmatpush1.msra.mxu0 %v427
    %437 = vmatprep.subr.mxu0 0.0
    %438 = vmatpush1.msra.mxu0 %v428
    %439 = vmatprep.subr.mxu0 0.0
    %440 = vmatpush1.msra.mxu0 %v429
    %441 = vmatprep.subr.mxu0 0.0
    %442 = vmatpush1.msra.mxu0 0.0
    %443 = vmatprep.subr.mxu0 0.0
    %444 = vmatpush1.msra.mxu0 0.0
    %445 = vmatprep.subr.mxu0 0.0
    %446 = vmatpush1.msra.mxu0 0.0
    %447 = vmatprep.subr.mxu0 0.0
    %448 = vmatpush1.msra.mxu0 0.0
    %449 = vmatprep.subr.mxu0 0.0
    %450 = vmatpush1.msra.mxu0 0.0
    %451 = vmatprep.subr.mxu0 0.0
    %452 = vmatpush1.msra.mxu0 0.0
    %453 = vmatprep.subr.mxu0 0.0
    %454 = vmatpush1.msra.mxu0 0.0
    %455 = vmatprep.subr.mxu0 0.0
    %456 = vmatpush1.msra.mxu0 0.0
    %457 = vmatprep.subr.mxu0 0.0
    %458 = vmatpush1.msra.mxu0 0.0
    %459 = vmatprep.subr.mxu0 0.0
    %460 = vmatpush1.msra.mxu0 0.0
    %461 = vmatprep.subr.mxu0 0.0
    %462 = vmatpush1.msra.mxu0 0.0
    %463 = vmatprep.subr.mxu0 0.0
    %464 = vmatpush1.msra.mxu0 0.0
    %465 = vmatprep.subr.mxu0 0.0
    %466 = vmatpush1.msra.mxu0 0.0
    %467 = vmatprep.subr.mxu0 0.0
    %468 = vmatpush1.msra.mxu0 0.0
    %469 = vmatprep.subr.mxu0 0.0
    %470 = vmatpush1.msra.mxu0 0.0
    %471 = vmatprep.subr.mxu0 0.0
    %472 = vmatpush1.msra.mxu0 0.0
    %473 = vmatprep.subr.mxu0 0.0
    %474 = vmatpush1.msra.mxu0 0.0
    %475 = vmatprep.subr.mxu0 0.0
    %476 = vmatpush1.msra.mxu0 0.0
    %477 = vmatprep.subr.mxu0 0.0
    %478 = vmatpush1.msra.mxu0 0.0
    %479 = vmatprep.subr.mxu0 0.0
    %480 = vmatpush1.msra.mxu0 0.0
    %481 = vmatprep.subr.mxu0 0.0
    %482 = vmatpush1.msra.mxu0 0.0
    %483 = vmatprep.subr.mxu0 0.0
    %484 = vmatpush1.msra.mxu0 0.0
    %485 = vmatprep.subr.mxu0 0.0
    %486 = vmatpush1.msra.mxu0 0.0
    %487 = vmatprep.subr.mxu0 0.0
    %488 = vmatpush1.msra.mxu0 0.0
    %489 = vmatprep.subr.mxu0 0.0
    %490 = vmatpush1.msra.mxu0 0.0
    %491 = vmatprep.subr.mxu0 0.0
    %492 = vmatpush1.msra.mxu0 0.0
    %493 = vmatprep.subr.mxu0 0.0
    %494 = vmatpush1.msra.mxu0 0.0
    %495 = vmatprep.subr.mxu0 0.0
    %496 = vmatpush1.msra.mxu0 0.0
    %497 = vmatprep.mubr.f32.mxu0 0.0
    %498 = vmatmul.mubr.f32.gmra.mrb[0].mxu0 %v431
    %v499 = vpop.f32.mrb[0].mxu0
    %v500 = vadd.f32 0.0, %v499
    %v501 = vpop.f32.mrb[0].mxu0
    %502 = vdwg.mxu0
    %v503 = vadd.f32 %v250, %v500
    %v504 = vxor.u32 %v503, 2147483648
    %v505 = vmul.f32 %v504, 1.442695
    %v506 = vpow.pop %v505
    %v507 = vadd.f32 %v506, 1.0
    %v508 = vrcp.pop %v507
    %v509 = vmul.f32 1.0, %v508
    %511 = vrot.lane.b32.xlu0 %v503, 32
    %v512 = vpop.permute.xlu0 %511
    %v514 = vmul.f32 %v509, %v512
    %516 = vrot.lane.b32.xlu0 %v514, 64
    %v517 = vpop.permute.xlu0 %516
    %v519 = vadd.f32 %v503, %v517
    %v520 = vtanh.pop %v519
    %v521 = vsub.f32 1.0, %v509
    %523 = vrot.lane.b32.xlu0 %v520, 96
    %v524 = vpop.permute.xlu0 %523
    %v526 = vmul.f32 %v521, %v524
    %v527 = vlaneseq
    %v528 = vshrl.u32 %v527, 7
    %v529 = vsub.s32 0, %v528
    %v530 = vrot.slane %v159, %v529
    %531 = vrot.lane.b32.xlu0 %v530, 32
    %v532 = vpop.permute.xlu0 %531
    %v534 = vmul.f32 %v509, %v532
    %v535 = vadd.f32 %v526, %v534
    %537 = vrot.lane.b32.xlu0 %v535, 96
    %v538 = vpop.permute.xlu0 %537
    %vm540 = vcmask 253952
    %541 = vst.msk [vmem:[#allocation4] sm:$0x1] %vm540, %v538
    %542 = vst.msk [vmem:[#allocation5] sm:$0x1] %vm256, %v262
    %v543 = vld [vmem:[%s5] sm:$0xff]
    %v544 = vld [vmem:[%s5 + $0x8] sm:$0xff]
    %v545 = vld [vmem:[%s5 + $0x10] sm:$0xff]
    %v546 = vld [vmem:[%s5 + $0x18] sm:$0xff]
    %v547 = vld [vmem:[%s5 + $0x20] sm:$0xff]
    %v548 = vld [vmem:[%s5 + $0x28] sm:$0xff]
    %v549 = vld [vmem:[%s5 + $0x30] sm:$0xff]
    %v550 = vld [vmem:[%s5 + $0x38] sm:$0xff]
    %v551 = vld [vmem:[%s6] sm:$0x3]
    %v553 = vlaneseq
    %v554 = vshrl.u32 %v553, 7
    %v555 = vsub.s32 0, %v554
    %v556 = vrot.slane %v551, %v555
    %v557 = vlaneseq
    %v558 = vshrl.u32 %v557, 7
    %v559 = vsub.s32 1, %v558
    %v560 = vrot.slane %v551, %v559
    %v563 = vsel %vm78, %v538, 0
    %565 = vmatprep.subr.mxu0 %v544
    %566 = vmatpush1.msra.mxu0 %v543
    %567 = vmatprep.subr.mxu0 %v546
    %568 = vmatpush1.msra.mxu0 %v545
    %569 = vmatprep.subr.mxu0 %v548
    %570 = vmatpush1.msra.mxu0 %v547
    %571 = vmatprep.subr.mxu0 %v550
    %572 = vmatpush1.msra.mxu0 %v549
    %573 = vmatprep.subr.mxu0 0.0
    %574 = vmatpush1.msra.mxu0 0.0
    %575 = vmatprep.subr.mxu0 0.0
    %576 = vmatpush1.msra.mxu0 0.0
    %577 = vmatprep.subr.mxu0 0.0
    %578 = vmatpush1.msra.mxu0 0.0
    %579 = vmatprep.subr.mxu0 0.0
    %580 = vmatpush1.msra.mxu0 0.0
    %581 = vmatprep.subr.mxu0 0.0
    %582 = vmatpush1.msra.mxu0 0.0
    %583 = vmatprep.subr.mxu0 0.0
    %584 = vmatpush1.msra.mxu0 0.0
    %585 = vmatprep.subr.mxu0 0.0
    %586 = vmatpush1.msra.mxu0 0.0
    %587 = vmatprep.subr.mxu0 0.0
    %588 = vmatpush1.msra.mxu0 0.0
    %589 = vmatprep.subr.mxu0 0.0
    %590 = vmatpush1.msra.mxu0 0.0
    %591 = vmatprep.subr.mxu0 0.0
    %592 = vmatpush1.msra.mxu0 0.0
    %593 = vmatprep.subr.mxu0 0.0
    %594 = vmatpush1.msra.mxu0 0.0
    %595 = vmatprep.subr.mxu0 0.0
    %596 = vmatpush1.msra.mxu0 0.0
    %597 = vmatprep.subr.mxu0 0.0
    %598 = vmatpush1.msra.mxu0 0.0
    %599 = vmatprep.subr.mxu0 0.0
    %600 = vmatpush1.msra.mxu0 0.0
    %601 = vmatprep.subr.mxu0 0.0
    %602 = vmatpush1.msra.mxu0 0.0
    %603 = vmatprep.subr.mxu0 0.0
    %604 = vmatpush1.msra.mxu0 0.0
    %605 = vmatprep.subr.mxu0 0.0
    %606 = vmatpush1.msra.mxu0 0.0
    %607 = vmatprep.subr.mxu0 0.0
    %608 = vmatpush1.msra.mxu0 0.0
    %609 = vmatprep.subr.mxu0 0.0
    %610 = vmatpush1.msra.mxu0 0.0
    %611 = vmatprep.subr.mxu0 0.0
    %612 = vmatpush1.msra.mxu0 0.0
    %613 = vmatprep.subr.mxu0 0.0
    %614 = vmatpush1.msra.mxu0 0.0
    %615 = vmatprep.subr.mxu0 0.0
    %616 = vmatpush1.msra.mxu0 0.0
    %617 = vmatprep.subr.mxu0 0.0
    %618 = vmatpush1.msra.mxu0 0.0
    %619 = vmatprep.subr.mxu0 0.0
    %620 = vmatpush1.msra.mxu0 0.0
    %621 = vmatprep.subr.mxu0 0.0
    %622 = vmatpush1.msra.mxu0 0.0
    %623 = vmatprep.subr.mxu0 0.0
    %624 = vmatpush1.msra.mxu0 0.0
    %625 = vmatprep.subr.mxu0 0.0
    %626 = vmatpush1.msra.mxu0 0.0
    %627 = vmatprep.subr.mxu0 0.0
    %628 = vmatpush1.msra.mxu0 0.0
    %629 = vmatprep.mubr.f32.mxu0 0.0
    %630 = vmatmul.mubr.f32.gmra.mrb[0].mxu0 %v563
    %v631 = vpop.f32.mrb[0].mxu0
    %v632 = vadd.f32 %v556, %v631
    %v633 = vpop.f32.mrb[0].mxu0
    %v634 = vadd.f32 %v560, %v633
    %635 = vdwg.mxu0
    %v636 = vld [vmem:[#allocation2 + $0x1] sm:$0x1]
    %v637 = vadd.f32 %v636, %v634
    %v638 = vsel %vm256, %v637, -inf
    %639 = vmax.xlane.f32.xlu0 %v638
    %v640 = vpop.xlane.xlu0 %639
    %v641 = vsub.f32 %v637, %v640
    %v642 = vmul.f32 %v641, 1.442695
    %v643 = vpow.pop %v642
    %v644 = vsel %vm256, %v643, 0.0
    %645 = vadd.xlane.f32.xlu0 %v644
    %v646 = vpop.xlane.xlu0 %645
    %v647 = vrcp.pop %v646
    %v648 = vmul.f32 %v646, %v647
    %v649 = vsub.f32 2.0, %v648
    %v650 = vmul.f32 %v647, %v649
    %v651 = vld [vmem:[%s0] sm:$0xff]
    %v652 = vld [vmem:[%s0 + $0x8] sm:$0xff]
    %v654 = vsel %vm152, %v643, 0
    %656 = vmatprep.subr.mxu0 0.0
    %657 = vmatpush1.msra.mxu0 %v651
    %658 = vmatprep.subr.mxu0 0.0
    %659 = vmatpush1.msra.mxu0 %v652
    %660 = vmatprep.subr.mxu0 0.0
    %661 = vmatpush1.msra.mxu0 0.0
    %662 = vmatprep.subr.mxu0 0.0
    %663 = vmatpush1.msra.mxu0 0.0
    %664 = vmatprep.subr.mxu0 0.0
    %665 = vmatpush1.msra.mxu0 0.0
    %666 = vmatprep.subr.mxu0 0.0
    %667 = vmatpush1.msra.mxu0 0.0
    %668 = vmatprep.subr.mxu0 0.0
    %669 = vmatpush1.msra.mxu0 0.0
    %670 = vmatprep.subr.mxu0 0.0
    %671 = vmatpush1.msra.mxu0 0.0
    %672 = vmatprep.subr.mxu0 0.0
    %673 = vmatpush1.msra.mxu0 0.0
    %674 = vmatprep.subr.mxu0 0.0
    %675 = vmatpush1.msra.mxu0 0.0
    %676 = vmatprep.subr.mxu0 0.0
    %677 = vmatpush1.msra.mxu0 0.0
    %678 = vmatprep.subr.mxu0 0.0
    %679 = vmatpush1.msra.mxu0 0.0
    %680 = vmatprep.subr.mxu0 0.0
    %681 = vmatpush1.msra.mxu0 0.0
    %682 = vmatprep.subr.mxu0 0.0
    %683 = vmatpush1.msra.mxu0 0.0
    %684 = vmatprep.subr.mxu0 0.0
    %685 = vmatpush1.msra.mxu0 0.0
    %686 = vmatprep.subr.mxu0 0.0
    %687 = vmatpush1.msra.mxu0 0.0
    %688 = vmatprep.subr.mxu0 0.0
    %689 = vmatpush1.msra.mxu0 0.0
    %690 = vmatprep.subr.mxu0 0.0
    %691 = vmatpush1.msra.mxu0 0.0
    %692 = vmatprep.subr.mxu0 0.0
    %693 = vmatpush1.msra.mxu0 0.0
    %694 = vmatprep.subr.mxu0 0.0
    %695 = vmatpush1.msra.mxu0 0.0
    %696 = vmatprep.subr.mxu0 0.0
    %697 = vmatpush1.msra.mxu0 0.0
    %698 = vmatprep.subr.mxu0 0.0
    %699 = vmatpush1.msra.mxu0 0.0
    %700 = vmatprep.subr.mxu0 0.0
    %701 = vmatpush1.msra.mxu0 0.0
    %702 = vmatprep.subr.mxu0 0.0
    %703 = vmatpush1.msra.mxu0 0.0
    %704 = vmatprep.subr.mxu0 0.0
    %705 = vmatpush1.msra.mxu0 0.0
    %706 = vmatprep.subr.mxu0 0.0
    %707 = vmatpush1.msra.mxu0 0.0
    %708 = vmatprep.subr.mxu0 0.0
    %709 = vmatpush1.msra.mxu0 0.0
    %710 = vmatprep.subr.mxu0 0.0
    %711 = vmatpush1.msra.mxu0 0.0
    %712 = vmatprep.subr.mxu0 0.0
    %713 = vmatpush1.msra.mxu0 0.0
    %714 = vmatprep.subr.mxu0 0.0
    %715 = vmatpush1.msra.mxu0 0.0
    %716 = vmatprep.subr.mxu0 0.0
    %717 = vmatpush1.msra.mxu0 0.0
    %718 = vmatprep.subr.mxu0 0.0
    %719 = vmatpush1.msra.mxu0 0.0
    %720 = vmatprep.mubr.f32.mxu0 0.0
    %721 = vmatmul.mubr.f32.gmra.mrb[0].mxu0 %v654
    %v722 = vpop.f32.mrb[0].mxu0
    %v723 = vadd.f32 0.0, %v722
    %v724 = vpop.f32.mrb[0].mxu0
    %725 = vdwg.mxu0
    %v726 = vmul.f32 %v723, %v650
    %v727 = vld [vmem:[#allocation3 + $0x1] sm:$0x1]
    %v728 = vld [vmem:[#allocation6] sm:$0xff]
    %v729 = vld [vmem:[#allocation6 + $0x8] sm:$0xff]
    %v730 = vld [vmem:[#allocation6 + $0x10] sm:$0xff]
    %v731 = vld [vmem:[#allocation6 + $0x18] sm:$0xff]
    %v733 = vsel %vm78, %v726, 0
    %735 = vmatprep.subr.mxu0 0.0
    %736 = vmatpush1.msra.mxu0 %v728
    %737 = vmatprep.subr.mxu0 0.0
    %738 = vmatpush1.msra.mxu0 %v729
    %739 = vmatprep.subr.mxu0 0.0
    %740 = vmatpush1.msra.mxu0 %v730
    %741 = vmatprep.subr.mxu0 0.0
    %742 = vmatpush1.msra.mxu0 %v731
    %743 = vmatprep.subr.mxu0 0.0
    %744 = vmatpush1.msra.mxu0 0.0
    %745 = vmatprep.subr.mxu0 0.0
    %746 = vmatpush1.msra.mxu0 0.0
    %747 = vmatprep.subr.mxu0 0.0
    %748 = vmatpush1.msra.mxu0 0.0
    %749 = vmatprep.subr.mxu0 0.0
    %750 = vmatpush1.msra.mxu0 0.0
    %751 = vmatprep.subr.mxu0 0.0
    %752 = vmatpush1.msra.mxu0 0.0
    %753 = vmatprep.subr.mxu0 0.0
    %754 = vmatpush1.msra.mxu0 0.0
    %755 = vmatprep.subr.mxu0 0.0
    %756 = vmatpush1.msra.mxu0 0.0
    %757 = vmatprep.subr.mxu0 0.0
    %758 = vmatpush1.msra.mxu0 0.0
    %759 = vmatprep.subr.mxu0 0.0
    %760 = vmatpush1.msra.mxu0 0.0
    %761 = vmatprep.subr.mxu0 0.0
    %762 = vmatpush1.msra.mxu0 0.0
    %763 = vmatprep.subr.mxu0 0.0
    %764 = vmatpush1.msra.mxu0 0.0
    %765 = vmatprep.subr.mxu0 0.0
    %766 = vmatpush1.msra.mxu0 0.0
    %767 = vmatprep.subr.mxu0 0.0
    %768 = vmatpush1.msra.mxu0 0.0
    %769 = vmatprep.subr.mxu0 0.0
    %770 = vmatpush1.msra.mxu0 0.0
    %771 = vmatprep.subr.mxu0 0.0
    %772 = vmatpush1.msra.mxu0 0.0
    %773 = vmatprep.subr.mxu0 0.0
    %774 = vmatpush1.msra.mxu0 0.0
    %775 = vmatprep.subr.mxu0 0.0
    %776 = vmatpush1.msra.mxu0 0.0
    %777 = vmatprep.subr.mxu0 0.0
    %778 = vmatpush1.msra.mxu0 0.0
    %779 = vmatprep.subr.mxu0 0.0
    %780 = vmatpush1.msra.mxu0 0.0
    %781 = vmatprep.subr.mxu0 0.0
    %782 = vmatpush1.msra.mxu0 0.0
    %783 = vmatprep.subr.mxu0 0.0
    %784 = vmatpush1.msra.mxu0 0.0
    %785 = vmatprep.subr.mxu0 0.0
    %786 = vmatpush1.msra.mxu0 0.0
    %787 = vmatprep.subr.mxu0 0.0
    %788 = vmatpush1.msra.mxu0 0.0
    %789 = vmatprep.subr.mxu0 0.0
    %790 = vmatpush1.msra.mxu0 0.0
    %791 = vmatprep.subr.mxu0 0.0
    %792 = vmatpush1.msra.mxu0 0.0
    %793 = vmatprep.subr.mxu0 0.0
    %794 = vmatpush1.msra.mxu0 0.0
    %795 = vmatprep.subr.mxu0 0.0
    %796 = vmatpush1.msra.mxu0 0.0
    %797 = vmatprep.subr.mxu0 0.0
    %798 = vmatpush1.msra.mxu0 0.0
    %799 = vmatprep.mubr.f32.mxu0 0.0
    %800 = vmatmul.mubr.f32.gmra.mrb[0].mxu0 %v733
    %v801 = vpop.f32.mrb[0].mxu0
    %v802 = vadd.f32 0.0, %v801
    %v803 = vpop.f32.mrb[0].mxu0
    %804 = vdwg.mxu0
    %v805 = vadd.f32 %v727, %v802
    %v806 = vmax.f32 %v805, 0.0
    %v807 = vld [vmem:[%s7] sm:$0xff]
    %v808 = vld [vmem:[%s7 + $0x8] sm:$0xff]
    %v809 = vld [vmem:[%s7 + $0x10] sm:$0xff]
    %v810 = vld [vmem:[%s7 + $0x18] sm:$0xff]
    %v812 = vsel %vm78, %v806, 0
    %814 = vmatprep.subr.mxu0 0.0
    %815 = vmatpush1.msra.mxu0 %v807
    %816 = vmatprep.subr.mxu0 0.0
    %817 = vmatpush1.msra.mxu0 %v808
    %818 = vmatprep.subr.mxu0 0.0
    %819 = vmatpush1.msra.mxu0 %v809
    %820 = vmatprep.subr.mxu0 0.0
    %821 = vmatpush1.msra.mxu0 %v810
    %822 = vmatprep.subr.mxu0 0.0
    %823 = vmatpush1.msra.mxu0 0.0
    %824 = vmatprep.subr.mxu0 0.0
    %825 = vmatpush1.msra.mxu0 0.0
    %826 = vmatprep.subr.mxu0 0.0
    %827 = vmatpush1.msra.mxu0 0.0
    %828 = vmatprep.subr.mxu0 0.0
    %829 = vmatpush1.msra.mxu0 0.0
    %830 = vmatprep.subr.mxu0 0.0
    %831 = vmatpush1.msra.mxu0 0.0
    %832 = vmatprep.subr.mxu0 0.0
    %833 = vmatpush1.msra.mxu0 0.0
    %834 = vmatprep.subr.mxu0 0.0
    %835 = vmatpush1.msra.mxu0 0.0
    %836 = vmatprep.subr.mxu0 0.0
    %837 = vmatpush1.msra.mxu0 0.0
    %838 = vmatprep.subr.mxu0 0.0
    %839 = vmatpush1.msra.mxu0 0.0
    %840 = vmatprep.subr.mxu0 0.0
    %841 = vmatpush1.msra.mxu0 0.0
    %842 = vmatprep.subr.mxu0 0.0
    %843 = vmatpush1.msra.mxu0 0.0
    %844 = vmatprep.subr.mxu0 0.0
    %845 = vmatpush1.msra.mxu0 0.0
    %846 = vmatprep.subr.mxu0 0.0
    %847 = vmatpush1.msra.mxu0 0.0
    %848 = vmatprep.subr.mxu0 0.0
    %849 = vmatpush1.msra.mxu0 0.0
    %850 = vmatprep.subr.mxu0 0.0
    %851 = vmatpush1.msra.mxu0 0.0
    %852 = vmatprep.subr.mxu0 0.0
    %853 = vmatpush1.msra.mxu0 0.0
    %854 = vmatprep.subr.mxu0 0.0
    %855 = vmatpush1.msra.mxu0 0.0
    %856 = vmatprep.subr.mxu0 0.0
    %857 = vmatpush1.msra.mxu0 0.0
    %858 = vmatprep.subr.mxu0 0.0
    %859 = vmatpush1.msra.mxu0 0.0
    %860 = vmatprep.subr.mxu0 0.0
    %861 = vmatpush1.msra.mxu0 0.0
    %862 = vmatprep.subr.mxu0 0.0
    %863 = vmatpush1.msra.mxu0 0.0
    %864 = vmatprep.subr.mxu0 0.0
    %865 = vmatpush1.msra.mxu0 0.0
    %866 = vmatprep.subr.mxu0 0.0
    %867 = vmatpush1.msra.mxu0 0.0
    %868 = vmatprep.subr.mxu0 0.0
    %869 = vmatpush1.msra.mxu0 0.0
    %870 = vmatprep.subr.mxu0 0.0
    %871 = vmatpush1.msra.mxu0 0.0
    %872 = vmatprep.subr.mxu0 0.0
    %873 = vmatpush1.msra.mxu0 0.0
    %874 = vmatprep.subr.mxu0 0.0
    %875 = vmatpush1.msra.mxu0 0.0
    %876 = vmatprep.subr.mxu0 0.0
    %877 = vmatpush1.msra.mxu0 0.0
    %878 = vmatprep.mubr.f32.mxu0 0.0
    %879 = vmatmul.mubr.f32.gmra.mrb[0].mxu0 %v812
    %v880 = vpop.f32.mrb[0].mxu0
    %v881 = vadd.f32 0.0, %v880
    %v882 = vpop.f32.mrb[0].mxu0
    %883 = vdwg.mxu0
    %v884 = vadd.f32 %v632, %v881
    %v885 = vxor.u32 %v884, 2147483648
    %v886 = vmul.f32 %v885, 1.442695
    %v887 = vpow.pop %v886
    %v888 = vadd.f32 %v887, 1.0
    %v889 = vrcp.pop %v888
    %v890 = vmul.f32 1.0, %v889
    %892 = vrot.lane.b32.xlu0 %v884, 32
    %v893 = vpop.permute.xlu0 %892
    %v895 = vmul.f32 %v890, %v893
    %897 = vrot.lane.b32.xlu0 %v895, 64
    %v898 = vpop.permute.xlu0 %897
    %v900 = vadd.f32 %v884, %v898
    %v901 = vtanh.pop %v900
    %v902 = vsub.f32 1.0, %v890
    %904 = vrot.lane.b32.xlu0 %v901, 96
    %v905 = vpop.permute.xlu0 %904
    %v907 = vmul.f32 %v902, %v905
    %v908 = vmul.f32 %v890, %v535
    %v909 = vadd.f32 %v907, %v908
    %911 = vrot.lane.b32.xlu0 %v909, 96
    %v912 = vpop.permute.xlu0 %911
    %914 = vst.msk [vmem:[#allocation4 + $0x1] sm:$0x1] %vm540, %v912
    %915 = vst.msk [vmem:[#allocation5 + $0x1] sm:$0x1] %vm256, %v643
    %v916 = vld [vmem:[%s5] sm:$0xff]
    %v917 = vld [vmem:[%s5 + $0x8] sm:$0xff]
    %v918 = vld [vmem:[%s5 + $0x10] sm:$0xff]
    %v919 = vld [vmem:[%s5 + $0x18] sm:$0xff]
    %v920 = vld [vmem:[%s5 + $0x20] sm:$0xff]
    %v921 = vld [vmem:[%s5 + $0x28] sm:$0xff]
    %v922 = vld [vmem:[%s5 + $0x30] sm:$0xff]
    %v923 = vld [vmem:[%s5 + $0x38] sm:$0xff]
    %v924 = vld [vmem:[%s6] sm:$0x3]
    %v926 = vlaneseq
    %v927 = vshrl.u32 %v926, 7
    %v928 = vsub.s32 0, %v927
    %v929 = vrot.slane %v924, %v928
    %v930 = vlaneseq
    %v931 = vshrl.u32 %v930, 7
    %v932 = vsub.s32 1, %v931
    %v933 = vrot.slane %v924, %v932
    %v936 = vsel %vm78, %v912, 0
    %938 = vmatprep.subr.mxu0 %v917
    %939 = vmatpush1.msra.mxu0 %v916
    %940 = vmatprep.subr.mxu0 %v919
    %941 = vmatpush1.msra.mxu0 %v918
    %942 = vmatprep.subr.mxu0 %v921
    %943 = vmatpush1.msra.mxu0 %v920
    %944 = vmatprep.subr.mxu0 %v923
    %945 = vmatpush1.msra.mxu0 %v922
    %946 = vmatprep.subr.mxu0 0.0
    %947 = vmatpush1.msra.mxu0 0.0
    %948 = vmatprep.subr.mxu0 0.0
    %949 = vmatpush1.msra.mxu0 0.0
    %950 = vmatprep.subr.mxu0 0.0
    %951 = vmatpush1.msra.mxu0 0.0
    %952 = vmatprep.subr.mxu0 0.0
    %953 = vmatpush1.msra.mxu0 0.0
    %954 = vmatprep.subr.mxu0 0.0
    %955 = vmatpush1.msra.mxu0 0.0
    %956 = vmatprep.subr.mxu0 0.0
    %957 = vmatpush1.msra.mxu0 0.0
    %958 = vmatprep.subr.mxu0 0.0
    %959 = vmatpush1.msra.mxu0 0.0
    %960 = vmatprep.subr.mxu0 0.0
    %961 = vmatpush1.msra.mxu0 0.0
    %962 = vmatprep.subr.mxu0 0.0
    %963 = vmatpush1.msra.mxu0 0.0
    %964 = vmatprep.subr.mxu0 0.0
    %965 = vmatpush1.msra.mxu0 0.0
    %966 = vmatprep.subr.mxu0 0.0
    %967 = vmatpush1.msra.mxu0 0.0
    %968 = vmatprep.subr.mxu0 0.0
    %969 = vmatpush1.msra.mxu0 0.0
    %970 = vmatprep.subr.mxu0 0.0
    %971 = vmatpush1.msra.mxu0 0.0
    %972 = vmatprep.subr.mxu0 0.0
    %973 = vmatpush1.msra.mxu0 0.0
    %974 = vmatprep.subr.mxu0 0.0
    %975 = vmatpush1.msra.mxu0 0.0
    %976 = vmatprep.subr.mxu0 0.0
    %977 = vmatpush1.msra.mxu0 0.0
    %978 = vmatprep.subr.mxu0 0.0
    %979 = vmatpush1.msra.mxu0 0.0
    %980 = vmatprep.subr.mxu0 0.0
    %981 = vmatpush1.msra.mxu0 0.0
    %982 = vmatprep.subr.mxu0 0.0
    %983 = vmatpush1.msra.mxu0 0.0
    %984 = vmatprep.subr.mxu0 0.0
    %985 = vmatpush1.msra.mxu0 0.0
    %986 = vmatprep.subr.mxu0 0.0
    %987 = vmatpush1.msra.mxu0 0.0
    %988 = vmatprep.subr.mxu0 0.0
    %989 = vmatpush1.msra.mxu0 0.0
    %990 = vmatprep.subr.mxu0 0.0
    %991 = vmatpush1.msra.mxu0 0.0
    %992 = vmatprep.subr.mxu0 0.0
    %993 = vmatpush1.msra.mxu0 0.0
    %994 = vmatprep.subr.mxu0 0.0
    %995 = vmatpush1.msra.mxu0 0.0
    %996 = vmatprep.subr.mxu0 0.0
    %997 = vmatpush1.msra.mxu0 0.0
    %998 = vmatprep.subr.mxu0 0.0
    %999 = vmatpush1.msra.mxu0 0.0
    %1000 = vmatprep.subr.mxu0 0.0
    %1001 = vmatpush1.msra.mxu0 0.0
    %1002 = vmatprep.mubr.f32.mxu0 0.0
    %1003 = vmatmul.mubr.f32.gmra.mrb[0].mxu0 %v936
    %v1004 = vpop.f32.mrb[0].mxu0
    %v1005 = vadd.f32 %v929, %v1004
    %v1006 = vpop.f32.mrb[0].mxu0
    %v1007 = vadd.f32 %v933, %v1006
    %1008 = vdwg.mxu0
    %v1009 = vld [vmem:[#allocation2 + $0x2] sm:$0x1]
    %v1010 = vadd.f32 %v1009, %v1007
    %v1011 = vsel %vm256, %v1010, -inf
    %1012 = vmax.xlane.f32.xlu0 %v1011
    %v1013 = vpop.xlane.xlu0 %1012
    %v1014 = vsub.f32 %v1010, %v1013
    %v1015 = vmul.f32 %v1014, 1.442695
    %v1016 = vpow.pop %v1015
    %v1017 = vsel %vm256, %v1016, 0.0
    %1018 = vadd.xlane.f32.xlu0 %v1017
    %v1019 = vpop.xlane.xlu0 %1018
    %v1020 = vrcp.pop %v1019
    %v1021 = vmul.f32 %v1019, %v1020
    %v1022 = vsub.f32 2.0, %v1021
    %v1023 = vmul.f32 %v1020, %v1022
    %v1024 = vld [vmem:[%s0] sm:$0xff]
    %v1025 = vld [vmem:[%s0 + $0x8] sm:$0xff]
    %v1027 = vsel %vm152, %v1016, 0
    %1029 = vmatprep.subr.mxu0 0.0
    %1030 = vmatpush1.msra.mxu0 %v1024
    %1031 = vmatprep.subr.mxu0 0.0
    %1032 = vmatpush1.msra.mxu0 %v1025
    %1033 = vmatprep.subr.mxu0 0.0
    %1034 = vmatpush1.msra.mxu0 0.0
    %1035 = vmatprep.subr.mxu0 0.0
    %1036 = vmatpush1.msra.mxu0 0.0
    %1037 = vmatprep.subr.mxu0 0.0
    %1038 = vmatpush1.msra.mxu0 0.0
    %1039 = vmatprep.subr.mxu0 0.0
    %1040 = vmatpush1.msra.mxu0 0.0
    %1041 = vmatprep.subr.mxu0 0.0
    %1042 = vmatpush1.msra.mxu0 0.0
    %1043 = vmatprep.subr.mxu0 0.0
    %1044 = vmatpush1.msra.mxu0 0.0
    %1045 = vmatprep.subr.mxu0 0.0
    %1046 = vmatpush1.msra.mxu0 0.0
    %1047 = vmatprep.subr.mxu0 0.0
    %1048 = vmatpush1.msra.mxu0 0.0
    %1049 = vmatprep.subr.mxu0 0.0
    %1050 = vmatpush1.msra.mxu0 0.0
    %1051 = vmatprep.subr.mxu0 0.0
    %1052 = vmatpush1.msra.mxu0 0.0
    %1053 = vmatprep.subr.mxu0 0.0
    %1054 = vmatpush1.msra.mxu0 0.0
    %1055 = vmatprep.subr.mxu0 0.0
    %1056 = vmatpush1.msra.mxu0 0.0
    %1057 = vmatprep.subr.mxu0 0.0
    %1058 = vmatpush1.msra.mxu0 0.0
    %1059 = vmatprep.subr.mxu0 0.0
    %1060 = vmatpush1.msra.mxu0 0.0
    %1061 = vmatprep.subr.mxu0 0.0
    %1062 = vmatpush1.msra.mxu0 0.0
    %1063 = vmatprep.subr.mxu0 0.0
    %1064 = vmatpush1.msra.mxu0 0.0
    %1065 = vmatprep.subr.mxu0 0.0
    %1066 = vmatpush1.msra.mxu0 0.0
    %1067 = vmatprep.subr.mxu0 0.0
    %1068 = vmatpush1.msra.mxu0 0.0
    %1069 = vmatprep.subr.mxu0 0.0
    %1070 = vmatpush1.msra.mxu0 0.0
    %1071 = vmatprep.subr.mxu0 0.0
    %1072 = vmatpush1.msra.mxu0 0.0
    %1073 = vmatprep.subr.mxu0 0.0
    %1074 = vmatpush1.msra.mxu0 0.0
    %1075 = vmatprep.subr.mxu0 0.0
    %1076 = vmatpush1.msra.mxu0 0.0
    %1077 = vmatprep.subr.mxu0 0.0
    %1078 = vmatpush1.msra.mxu0 0.0
    %1079 = vmatprep.subr.mxu0 0.0
    %1080 = vmatpush1.msra.mxu0 0.0
    %1081 = vmatprep.subr.mxu0 0.0
    %1082 = vmatpush1.msra.mxu0 0.0
    %1083 = vmatprep.subr.mxu0 0.0
    %1084 = vmatpush1.msra.mxu0 0.0
    %1085 = vmatprep.subr.mxu0 0.0
    %1086 = vmatpush1.msra.mxu0 0.0
    %1087 = vmatprep.subr.mxu0 0.0
    %1088 = vmatpush1.msra.mxu0 0.0
    %1089 = vmatprep.subr.mxu0 0.0
    %1090 = vmatpush1.msra.mxu0 0.0
    %1091 = vmatprep.subr.mxu0 0.0
    %1092 = vmatpush1.msra.mxu0 0.0
    %1093 = vmatprep.mubr.f32.mxu0 0.0
    %1094 = vmatmul.mubr.f32.gmra.mrb[0].mxu0 %v1027
    %v1095 = vpop.f32.mrb[0].mxu0
    %v1096 = vadd.f32 0.0, %v1095
    %v1097 = vpop.f32.mrb[0].mxu0
    %1098 = vdwg.mxu0
    %v1099 = vmul.f32 %v1096, %v1023
    %v1100 = vld [vmem:[#allocation3 + $0x2] sm:$0x1]
    %v1101 = vld [vmem:[#allocation6] sm:$0xff]
    %v1102 = vld [vmem:[#allocation6 + $0x8] sm:$0xff]
    %v1103 = vld [vmem:[#allocation6 + $0x10] sm:$0xff]
    %v1104 = vld [vmem:[#allocation6 + $0x18] sm:$0xff]
    %v1106 = vsel %vm78, %v1099, 0
    %1108 = vmatprep.subr.mxu0 0.0
    %1109 = vmatpush1.msra.mxu0 %v1101
    %1110 = vmatprep.subr.mxu0 0.0
    %1111 = vmatpush1.msra.mxu0 %v1102
    %1112 = vmatprep.subr.mxu0 0.0
    %1113 = vmatpush1.msra.mxu0 %v1103
    %1114 = vmatprep.subr.mxu0 0.0
    %1115 = vmatpush1.msra.mxu0 %v1104
    %1116 = vmatprep.subr.mxu0 0.0
    %1117 = vmatpush1.msra.mxu0 0.0
    %1118 = vmatprep.subr.mxu0 0.0
    %1119 = vmatpush1.msra.mxu0 0.0
    %1120 = vmatprep.subr.mxu0 0.0
    %1121 = vmatpush1.msra.mxu0 0.0
    %1122 = vmatprep.subr.mxu0 0.0
    %1123 = vmatpush1.msra.mxu0 0.0
    %1124 = vmatprep.subr.mxu0 0.0
    %1125 = vmatpush1.msra.mxu0 0.0
    %1126 = vmatprep.subr.mxu0 0.0
    %1127 = vmatpush1.msra.mxu0 0.0
    %1128 = vmatprep.subr.mxu0 0.0
    %1129 = vmatpush1.msra.mxu0 0.0
    %1130 = vmatprep.subr.mxu0 0.0
    %1131 = vmatpush1.msra.mxu0 0.0
    %1132 = vmatprep.subr.mxu0 0.0
    %1133 = vmatpush1.msra.mxu0 0.0
    %1134 = vmatprep.subr.mxu0 0.0
    %1135 = vmatpush1.msra.mxu0 0.0
    %1136 = vmatprep.subr.mxu0 0.0
    %1137 = vmatpush1.msra.mxu0 0.0
    %1138 = vmatprep.subr.mxu0 0.0
    %1139 = vmatpush1.msra.mxu0 0.0
    %1140 = vmatprep.subr.mxu0 0.0
    %1141 = vmatpush1.msra.mxu0 0.0
    %1142 = vmatprep.subr.mxu0 0.0
    %1143 = vmatpush1.msra.mxu0 0.0
    %1144 = vmatprep.subr.mxu0 0.0
    %1145 = vmatpush1.msra.mxu0 0.0
    %1146 = vmatprep.subr.mxu0 0.0
    %1147 = vmatpush1.msra.mxu0 0.0
    %1148 = vmatprep.subr.mxu0 0.0
    %1149 = vmatpush1.msra.mxu0 0.0
    %1150 = vmatprep.subr.mxu0 0.0
    %1151 = vmatpush1.msra.mxu0 0.0
    %1152 = vmatprep.subr.mxu0 0.0
    %1153 = vmatpush1.msra.mxu0 0.0
    %1154 = vmatprep.subr.mxu0 0.0
    %1155 = vmatpush1.msra.mxu0 0.0
    %1156 = vmatprep.subr.mxu0 0.0
    %1157 = vmatpush1.msra.mxu0 0.0
    %1158 = vmatprep.subr.mxu0 0.0
    %1159 = vmatpush1.msra.mxu0 0.0
    %1160 = vmatprep.subr.mxu0 0.0
    %1161 = vmatpush1.msra.mxu0 0.0
    %1162 = vmatprep.subr.mxu0 0.0
    %1163 = vmatpush1.msra.mxu0 0.0
    %1164 = vmatprep.subr.mxu0 0.0
    %1165 = vmatpush1.msra.mxu0 0.0
    %1166 = vmatprep.subr.mxu0 0.0
    %1167 = vmatpush1.msra.mxu0 0.0
    %1168 = vmatprep.subr.mxu0 0.0
    %1169 = vmatpush1.msra.mxu0 0.0
    %1170 = vmatprep.subr.mxu0 0.0
    %1171 = vmatpush1.msra.mxu0 0.0
    %1172 = vmatprep.mubr.f32.mxu0 0.0
    %1173 = vmatmul.mubr.f32.gmra.mrb[0].mxu0 %v1106
    %v1174 = vpop.f32.mrb[0].mxu0
    %v1175 = vadd.f32 0.0, %v1174
    %v1176 = vpop.f32.mrb[0].mxu0
    %1177 = vdwg.mxu0
    %v1178 = vadd.f32 %v1100, %v1175
    %v1179 = vmax.f32 %v1178, 0.0
    %v1180 = vld [vmem:[%s7] sm:$0xff]
    %v1181 = vld [vmem:[%s7 + $0x8] sm:$0xff]
    %v1182 = vld [vmem:[%s7 + $0x10] sm:$0xff]
    %v1183 = vld [vmem:[%s7 + $0x18] sm:$0xff]
    %v1185 = vsel %vm78, %v1179, 0
    %1187 = vmatprep.subr.mxu0 0.0
    %1188 = vmatpush1.msra.mxu0 %v1180
    %1189 = vmatprep.subr.mxu0 0.0
    %1190 = vmatpush1.msra.mxu0 %v1181
    %1191 = vmatprep.subr.mxu0 0.0
    %1192 = vmatpush1.msra.mxu0 %v1182
    %1193 = vmatprep.subr.mxu0 0.0
    %1194 = vmatpush1.msra.mxu0 %v1183
    %1195 = vmatprep.subr.mxu0 0.0
    %1196 = vmatpush1.msra.mxu0 0.0
    %1197 = vmatprep.subr.mxu0 0.0
    %1198 = vmatpush1.msra.mxu0 0.0
    %1199 = vmatprep.subr.mxu0 0.0
    %1200 = vmatpush1.msra.mxu0 0.0
    %1201 = vmatprep.subr.mxu0 0.0
    %1202 = vmatpush1.msra.mxu0 0.0
    %1203 = vmatprep.subr.mxu0 0.0
    %1204 = vmatpush1.msra.mxu0 0.0
    %1205 = vmatprep.subr.mxu0 0.0
    %1206 = vmatpush1.msra.mxu0 0.0
    %1207 = vmatprep.subr.mxu0 0.0
    %1208 = vmatpush1.msra.mxu0 0.0
    %1209 = vmatprep.subr.mxu0 0.0
    %1210 = vmatpush1.msra.mxu0 0.0
    %1211 = vmatprep.subr.mxu0 0.0
    %1212 = vmatpush1.msra.mxu0 0.0
    %1213 = vmatprep.subr.mxu0 0.0
    %1214 = vmatpush1.msra.mxu0 0.0
    %1215 = vmatprep.subr.mxu0 0.0
    %1216 = vmatpush1.msra.mxu0 0.0
    %1217 = vmatprep.subr.mxu0 0.0
    %1218 = vmatpush1.msra.mxu0 0.0
    %1219 = vmatprep.subr.mxu0 0.0
    %1220 = vmatpush1.msra.mxu0 0.0
    %1221 = vmatprep.subr.mxu0 0.0
    %1222 = vmatpush1.msra.mxu0 0.0
    %1223 = vmatprep.subr.mxu0 0.0
    %1224 = vmatpush1.msra.mxu0 0.0
    %1225 = vmatprep.subr.mxu0 0.0
    %1226 = vmatpush1.msra.mxu0 0.0
    %1227 = vmatprep.subr.mxu0 0.0
    %1228 = vmatpush1.msra.mxu0 0.0
    %1229 = vmatprep.subr.mxu0 0.0
    %1230 = vmatpush1.msra.mxu0 0.0
    %1231 = vmatprep.subr.mxu0 0.0
    %1232 = vmatpush1.msra.mxu0 0.0
    %1233 = vmatprep.subr.mxu0 0.0
    %1234 = vmatpush1.msra.mxu0 0.0
    %1235 = vmatprep.subr.mxu0 0.0
    %1236 = vmatpush1.msra.mxu0 0.0
    %1237 = vmatprep.subr.mxu0 0.0
    %1238 = vmatpush1.msra.mxu0 0.0
    %1239 = vmatprep.subr.mxu0 0.0
    %1240 = vmatpush1.msra.mxu0 0.0
    %1241 = vmatprep.subr.mxu0 0.0
    %1242 = vmatpush1.msra.mxu0 0.0
    %1243 = vmatprep.subr.mxu0 0.0
    %1244 = vmatpush1.msra.mxu0 0.0
    %1245 = vmatprep.subr.mxu0 0.0
    %1246 = vmatpush1.msra.mxu0 0.0
    %1247 = vmatprep.subr.mxu0 0.0
    %1248 = vmatpush1.msra.mxu0 0.0
    %1249 = vmatprep.subr.mxu0 0.0
    %1250 = vmatpush1.msra.mxu0 0.0
    %1251 = vmatprep.mubr.f32.mxu0 0.0
    %1252 = vmatmul.mubr.f32.gmra.mrb[0].mxu0 %v1185
    %v1253 = vpop.f32.mrb[0].mxu0
    %v1254 = vadd.f32 0.0, %v1253
    %v1255 = vpop.f32.mrb[0].mxu0
    %1256 = vdwg.mxu0
    %v1257 = vadd.f32 %v1005, %v1254
    %v1258 = vxor.u32 %v1257, 2147483648
    %v1259 = vmul.f32 %v1258, 1.442695
    %v1260 = vpow.pop %v1259
    %v1261 = vadd.f32 %v1260, 1.0
    %v1262 = vrcp.pop %v1261
    %v1263 = vmul.f32 1.0, %v1262
    %1265 = vrot.lane.b32.xlu0 %v1257, 32
    %v1266 = vpop.permute.xlu0 %1265
    %v1268 = vmul.f32 %v1263, %v1266
    %1270 = vrot.lane.b32.xlu0 %v1268, 64
    %v1271 = vpop.permute.xlu0 %1270
    %v1273 = vadd.f32 %v1257, %v1271
    %v1274 = vtanh.pop %v1273
    %v1275 = vsub.f32 1.0, %v1263
    %1277 = vrot.lane.b32.xlu0 %v1274, 96
    %v1278 = vpop.permute.xlu0 %1277
    %v1280 = vmul.f32 %v1275, %v1278
    %v1281 = vmul.f32 %v1263, %v909
    %v1282 = vadd.f32 %v1280, %v1281
    %1284 = vrot.lane.b32.xlu0 %v1282, 96
    %v1285 = vpop.permute.xlu0 %1284
    %1287 = vst.msk [vmem:[#allocation4 + $0x2] sm:$0x1] %vm540, %v1285
    %1288 = vst.msk [vmem:[#allocation5 + $0x2] sm:$0x1] %vm256, %v1016
    %v1289 = vld [vmem:[%s5] sm:$0xff]
    %v1290 = vld [vmem:[%s5 + $0x8] sm:$0xff]
    %v1291 = vld [vmem:[%s5 + $0x10] sm:$0xff]
    %v1292 = vld [vmem:[%s5 + $0x18] sm:$0xff]
    %v1293 = vld [vmem:[%s5 + $0x20] sm:$0xff]
    %v1294 = vld [vmem:[%s5 + $0x28] sm:$0xff]
    %v1295 = vld [vmem:[%s5 + $0x30] sm:$0xff]
    %v1296 = vld [vmem:[%s5 + $0x38] sm:$0xff]
    %v1297 = vld [vmem:[%s6] sm:$0x3]
    %v1299 = vlaneseq
    %v1300 = vshrl.u32 %v1299, 7
    %v1301 = vsub.s32 0, %v1300
    %v1302 = vrot.slane %v1297, %v1301
    %v1303 = vlaneseq
    %v1304 = vshrl.u32 %v1303, 7
    %v1305 = vsub.s32 1, %v1304
    %v1306 = vrot.slane %v1297, %v1305
    %v1309 = vsel %vm78, %v1285, 0
    %1311 = vmatprep.subr.mxu0 %v1290
    %1312 = vmatpush1.msra.mxu0 %v1289
    %1313 = vmatprep.subr.mxu0 %v1292
    %1314 = vmatpush1.msra.mxu0 %v1291
    %1315 = vmatprep.subr.mxu0 %v1294
    %1316 = vmatpush1.msra.mxu0 %v1293
    %1317 = vmatprep.subr.mxu0 %v1296
    %1318 = vmatpush1.msra.mxu0 %v1295
    %1319 = vmatprep.subr.mxu0 0.0
    %1320 = vmatpush1.msra.mxu0 0.0
    %1321 = vmatprep.subr.mxu0 0.0
    %1322 = vmatpush1.msra.mxu0 0.0
    %1323 = vmatprep.subr.mxu0 0.0
    %1324 = vmatpush1.msra.mxu0 0.0
    %1325 = vmatprep.subr.mxu0 0.0
    %1326 = vmatpush1.msra.mxu0 0.0
    %1327 = vmatprep.subr.mxu0 0.0
    %1328 = vmatpush1.msra.mxu0 0.0
    %1329 = vmatprep.subr.mxu0 0.0
    %1330 = vmatpush1.msra.mxu0 0.0
    %1331 = vmatprep.subr.mxu0 0.0
    %1332 = vmatpush1.msra.mxu0 0.0
    %1333 = vmatprep.subr.mxu0 0.0
    %1334 = vmatpush1.msra.mxu0 0.0
    %1335 = vmatprep.subr.mxu0 0.0
    %1336 = vmatpush1.msra.mxu0 0.0
    %1337 = vmatprep.subr.mxu0 0.0
    %1338 = vmatpush1.msra.mxu0 0.0
    %1339 = vmatprep.subr.mxu0 0.0
    %1340 = vmatpush1.msra.mxu0 0.0
    %1341 = vmatprep.subr.mxu0 0.0
    %1342 = vmatpush1.msra.mxu0 0.0
    %1343 = vmatprep.subr.mxu0 0.0
    %1344 = vmatpush1.msra.mxu0 0.0
    %1345 = vmatprep.subr.mxu0 0.0
    %1346 = vmatpush1.msra.mxu0 0.0
    %1347 = vmatprep.subr.mxu0 0.0
    %1348 = vmatpush1.msra.mxu0 0.0
    %1349 = vmatprep.subr.mxu0 0.0
    %1350 = vmatpush1.msra.mxu0 0.0
    %1351 = vmatprep.subr.mxu0 0.0
    %1352 = vmatpush1.msra.mxu0 0.0
    %1353 = vmatprep.subr.mxu0 0.0
    %1354 = vmatpush1.msra.mxu0 0.0
    %1355 = vmatprep.subr.mxu0 0.0
    %1356 = vmatpush1.msra.mxu0 0.0
    %1357 = vmatprep.subr.mxu0 0.0
    %1358 = vmatpush1.msra.mxu0 0.0
    %1359 = vmatprep.subr.mxu0 0.0
    %1360 = vmatpush1.msra.mxu0 0.0
    %1361 = vmatprep.subr.mxu0 0.0
    %1362 = vmatpush1.msra.mxu0 0.0
    %1363 = vmatprep.subr.mxu0 0.0
    %1364 = vmatpush1.msra.mxu0 0.0
    %1365 = vmatprep.subr.mxu0 0.0
    %1366 = vmatpush1.msra.mxu0 0.0
    %1367 = vmatprep.subr.mxu0 0.0
    %1368 = vmatpush1.msra.mxu0 0.0
    %1369 = vmatprep.subr.mxu0 0.0
    %1370 = vmatpush1.msra.mxu0 0.0
    %1371 = vmatprep.subr.mxu0 0.0
    %1372 = vmatpush1.msra.mxu0 0.0
    %1373 = vmatprep.subr.mxu0 0.0
    %1374 = vmatpush1.msra.mxu0 0.0
    %1375 = vmatprep.mubr.f32.mxu0 0.0
    %1376 = vmatmul.mubr.f32.gmra.mrb[0].mxu0 %v1309
    %v1377 = vpop.f32.mrb[0].mxu0
    %v1378 = vadd.f32 %v1302, %v1377
    %v1379 = vpop.f32.mrb[0].mxu0
    %v1380 = vadd.f32 %v1306, %v1379
    %1381 = vdwg.mxu0
    %v1382 = vld [vmem:[#allocation2 + $0x3] sm:$0x1]
    %v1383 = vadd.f32 %v1382, %v1380
    %v1384 = vsel %vm256, %v1383, -inf
    %1385 = vmax.xlane.f32.xlu0 %v1384
    %v1386 = vpop.xlane.xlu0 %1385
    %v1387 = vsub.f32 %v1383, %v1386
    %v1388 = vmul.f32 %v1387, 1.442695
    %v1389 = vpow.pop %v1388
    %v1390 = vsel %vm256, %v1389, 0.0
    %1391 = vadd.xlane.f32.xlu0 %v1390
    %v1392 = vpop.xlane.xlu0 %1391
    %v1393 = vrcp.pop %v1392
    %v1394 = vmul.f32 %v1392, %v1393
    %v1395 = vsub.f32 2.0, %v1394
    %v1396 = vmul.f32 %v1393, %v1395
    %v1397 = vld [vmem:[%s0] sm:$0xff]
    %v1398 = vld [vmem:[%s0 + $0x8] sm:$0xff]
    %v1400 = vsel %vm152, %v1389, 0
    %1402 = vmatprep.subr.mxu0 0.0
    %1403 = vmatpush1.msra.mxu0 %v1397
    %1404 = vmatprep.subr.mxu0 0.0
    %1405 = vmatpush1.msra.mxu0 %v1398
    %1406 = vmatprep.subr.mxu0 0.0
    %1407 = vmatpush1.msra.mxu0 0.0
    %1408 = vmatprep.subr.mxu0 0.0
    %1409 = vmatpush1.msra.mxu0 0.0
    %1410 = vmatprep.subr.mxu0 0.0
    %1411 = vmatpush1.msra.mxu0 0.0
    %1412 = vmatprep.subr.mxu0 0.0
    %1413 = vmatpush1.msra.mxu0 0.0
    %1414 = vmatprep.subr.mxu0 0.0
    %1415 = vmatpush1.msra.mxu0 0.0
    %1416 = vmatprep.subr.mxu0 0.0
    %1417 = vmatpush1.msra.mxu0 0.0
    %1418 = vmatprep.subr.mxu0 0.0
    %1419 = vmatpush1.msra.mxu0 0.0
    %1420 = vmatprep.subr.mxu0 0.0
    %1421 = vmatpush1.msra.mxu0 0.0
    %1422 = vmatprep.subr.mxu0 0.0
    %1423 = vmatpush1.msra.mxu0 0.0
    %1424 = vmatprep.subr.mxu0 0.0
    %1425 = vmatpush1.msra.mxu0 0.0
    %1426 = vmatprep.subr.mxu0 0.0
    %1427 = vmatpush1.msra.mxu0 0.0
    %1428 = vmatprep.subr.mxu0 0.0
    %1429 = vmatpush1.msra.mxu0 0.0
    %1430 = vmatprep.subr.mxu0 0.0
    %1431 = vmatpush1.msra.mxu0 0.0
    %1432 = vmatprep.subr.mxu0 0.0
    %1433 = vmatpush1.msra.mxu0 0.0
    %1434 = vmatprep.subr.mxu0 0.0
    %1435 = vmatpush1.msra.mxu0 0.0
    %1436 = vmatprep.subr.mxu0 0.0
    %1437 = vmatpush1.msra.mxu0 0.0
    %1438 = vmatprep.subr.mxu0 0.0
    %1439 = vmatpush1.msra.mxu0 0.0
    %1440 = vmatprep.subr.mxu0 0.0
    %1441 = vmatpush1.msra.mxu0 0.0
    %1442 = vmatprep.subr.mxu0 0.0
    %1443 = vmatpush1.msra.mxu0 0.0
    %1444 = vmatprep.subr.mxu0 0.0
    %1445 = vmatpush1.msra.mxu0 0.0
    %1446 = vmatprep.subr.mxu0 0.0
    %1447 = vmatpush1.msra.mxu0 0.0
    %1448 = vmatprep.subr.mxu0 0.0
    %1449 = vmatpush1.msra.mxu0 0.0
    %1450 = vmatprep.subr.mxu0 0.0
    %1451 = vmatpush1.msra.mxu0 0.0
    %1452 = vmatprep.subr.mxu0 0.0
    %1453 = vmatpush1.msra.mxu0 0.0
    %1454 = vmatprep.subr.mxu0 0.0
    %1455 = vmatpush1.msra.mxu0 0.0
    %1456 = vmatprep.subr.mxu0 0.0
    %1457 = vmatpush1.msra.mxu0 0.0
    %1458 = vmatprep.subr.mxu0 0.0
    %1459 = vmatpush1.msra.mxu0 0.0
    %1460 = vmatprep.subr.mxu0 0.0
    %1461 = vmatpush1.msra.mxu0 0.0
    %1462 = vmatprep.subr.mxu0 0.0
    %1463 = vmatpush1.msra.mxu0 0.0
    %1464 = vmatprep.subr.mxu0 0.0
    %1465 = vmatpush1.msra.mxu0 0.0
    %1466 = vmatprep.mubr.f32.mxu0 0.0
    %1467 = vmatmul.mubr.f32.gmra.mrb[0].mxu0 %v1400
    %v1468 = vpop.f32.mrb[0].mxu0
    %v1469 = vadd.f32 0.0, %v1468
    %v1470 = vpop.f32.mrb[0].mxu0
    %1471 = vdwg.mxu0
    %v1472 = vmul.f32 %v1469, %v1396
    %v1473 = vld [vmem:[#allocation3 + $0x3] sm:$0x1]
    %v1474 = vld [vmem:[#allocation6] sm:$0xff]
    %v1475 = vld [vmem:[#allocation6 + $0x8] sm:$0xff]
    %v1476 = vld [vmem:[#allocation6 + $0x10] sm:$0xff]
    %v1477 = vld [vmem:[#allocation6 + $0x18] sm:$0xff]
    %v1479 = vsel %vm78, %v1472, 0
    %1481 = vmatprep.subr.mxu0 0.0
    %1482 = vmatpush1.msra.mxu0 %v1474
    %1483 = vmatprep.subr.mxu0 0.0
    %1484 = vmatpush1.msra.mxu0 %v1475
    %1485 = vmatprep.subr.mxu0 0.0
    %1486 = vmatpush1.msra.mxu0 %v1476
    %1487 = vmatprep.subr.mxu0 0.0
    %1488 = vmatpush1.msra.mxu0 %v1477
    %1489 = vmatprep.subr.mxu0 0.0
    %1490 = vmatpush1.msra.mxu0 0.0
    %1491 = vmatprep.subr.mxu0 0.0
    %1492 = vmatpush1.msra.mxu0 0.0
    %1493 = vmatprep.subr.mxu0 0.0
    %1494 = vmatpush1.msra.mxu0 0.0
    %1495 = vmatprep.subr.mxu0 0.0
    %1496 = vmatpush1.msra.mxu0 0.0
    %1497 = vmatprep.subr.mxu0 0.0
    %1498 = vmatpush1.msra.mxu0 0.0
    %1499 = vmatprep.subr.mxu0 0.0
    %1500 = vmatpush1.msra.mxu0 0.0
    %1501 = vmatprep.subr.mxu0 0.0
    %1502 = vmatpush1.msra.mxu0 0.0
    %1503 = vmatprep.subr.mxu0 0.0
    %1504 = vmatpush1.msra.mxu0 0.0
    %1505 = vmatprep.subr.mxu0 0.0
    %1506 = vmatpush1.msra.mxu0 0.0
    %1507 = vmatprep.subr.mxu0 0.0
    %1508 = vmatpush1.msra.mxu0 0.0
    %1509 = vmatprep.subr.mxu0 0.0
    %1510 = vmatpush1.msra.mxu0 0.0
    %1511 = vmatprep.subr.mxu0 0.0
    %1512 = vmatpush1.msra.mxu0 0.0
    %1513 = vmatprep.subr.mxu0 0.0
    %1514 = vmatpush1.msra.mxu0 0.0
    %1515 = vmatprep.subr.mxu0 0.0
    %1516 = vmatpush1.msra.mxu0 0.0
    %1517 = vmatprep.subr.mxu0 0.0
    %1518 = vmatpush1.msra.mxu0 0.0
    %1519 = vmatprep.subr.mxu0 0.0
    %1520 = vmatpush1.msra.mxu0 0.0
    %1521 = vmatprep.subr.mxu0 0.0
    %1522 = vmatpush1.msra.mxu0 0.0
    %1523 = vmatprep.subr.mxu0 0.0
    %1524 = vmatpush1.msra.mxu0 0.0
    %1525 = vmatprep.subr.mxu0 0.0
    %1526 = vmatpush1.msra.mxu0 0.0
    %1527 = vmatprep.subr.mxu0 0.0
    %1528 = vmatpush1.msra.mxu0 0.0
    %1529 = vmatprep.subr.mxu0 0.0
    %1530 = vmatpush1.msra.mxu0 0.0
    %1531 = vmatprep.subr.mxu0 0.0
    %1532 = vmatpush1.msra.mxu0 0.0
    %1533 = vmatprep.subr.mxu0 0.0
    %1534 = vmatpush1.msra.mxu0 0.0
    %1535 = vmatprep.subr.mxu0 0.0
    %1536 = vmatpush1.msra.mxu0 0.0
    %1537 = vmatprep.subr.mxu0 0.0
    %1538 = vmatpush1.msra.mxu0 0.0
    %1539 = vmatprep.subr.mxu0 0.0
    %1540 = vmatpush1.msra.mxu0 0.0
    %1541 = vmatprep.subr.mxu0 0.0
    %1542 = vmatpush1.msra.mxu0 0.0
    %1543 = vmatprep.subr.mxu0 0.0
    %1544 = vmatpush1.msra.mxu0 0.0
    %1545 = vmatprep.mubr.f32.mxu0 0.0
    %1546 = vmatmul.mubr.f32.gmra.mrb[0].mxu0 %v1479
    %v1547 = vpop.f32.mrb[0].mxu0
    %v1548 = vadd.f32 0.0, %v1547
    %v1549 = vpop.f32.mrb[0].mxu0
    %1550 = vdwg.mxu0
    %v1551 = vadd.f32 %v1473, %v1548
    %v1552 = vmax.f32 %v1551, 0.0
    %v1553 = vld [vmem:[%s7] sm:$0xff]
    %v1554 = vld [vmem:[%s7 + $0x8] sm:$0xff]
    %v1555 = vld [vmem:[%s7 + $0x10] sm:$0xff]
    %v1556 = vld [vmem:[%s7 + $0x18] sm:$0xff]
    %v1558 = vsel %vm78, %v1552, 0
    %1560 = vmatprep.subr.mxu0 0.0
    %1561 = vmatpush1.msra.mxu0 %v1553
    %1562 = vmatprep.subr.mxu0 0.0
    %1563 = vmatpush1.msra.mxu0 %v1554
    %1564 = vmatprep.subr.mxu0 0.0
    %1565 = vmatpush1.msra.mxu0 %v1555
    %1566 = vmatprep.subr.mxu0 0.0
    %1567 = vmatpush1.msra.mxu0 %v1556
    %1568 = vmatprep.subr.mxu0 0.0
    %1569 = vmatpush1.msra.mxu0 0.0
    %1570 = vmatprep.subr.mxu0 0.0
    %1571 = vmatpush1.msra.mxu0 0.0
    %1572 = vmatprep.subr.mxu0 0.0
    %1573 = vmatpush1.msra.mxu0 0.0
    %1574 = vmatprep.subr.mxu0 0.0
    %1575 = vmatpush1.msra.mxu0 0.0
    %1576 = vmatprep.subr.mxu0 0.0
    %1577 = vmatpush1.msra.mxu0 0.0
    %1578 = vmatprep.subr.mxu0 0.0
    %1579 = vmatpush1.msra.mxu0 0.0
    %1580 = vmatprep.subr.mxu0 0.0
    %1581 = vmatpush1.msra.mxu0 0.0
    %1582 = vmatprep.subr.mxu0 0.0
    %1583 = vmatpush1.msra.mxu0 0.0
    %1584 = vmatprep.subr.mxu0 0.0
    %1585 = vmatpush1.msra.mxu0 0.0
    %1586 = vmatprep.subr.mxu0 0.0
    %1587 = vmatpush1.msra.mxu0 0.0
    %1588 = vmatprep.subr.mxu0 0.0
    %1589 = vmatpush1.msra.mxu0 0.0
    %1590 = vmatprep.subr.mxu0 0.0
    %1591 = vmatpush1.msra.mxu0 0.0
    %1592 = vmatprep.subr.mxu0 0.0
    %1593 = vmatpush1.msra.mxu0 0.0
    %1594 = vmatprep.subr.mxu0 0.0
    %1595 = vmatpush1.msra.mxu0 0.0
    %1596 = vmatprep.subr.mxu0 0.0
    %1597 = vmatpush1.msra.mxu0 0.0
    %1598 = vmatprep.subr.mxu0 0.0
    %1599 = vmatpush1.msra.mxu0 0.0
    %1600 = vmatprep.subr.mxu0 0.0
    %1601 = vmatpush1.msra.mxu0 0.0
    %1602 = vmatprep.subr.mxu0 0.0
    %1603 = vmatpush1.msra.mxu0 0.0
    %1604 = vmatprep.subr.mxu0 0.0
    %1605 = vmatpush1.msra.mxu0 0.0
    %1606 = vmatprep.subr.mxu0 0.0
    %1607 = vmatpush1.msra.mxu0 0.0
    %1608 = vmatprep.subr.mxu0 0.0
    %1609 = vmatpush1.msra.mxu0 0.0
    %1610 = vmatprep.subr.mxu0 0.0
    %1611 = vmatpush1.msra.mxu0 0.0
    %1612 = vmatprep.subr.mxu0 0.0
    %1613 = vmatpush1.msra.mxu0 0.0
    %1614 = vmatprep.subr.mxu0 0.0
    %1615 = vmatpush1.msra.mxu0 0.0
    %1616 = vmatprep.subr.mxu0 0.0
    %1617 = vmatpush1.msra.mxu0 0.0
    %1618 = vmatprep.subr.mxu0 0.0
    %1619 = vmatpush1.msra.mxu0 0.0
    %1620 = vmatprep.subr.mxu0 0.0
    %1621 = vmatpush1.msra.mxu0 0.0
    %1622 = vmatprep.subr.mxu0 0.0
    %1623 = vmatpush1.msra.mxu0 0.0
    %1624 = vmatprep.mubr.f32.mxu0 0.0
    %1625 = vmatmul.mubr.f32.gmra.mrb[0].mxu0 %v1558
    %v1626 = vpop.f32.mrb[0].mxu0
    %v1627 = vadd.f32 0.0, %v1626
    %v1628 = vpop.f32.mrb[0].mxu0
    %1629 = vdwg.mxu0
    %v1630 = vadd.f32 %v1378, %v1627
    %v1631 = vxor.u32 %v1630, 2147483648
    %v1632 = vmul.f32 %v1631, 1.442695
    %v1633 = vpow.pop %v1632
    %v1634 = vadd.f32 %v1633, 1.0
    %v1635 = vrcp.pop %v1634
    %v1636 = vmul.f32 1.0, %v1635
    %1638 = vrot.lane.b32.xlu0 %v1630, 32
    %v1639 = vpop.permute.xlu0 %1638
    %v1641 = vmul.f32 %v1636, %v1639
    %1643 = vrot.lane.b32.xlu0 %v1641, 64
    %v1644 = vpop.permute.xlu0 %1643
    %v1646 = vadd.f32 %v1630, %v1644
    %v1647 = vtanh.pop %v1646
    %v1648 = vsub.f32 1.0, %v1636
    %1650 = vrot.lane.b32.xlu0 %v1647, 96
    %v1651 = vpop.permute.xlu0 %1650
    %v1653 = vmul.f32 %v1648, %v1651
    %v1654 = vmul.f32 %v1636, %v1282
    %v1655 = vadd.f32 %v1653, %v1654
    %1657 = vrot.lane.b32.xlu0 %v1655, 96
    %v1658 = vpop.permute.xlu0 %1657
    %1660 = vst.msk [vmem:[#allocation4 + $0x3] sm:$0x1] %vm540, %v1658
    %1661 = vst.msk [vmem:[#allocation5 + $0x3] sm:$0x1] %vm256, %v1389
    %v1662 = vld [vmem:[%s5] sm:$0xff]
    %v1663 = vld [vmem:[%s5 + $0x8] sm:$0xff]
    %v1664 = vld [vmem:[%s5 + $0x10] sm:$0xff]
    %v1665 = vld [vmem:[%s5 + $0x18] sm:$0xff]
    %v1666 = vld [vmem:[%s5 + $0x20] sm:$0xff]
    %v1667 = vld [vmem:[%s5 + $0x28] sm:$0xff]
    %v1668 = vld [vmem:[%s5 + $0x30] sm:$0xff]
    %v1669 = vld [vmem:[%s5 + $0x38] sm:$0xff]
    %v1670 = vld [vmem:[%s6] sm:$0x3]
    %v1672 = vlaneseq
    %v1673 = vshrl.u32 %v1672, 7
    %v1674 = vsub.s32 0, %v1673
    %v1675 = vrot.slane %v1670, %v1674
    %v1676 = vlaneseq
    %v1677 = vshrl.u32 %v1676, 7
    %v1678 = vsub.s32 1, %v1677
    %v1679 = vrot.slane %v1670, %v1678
    %v1682 = vsel %vm78, %v1658, 0
    %1684 = vmatprep.subr.mxu0 %v1663
    %1685 = vmatpush1.msra.mxu0 %v1662
    %1686 = vmatprep.subr.mxu0 %v1665
    %1687 = vmatpush1.msra.mxu0 %v1664
    %1688 = vmatprep.subr.mxu0 %v1667
    %1689 = vmatpush1.msra.mxu0 %v1666
    %1690 = vmatprep.subr.mxu0 %v1669
    %1691 = vmatpush1.msra.mxu0 %v1668
    %1692 = vmatprep.subr.mxu0 0.0
    %1693 = vmatpush1.msra.mxu0 0.0
    %1694 = vmatprep.subr.mxu0 0.0
    %1695 = vmatpush1.msra.mxu0 0.0
    %1696 = vmatprep.subr.mxu0 0.0
    %1697 = vmatpush1.msra.mxu0 0.0
    %1698 = vmatprep.subr.mxu0 0.0
    %1699 = vmatpush1.msra.mxu0 0.0
    %1700 = vmatprep.subr.mxu0 0.0
    %1701 = vmatpush1.msra.mxu0 0.0
    %1702 = vmatprep.subr.mxu0 0.0
    %1703 = vmatpush1.msra.mxu0 0.0
    %1704 = vmatprep.subr.mxu0 0.0
    %1705 = vmatpush1.msra.mxu0 0.0
    %1706 = vmatprep.subr.mxu0 0.0
    %1707 = vmatpush1.msra.mxu0 0.0
    %1708 = vmatprep.subr.mxu0 0.0
    %1709 = vmatpush1.msra.mxu0 0.0
    %1710 = vmatprep.subr.mxu0 0.0
    %1711 = vmatpush1.msra.mxu0 0.0
    %1712 = vmatprep.subr.mxu0 0.0
    %1713 = vmatpush1.msra.mxu0 0.0
    %1714 = vmatprep.subr.mxu0 0.0
    %1715 = vmatpush1.msra.mxu0 0.0
    %1716 = vmatprep.subr.mxu0 0.0
    %1717 = vmatpush1.msra.mxu0 0.0
    %1718 = vmatprep.subr.mxu0 0.0
    %1719 = vmatpush1.msra.mxu0 0.0
    %1720 = vmatprep.subr.mxu0 0.0
    %1721 = vmatpush1.msra.mxu0 0.0
    %1722 = vmatprep.subr.mxu0 0.0
    %1723 = vmatpush1.msra.mxu0 0.0
    %1724 = vmatprep.subr.mxu0 0.0
    %1725 = vmatpush1.msra.mxu0 0.0
    %1726 = vmatprep.subr.mxu0 0.0
    %1727 = vmatpush1.msra.mxu0 0.0
    %1728 = vmatprep.subr.mxu0 0.0
    %1729 = vmatpush1.msra.mxu0 0.0
    %1730 = vmatprep.subr.mxu0 0.0
    %1731 = vmatpush1.msra.mxu0 0.0
    %1732 = vmatprep.subr.mxu0 0.0
    %1733 = vmatpush1.msra.mxu0 0.0
    %1734 = vmatprep.subr.mxu0 0.0
    %1735 = vmatpush1.msra.mxu0 0.0
    %1736 = vmatprep.subr.mxu0 0.0
    %1737 = vmatpush1.msra.mxu0 0.0
    %1738 = vmatprep.subr.mxu0 0.0
    %1739 = vmatpush1.msra.mxu0 0.0
    %1740 = vmatprep.subr.mxu0 0.0
    %1741 = vmatpush1.msra.mxu0 0.0
    %1742 = vmatprep.subr.mxu0 0.0
    %1743 = vmatpush1.msra.mxu0 0.0
    %1744 = vmatprep.subr.mxu0 0.0
    %1745 = vmatpush1.msra.mxu0 0.0
    %1746 = vmatprep.subr.mxu0 0.0
    %1747 = vmatpush1.msra.mxu0 0.0
    %1748 = vmatprep.mubr.f32.mxu0 0.0
    %1749 = vmatmul.mubr.f32.gmra.mrb[0].mxu0 %v1682
    %v1750 = vpop.f32.mrb[0].mxu0
    %v1751 = vadd.f32 %v1675, %v1750
    %v1752 = vpop.f32.mrb[0].mxu0
    %v1753 = vadd.f32 %v1679, %v1752
    %1754 = vdwg.mxu0
    %v1755 = vld [vmem:[#allocation2 + $0x4] sm:$0x1]
    %v1756 = vadd.f32 %v1755, %v1753
    %v1757 = vsel %vm256, %v1756, -inf
    %1758 = vmax.xlane.f32.xlu0 %v1757
    %v1759 = vpop.xlane.xlu0 %1758
    %v1760 = vsub.f32 %v1756, %v1759
    %v1761 = vmul.f32 %v1760, 1.442695
    %v1762 = vpow.pop %v1761
    %v1763 = vsel %vm256, %v1762, 0.0
    %1764 = vadd.xlane.f32.xlu0 %v1763
    %v1765 = vpop.xlane.xlu0 %1764
    %v1766 = vrcp.pop %v1765
    %v1767 = vmul.f32 %v1765, %v1766
    %v1768 = vsub.f32 2.0, %v1767
    %v1769 = vmul.f32 %v1766, %v1768
    %v1770 = vld [vmem:[%s0] sm:$0xff]
    %v1771 = vld [vmem:[%s0 + $0x8] sm:$0xff]
    %v1773 = vsel %vm152, %v1762, 0
    %1775 = vmatprep.subr.mxu0 0.0
    %1776 = vmatpush1.msra.mxu0 %v1770
    %1777 = vmatprep.subr.mxu0 0.0
    %1778 = vmatpush1.msra.mxu0 %v1771
    %1779 = vmatprep.subr.mxu0 0.0
    %1780 = vmatpush1.msra.mxu0 0.0
    %1781 = vmatprep.subr.mxu0 0.0
    %1782 = vmatpush1.msra.mxu0 0.0
    %1783 = vmatprep.subr.mxu0 0.0
    %1784 = vmatpush1.msra.mxu0 0.0
    %1785 = vmatprep.subr.mxu0 0.0
    %1786 = vmatpush1.msra.mxu0 0.0
    %1787 = vmatprep.subr.mxu0 0.0
    %1788 = vmatpush1.msra.mxu0 0.0
    %1789 = vmatprep.subr.mxu0 0.0
    %1790 = vmatpush1.msra.mxu0 0.0
    %1791 = vmatprep.subr.mxu0 0.0
    %1792 = vmatpush1.msra.mxu0 0.0
    %1793 = vmatprep.subr.mxu0 0.0
    %1794 = vmatpush1.msra.mxu0 0.0
    %1795 = vmatprep.subr.mxu0 0.0
    %1796 = vmatpush1.msra.mxu0 0.0
    %1797 = vmatprep.subr.mxu0 0.0
    %1798 = vmatpush1.msra.mxu0 0.0
    %1799 = vmatprep.subr.mxu0 0.0
    %1800 = vmatpush1.msra.mxu0 0.0
    %1801 = vmatprep.subr.mxu0 0.0
    %1802 = vmatpush1.msra.mxu0 0.0
    %1803 = vmatprep.subr.mxu0 0.0
    %1804 = vmatpush1.msra.mxu0 0.0
    %1805 = vmatprep.subr.mxu0 0.0
    %1806 = vmatpush1.msra.mxu0 0.0
    %1807 = vmatprep.subr.mxu0 0.0
    %1808 = vmatpush1.msra.mxu0 0.0
    %1809 = vmatprep.subr.mxu0 0.0
    %1810 = vmatpush1.msra.mxu0 0.0
    %1811 = vmatprep.subr.mxu0 0.0
    %1812 = vmatpush1.msra.mxu0 0.0
    %1813 = vmatprep.subr.mxu0 0.0
    %1814 = vmatpush1.msra.mxu0 0.0
    %1815 = vmatprep.subr.mxu0 0.0
    %1816 = vmatpush1.msra.mxu0 0.0
    %1817 = vmatprep.subr.mxu0 0.0
    %1818 = vmatpush1.msra.mxu0 0.0
    %1819 = vmatprep.subr.mxu0 0.0
    %1820 = vmatpush1.msra.mxu0 0.0
    %1821 = vmatprep.subr.mxu0 0.0
    %1822 = vmatpush1.msra.mxu0 0.0
    %1823 = vmatprep.subr.mxu0 0.0
    %1824 = vmatpush1.msra.mxu0 0.0
    %1825 = vmatprep.subr.mxu0 0.0
    %1826 = vmatpush1.msra.mxu0 0.0
    %1827 = vmatprep.subr.mxu0 0.0
    %1828 = vmatpush1.msra.mxu0 0.0
    %1829 = vmatprep.subr.mxu0 0.0
    %1830 = vmatpush1.msra.mxu0 0.0
    %1831 = vmatprep.subr.mxu0 0.0
    %1832 = vmatpush1.msra.mxu0 0.0
    %1833 = vmatprep.subr.mxu0 0.0
    %1834 = vmatpush1.msra.mxu0 0.0
    %1835 = vmatprep.subr.mxu0 0.0
    %1836 = vmatpush1.msra.mxu0 0.0
    %1837 = vmatprep.subr.mxu0 0.0
    %1838 = vmatpush1.msra.mxu0 0.0
    %1839 = vmatprep.mubr.f32.mxu0 0.0
    %1840 = vmatmul.mubr.f32.gmra.mrb[0].mxu0 %v1773
    %v1841 = vpop.f32.mrb[0].mxu0
    %v1842 = vadd.f32 0.0, %v1841
    %v1843 = vpop.f32.mrb[0].mxu0
    %1844 = vdwg.mxu0
    %v1845 = vmul.f32 %v1842, %v1769
    %v1846 = vld [vmem:[#allocation3 + $0x4] sm:$0x1]
    %v1847 = vld [vmem:[#allocation6] sm:$0xff]
    %v1848 = vld [vmem:[#allocation6 + $0x8] sm:$0xff]
    %v1849 = vld [vmem:[#allocation6 + $0x10] sm:$0xff]
    %v1850 = vld [vmem:[#allocation6 + $0x18] sm:$0xff]
    %v1852 = vsel %vm78, %v1845, 0
    %1854 = vmatprep.subr.mxu0 0.0
    %1855 = vmatpush1.msra.mxu0 %v1847
    %1856 = vmatprep.subr.mxu0 0.0
    %1857 = vmatpush1.msra.mxu0 %v1848
    %1858 = vmatprep.subr.mxu0 0.0
    %1859 = vmatpush1.msra.mxu0 %v1849
    %1860 = vmatprep.subr.mxu0 0.0
    %1861 = vmatpush1.msra.mxu0 %v1850
    %1862 = vmatprep.subr.mxu0 0.0
    %1863 = vmatpush1.msra.mxu0 0.0
    %1864 = vmatprep.subr.mxu0 0.0
    %1865 = vmatpush1.msra.mxu0 0.0
    %1866 = vmatprep.subr.mxu0 0.0
    %1867 = vmatpush1.msra.mxu0 0.0
    %1868 = vmatprep.subr.mxu0 0.0
    %1869 = vmatpush1.msra.mxu0 0.0
    %1870 = vmatprep.subr.mxu0 0.0
    %1871 = vmatpush1.msra.mxu0 0.0
    %1872 = vmatprep.subr.mxu0 0.0
    %1873 = vmatpush1.msra.mxu0 0.0
    %1874 = vmatprep.subr.mxu0 0.0
    %1875 = vmatpush1.msra.mxu0 0.0
    %1876 = vmatprep.subr.mxu0 0.0
    %1877 = vmatpush1.msra.mxu0 0.0
    %1878 = vmatprep.subr.mxu0 0.0
    %1879 = vmatpush1.msra.mxu0 0.0
    %1880 = vmatprep.subr.mxu0 0.0
    %1881 = vmatpush1.msra.mxu0 0.0
    %1882 = vmatprep.subr.mxu0 0.0
    %1883 = vmatpush1.msra.mxu0 0.0
    %1884 = vmatprep.subr.mxu0 0.0
    %1885 = vmatpush1.msra.mxu0 0.0
    %1886 = vmatprep.subr.mxu0 0.0
    %1887 = vmatpush1.msra.mxu0 0.0
    %1888 = vmatprep.subr.mxu0 0.0
    %1889 = vmatpush1.msra.mxu0 0.0
    %1890 = vmatprep.subr.mxu0 0.0
    %1891 = vmatpush1.msra.mxu0 0.0
    %1892 = vmatprep.subr.mxu0 0.0
    %1893 = vmatpush1.msra.mxu0 0.0
    %1894 = vmatprep.subr.mxu0 0.0
    %1895 = vmatpush1.msra.mxu0 0.0
    %1896 = vmatprep.subr.mxu0 0.0
    %1897 = vmatpush1.msra.mxu0 0.0
    %1898 = vmatprep.subr.mxu0 0.0
    %1899 = vmatpush1.msra.mxu0 0.0
    %1900 = vmatprep.subr.mxu0 0.0
    %1901 = vmatpush1.msra.mxu0 0.0
    %1902 = vmatprep.subr.mxu0 0.0
    %1903 = vmatpush1.msra.mxu0 0.0
    %1904 = vmatprep.subr.mxu0 0.0
    %1905 = vmatpush1.msra.mxu0 0.0
    %1906 = vmatprep.subr.mxu0 0.0
    %1907 = vmatpush1.msra.mxu0 0.0
    %1908 = vmatprep.subr.mxu0 0.0
    %1909 = vmatpush1.msra.mxu0 0.0
    %1910 = vmatprep.subr.mxu0 0.0
    %1911 = vmatpush1.msra.mxu0 0.0
    %1912 = vmatprep.subr.mxu0 0.0
    %1913 = vmatpush1.msra.mxu0 0.0
    %1914 = vmatprep.subr.mxu0 0.0
    %1915 = vmatpush1.msra.mxu0 0.0
    %1916 = vmatprep.subr.mxu0 0.0
    %1917 = vmatpush1.msra.mxu0 0.0
    %1918 = vmatprep.mubr.f32.mxu0 0.0
    %1919 = vmatmul.mubr.f32.gmra.mrb[0].mxu0 %v1852
    %v1920 = vpop.f32.mrb[0].mxu0
    %v1921 = vadd.f32 0.0, %v1920
    %v1922 = vpop.f32.mrb[0].mxu0
    %1923 = vdwg.mxu0
    %v1924 = vadd.f32 %v1846, %v1921
    %v1925 = vmax.f32 %v1924, 0.0
    %v1926 = vld [vmem:[%s7] sm:$0xff]
    %v1927 = vld [vmem:[%s7 + $0x8] sm:$0xff]
    %v1928 = vld [vmem:[%s7 + $0x10] sm:$0xff]
    %v1929 = vld [vmem:[%s7 + $0x18] sm:$0xff]
    %v1931 = vsel %vm78, %v1925, 0
    %1933 = vmatprep.subr.mxu0 0.0
    %1934 = vmatpush1.msra.mxu0 %v1926
    %1935 = vmatprep.subr.mxu0 0.0
    %1936 = vmatpush1.msra.mxu0 %v1927
    %1937 = vmatprep.subr.mxu0 0.0
    %1938 = vmatpush1.msra.mxu0 %v1928
    %1939 = vmatprep.subr.mxu0 0.0
    %1940 = vmatpush1.msra.mxu0 %v1929
    %1941 = vmatprep.subr.mxu0 0.0
    %1942 = vmatpush1.msra.mxu0 0.0
    %1943 = vmatprep.subr.mxu0 0.0
    %1944 = vmatpush1.msra.mxu0 0.0
    %1945 = vmatprep.subr.mxu0 0.0
    %1946 = vmatpush1.msra.mxu0 0.0
    %1947 = vmatprep.subr.mxu0 0.0
    %1948 = vmatpush1.msra.mxu0 0.0
    %1949 = vmatprep.subr.mxu0 0.0
    %1950 = vmatpush1.msra.mxu0 0.0
    %1951 = vmatprep.subr.mxu0 0.0
    %1952 = vmatpush1.msra.mxu0 0.0
    %1953 = vmatprep.subr.mxu0 0.0
    %1954 = vmatpush1.msra.mxu0 0.0
    %1955 = vmatprep.subr.mxu0 0.0
    %1956 = vmatpush1.msra.mxu0 0.0
    %1957 = vmatprep.subr.mxu0 0.0
    %1958 = vmatpush1.msra.mxu0 0.0
    %1959 = vmatprep.subr.mxu0 0.0
    %1960 = vmatpush1.msra.mxu0 0.0
    %1961 = vmatprep.subr.mxu0 0.0
    %1962 = vmatpush1.msra.mxu0 0.0
    %1963 = vmatprep.subr.mxu0 0.0
    %1964 = vmatpush1.msra.mxu0 0.0
    %1965 = vmatprep.subr.mxu0 0.0
    %1966 = vmatpush1.msra.mxu0 0.0
    %1967 = vmatprep.subr.mxu0 0.0
    %1968 = vmatpush1.msra.mxu0 0.0
    %1969 = vmatprep.subr.mxu0 0.0
    %1970 = vmatpush1.msra.mxu0 0.0
    %1971 = vmatprep.subr.mxu0 0.0
    %1972 = vmatpush1.msra.mxu0 0.0
    %1973 = vmatprep.subr.mxu0 0.0
    %1974 = vmatpush1.msra.mxu0 0.0
    %1975 = vmatprep.subr.mxu0 0.0
    %1976 = vmatpush1.msra.mxu0 0.0
    %1977 = vmatprep.subr.mxu0 0.0
    %1978 = vmatpush1.msra.mxu0 0.0
    %1979 = vmatprep.subr.mxu0 0.0
    %1980 = vmatpush1.msra.mxu0 0.0
    %1981 = vmatprep.subr.mxu0 0.0
    %1982 = vmatpush1.msra.mxu0 0.0
    %1983 = vmatprep.subr.mxu0 0.0
    %1984 = vmatpush1.msra.mxu0 0.0
    %1985 = vmatprep.subr.mxu0 0.0
    %1986 = vmatpush1.msra.mxu0 0.0
    %1987 = vmatprep.subr.mxu0 0.0
    %1988 = vmatpush1.msra.mxu0 0.0
    %1989 = vmatprep.subr.mxu0 0.0
    %1990 = vmatpush1.msra.mxu0 0.0
    %1991 = vmatprep.subr.mxu0 0.0
    %1992 = vmatpush1.msra.mxu0 0.0
    %1993 = vmatprep.subr.mxu0 0.0
    %1994 = vmatpush1.msra.mxu0 0.0
    %1995 = vmatprep.subr.mxu0 0.0
    %1996 = vmatpush1.msra.mxu0 0.0
    %1997 = vmatprep.mubr.f32.mxu0 0.0
    %1998 = vmatmul.mubr.f32.gmra.mrb[0].mxu0 %v1931
    %v1999 = vpop.f32.mrb[0].mxu0
    %v2000 = vadd.f32 0.0, %v1999
    %v2001 = vpop.f32.mrb[0].mxu0
    %2002 = vdwg.mxu0
    %v2003 = vadd.f32 %v1751, %v2000
    %v2004 = vxor.u32 %v2003, 2147483648
    %v2005 = vmul.f32 %v2004, 1.442695
    %v2006 = vpow.pop %v2005
    %v2007 = vadd.f32 %v2006, 1.0
    %v2008 = vrcp.pop %v2007
    %v2009 = vmul.f32 1.0, %v2008
    %2011 = vrot.lane.b32.xlu0 %v2003, 32
    %v2012 = vpop.permute.xlu0 %2011
    %v2014 = vmul.f32 %v2009, %v2012
    %2016 = vrot.lane.b32.xlu0 %v2014, 64
    %v2017 = vpop.permute.xlu0 %2016
    %v2019 = vadd.f32 %v2003, %v2017
    %v2020 = vtanh.pop %v2019
    %v2021 = vsub.f32 1.0, %v2009
    %2023 = vrot.lane.b32.xlu0 %v2020, 96
    %v2024 = vpop.permute.xlu0 %2023
    %v2026 = vmul.f32 %v2021, %v2024
    %v2027 = vmul.f32 %v2009, %v1655
    %v2028 = vadd.f32 %v2026, %v2027
    %2030 = vrot.lane.b32.xlu0 %v2028, 96
    %v2031 = vpop.permute.xlu0 %2030
    %2033 = vst.msk [vmem:[#allocation4 + $0x4] sm:$0x1] %vm540, %v2031
    %2034 = vst.msk [vmem:[#allocation5 + $0x4] sm:$0x1] %vm256, %v1762
    %v2035 = vld [vmem:[%s5] sm:$0xff]
    %v2036 = vld [vmem:[%s5 + $0x8] sm:$0xff]
    %v2037 = vld [vmem:[%s5 + $0x10] sm:$0xff]
    %v2038 = vld [vmem:[%s5 + $0x18] sm:$0xff]
    %v2039 = vld [vmem:[%s5 + $0x20] sm:$0xff]
    %v2040 = vld [vmem:[%s5 + $0x28] sm:$0xff]
    %v2041 = vld [vmem:[%s5 + $0x30] sm:$0xff]
    %v2042 = vld [vmem:[%s5 + $0x38] sm:$0xff]
    %v2043 = vld [vmem:[%s6] sm:$0x3]
    %v2045 = vlaneseq
    %v2046 = vshrl.u32 %v2045, 7
    %v2047 = vsub.s32 0, %v2046
    %v2048 = vrot.slane %v2043, %v2047
    %v2049 = vlaneseq
    %v2050 = vshrl.u32 %v2049, 7
    %v2051 = vsub.s32 1, %v2050
    %v2052 = vrot.slane %v2043, %v2051
    %v2055 = vsel %vm78, %v2031, 0
    %2057 = vmatprep.subr.mxu0 %v2036
    %2058 = vmatpush1.msra.mxu0 %v2035
    %2059 = vmatprep.subr.mxu0 %v2038
    %2060 = vmatpush1.msra.mxu0 %v2037
    %2061 = vmatprep.subr.mxu0 %v2040
    %2062 = vmatpush1.msra.mxu0 %v2039
    %2063 = vmatprep.subr.mxu0 %v2042
    %2064 = vmatpush1.msra.mxu0 %v2041
    %2065 = vmatprep.subr.mxu0 0.0
    %2066 = vmatpush1.msra.mxu0 0.0
    %2067 = vmatprep.subr.mxu0 0.0
    %2068 = vmatpush1.msra.mxu0 0.0
    %2069 = vmatprep.subr.mxu0 0.0
    %2070 = vmatpush1.msra.mxu0 0.0
    %2071 = vmatprep.subr.mxu0 0.0
    %2072 = vmatpush1.msra.mxu0 0.0
    %2073 = vmatprep.subr.mxu0 0.0
    %2074 = vmatpush1.msra.mxu0 0.0
    %2075 = vmatprep.subr.mxu0 0.0
    %2076 = vmatpush1.msra.mxu0 0.0
    %2077 = vmatprep.subr.mxu0 0.0
    %2078 = vmatpush1.msra.mxu0 0.0
    %2079 = vmatprep.subr.mxu0 0.0
    %2080 = vmatpush1.msra.mxu0 0.0
    %2081 = vmatprep.subr.mxu0 0.0
    %2082 = vmatpush1.msra.mxu0 0.0
    %2083 = vmatprep.subr.mxu0 0.0
    %2084 = vmatpush1.msra.mxu0 0.0
    %2085 = vmatprep.subr.mxu0 0.0
    %2086 = vmatpush1.msra.mxu0 0.0
    %2087 = vmatprep.subr.mxu0 0.0
    %2088 = vmatpush1.msra.mxu0 0.0
    %2089 = vmatprep.subr.mxu0 0.0
    %2090 = vmatpush1.msra.mxu0 0.0
    %2091 = vmatprep.subr.mxu0 0.0
    %2092 = vmatpush1.msra.mxu0 0.0
    %2093 = vmatprep.subr.mxu0 0.0
    %2094 = vmatpush1.msra.mxu0 0.0
    %2095 = vmatprep.subr.mxu0 0.0
    %2096 = vmatpush1.msra.mxu0 0.0
    %2097 = vmatprep.subr.mxu0 0.0
    %2098 = vmatpush1.msra.mxu0 0.0
    %2099 = vmatprep.subr.mxu0 0.0
    %2100 = vmatpush1.msra.mxu0 0.0
    %2101 = vmatprep.subr.mxu0 0.0
    %2102 = vmatpush1.msra.mxu0 0.0
    %2103 = vmatprep.subr.mxu0 0.0
    %2104 = vmatpush1.msra.mxu0 0.0
    %2105 = vmatprep.subr.mxu0 0.0
    %2106 = vmatpush1.msra.mxu0 0.0
    %2107 = vmatprep.subr.mxu0 0.0
    %2108 = vmatpush1.msra.mxu0 0.0
    %2109 = vmatprep.subr.mxu0 0.0
    %2110 = vmatpush1.msra.mxu0 0.0
    %2111 = vmatprep.subr.mxu0 0.0
    %2112 = vmatpush1.msra.mxu0 0.0
    %2113 = vmatprep.subr.mxu0 0.0
    %2114 = vmatpush1.msra.mxu0 0.0
    %2115 = vmatprep.subr.mxu0 0.0
    %2116 = vmatpush1.msra.mxu0 0.0
    %2117 = vmatprep.subr.mxu0 0.0
    %2118 = vmatpush1.msra.mxu0 0.0
    %2119 = vmatprep.subr.mxu0 0.0
    %2120 = vmatpush1.msra.mxu0 0.0
    %2121 = vmatprep.mubr.f32.mxu0 0.0
    %2122 = vmatmul.mubr.f32.gmra.mrb[0].mxu0 %v2055
    %v2123 = vpop.f32.mrb[0].mxu0
    %v2124 = vadd.f32 %v2048, %v2123
    %v2125 = vpop.f32.mrb[0].mxu0
    %v2126 = vadd.f32 %v2052, %v2125
    %2127 = vdwg.mxu0
    %v2128 = vld [vmem:[#allocation2 + $0x5] sm:$0x1]
    %v2129 = vadd.f32 %v2128, %v2126
    %v2130 = vsel %vm256, %v2129, -inf
    %2131 = vmax.xlane.f32.xlu0 %v2130
    %v2132 = vpop.xlane.xlu0 %2131
    %v2133 = vsub.f32 %v2129, %v2132
    %v2134 = vmul.f32 %v2133, 1.442695
    %v2135 = vpow.pop %v2134
    %v2136 = vsel %vm256, %v2135, 0.0
    %2137 = vadd.xlane.f32.xlu0 %v2136
    %v2138 = vpop.xlane.xlu0 %2137
    %v2139 = vrcp.pop %v2138
    %v2140 = vmul.f32 %v2138, %v2139
    %v2141 = vsub.f32 2.0, %v2140
    %v2142 = vmul.f32 %v2139, %v2141
    %v2143 = vld [vmem:[%s0] sm:$0xff]
    %v2144 = vld [vmem:[%s0 + $0x8] sm:$0xff]
    %v2146 = vsel %vm152, %v2135, 0
    %2148 = vmatprep.subr.mxu0 0.0
    %2149 = vmatpush1.msra.mxu0 %v2143
    %2150 = vmatprep.subr.mxu0 0.0
    %2151 = vmatpush1.msra.mxu0 %v2144
    %2152 = vmatprep.subr.mxu0 0.0
    %2153 = vmatpush1.msra.mxu0 0.0
    %2154 = vmatprep.subr.mxu0 0.0
    %2155 = vmatpush1.msra.mxu0 0.0
    %2156 = vmatprep.subr.mxu0 0.0
    %2157 = vmatpush1.msra.mxu0 0.0
    %2158 = vmatprep.subr.mxu0 0.0
    %2159 = vmatpush1.msra.mxu0 0.0
    %2160 = vmatprep.subr.mxu0 0.0
    %2161 = vmatpush1.msra.mxu0 0.0
    %2162 = vmatprep.subr.mxu0 0.0
    %2163 = vmatpush1.msra.mxu0 0.0
    %2164 = vmatprep.subr.mxu0 0.0
    %2165 = vmatpush1.msra.mxu0 0.0
    %2166 = vmatprep.subr.mxu0 0.0
    %2167 = vmatpush1.msra.mxu0 0.0
    %2168 = vmatprep.subr.mxu0 0.0
    %2169 = vmatpush1.msra.mxu0 0.0
    %2170 = vmatprep.subr.mxu0 0.0
    %2171 = vmatpush1.msra.mxu0 0.0
    %2172 = vmatprep.subr.mxu0 0.0
    %2173 = vmatpush1.msra.mxu0 0.0
    %2174 = vmatprep.subr.mxu0 0.0
    %2175 = vmatpush1.msra.mxu0 0.0
    %2176 = vmatprep.subr.mxu0 0.0
    %2177 = vmatpush1.msra.mxu0 0.0
    %2178 = vmatprep.subr.mxu0 0.0
    %2179 = vmatpush1.msra.mxu0 0.0
    %2180 = vmatprep.subr.mxu0 0.0
    %2181 = vmatpush1.msra.mxu0 0.0
    %2182 = vmatprep.subr.mxu0 0.0
    %2183 = vmatpush1.msra.mxu0 0.0
    %2184 = vmatprep.subr.mxu0 0.0
    %2185 = vmatpush1.msra.mxu0 0.0
    %2186 = vmatprep.subr.mxu0 0.0
    %2187 = vmatpush1.msra.mxu0 0.0
    %2188 = vmatprep.subr.mxu0 0.0
    %2189 = vmatpush1.msra.mxu0 0.0
    %2190 = vmatprep.subr.mxu0 0.0
    %2191 = vmatpush1.msra.mxu0 0.0
    %2192 = vmatprep.subr.mxu0 0.0
    %2193 = vmatpush1.msra.mxu0 0.0
    %2194 = vmatprep.subr.mxu0 0.0
    %2195 = vmatpush1.msra.mxu0 0.0
    %2196 = vmatprep.subr.mxu0 0.0
    %2197 = vmatpush1.msra.mxu0 0.0
    %2198 = vmatprep.subr.mxu0 0.0
    %2199 = vmatpush1.msra.mxu0 0.0
    %2200 = vmatprep.subr.mxu0 0.0
    %2201 = vmatpush1.msra.mxu0 0.0
    %2202 = vmatprep.subr.mxu0 0.0
    %2203 = vmatpush1.msra.mxu0 0.0
    %2204 = vmatprep.subr.mxu0 0.0
    %2205 = vmatpush1.msra.mxu0 0.0
    %2206 = vmatprep.subr.mxu0 0.0
    %2207 = vmatpush1.msra.mxu0 0.0
    %2208 = vmatprep.subr.mxu0 0.0
    %2209 = vmatpush1.msra.mxu0 0.0
    %2210 = vmatprep.subr.mxu0 0.0
    %2211 = vmatpush1.msra.mxu0 0.0
    %2212 = vmatprep.mubr.f32.mxu0 0.0
    %2213 = vmatmul.mubr.f32.gmra.mrb[0].mxu0 %v2146
    %v2214 = vpop.f32.mrb[0].mxu0
    %v2215 = vadd.f32 0.0, %v2214
    %v2216 = vpop.f32.mrb[0].mxu0
    %2217 = vdwg.mxu0
    %v2218 = vmul.f32 %v2215, %v2142
    %v2219 = vld [vmem:[#allocation3 + $0x5] sm:$0x1]
    %v2220 = vld [vmem:[#allocation6] sm:$0xff]
    %v2221 = vld [vmem:[#allocation6 + $0x8] sm:$0xff]
    %v2222 = vld [vmem:[#allocation6 + $0x10] sm:$0xff]
    %v2223 = vld [vmem:[#allocation6 + $0x18] sm:$0xff]
    %v2225 = vsel %vm78, %v2218, 0
    %2227 = vmatprep.subr.mxu0 0.0
    %2228 = vmatpush1.msra.mxu0 %v2220
    %2229 = vmatprep.subr.mxu0 0.0
    %2230 = vmatpush1.msra.mxu0 %v2221
    %2231 = vmatprep.subr.mxu0 0.0
    %2232 = vmatpush1.msra.mxu0 %v2222
    %2233 = vmatprep.subr.mxu0 0.0
    %2234 = vmatpush1.msra.mxu0 %v2223
    %2235 = vmatprep.subr.mxu0 0.0
    %2236 = vmatpush1.msra.mxu0 0.0
    %2237 = vmatprep.subr.mxu0 0.0
    %2238 = vmatpush1.msra.mxu0 0.0
    %2239 = vmatprep.subr.mxu0 0.0
    %2240 = vmatpush1.msra.mxu0 0.0
    %2241 = vmatprep.subr.mxu0 0.0
    %2242 = vmatpush1.msra.mxu0 0.0
    %2243 = vmatprep.subr.mxu0 0.0
    %2244 = vmatpush1.msra.mxu0 0.0
    %2245 = vmatprep.subr.mxu0 0.0
    %2246 = vmatpush1.msra.mxu0 0.0
    %2247 = vmatprep.subr.mxu0 0.0
    %2248 = vmatpush1.msra.mxu0 0.0
    %2249 = vmatprep.subr.mxu0 0.0
    %2250 = vmatpush1.msra.mxu0 0.0
    %2251 = vmatprep.subr.mxu0 0.0
    %2252 = vmatpush1.msra.mxu0 0.0
    %2253 = vmatprep.subr.mxu0 0.0
    %2254 = vmatpush1.msra.mxu0 0.0
    %2255 = vmatprep.subr.mxu0 0.0
    %2256 = vmatpush1.msra.mxu0 0.0
    %2257 = vmatprep.subr.mxu0 0.0
    %2258 = vmatpush1.msra.mxu0 0.0
    %2259 = vmatprep.subr.mxu0 0.0
    %2260 = vmatpush1.msra.mxu0 0.0
    %2261 = vmatprep.subr.mxu0 0.0
    %2262 = vmatpush1.msra.mxu0 0.0
    %2263 = vmatprep.subr.mxu0 0.0
    %2264 = vmatpush1.msra.mxu0 0.0
    %2265 = vmatprep.subr.mxu0 0.0
    %2266 = vmatpush1.msra.mxu0 0.0
    %2267 = vmatprep.subr.mxu0 0.0
    %2268 = vmatpush1.msra.mxu0 0.0
    %2269 = vmatprep.subr.mxu0 0.0
    %2270 = vmatpush1.msra.mxu0 0.0
    %2271 = vmatprep.subr.mxu0 0.0
    %2272 = vmatpush1.msra.mxu0 0.0
    %2273 = vmatprep.subr.mxu0 0.0
    %2274 = vmatpush1.msra.mxu0 0.0
    %2275 = vmatprep.subr.mxu0 0.0
    %2276 = vmatpush1.msra.mxu0 0.0
    %2277 = vmatprep.subr.mxu0 0.0
    %2278 = vmatpush1.msra.mxu0 0.0
    %2279 = vmatprep.subr.mxu0 0.0
    %2280 = vmatpush1.msra.mxu0 0.0
    %2281 = vmatprep.subr.mxu0 0.0
    %2282 = vmatpush1.msra.mxu0 0.0
    %2283 = vmatprep.subr.mxu0 0.0
    %2284 = vmatpush1.msra.mxu0 0.0
    %2285 = vmatprep.subr.mxu0 0.0
    %2286 = vmatpush1.msra.mxu0 0.0
    %2287 = vmatprep.subr.mxu0 0.0
    %2288 = vmatpush1.msra.mxu0 0.0
    %2289 = vmatprep.subr.mxu0 0.0
    %2290 = vmatpush1.msra.mxu0 0.0
    %2291 = vmatprep.mubr.f32.mxu0 0.0
    %2292 = vmatmul.mubr.f32.gmra.mrb[0].mxu0 %v2225
    %v2293 = vpop.f32.mrb[0].mxu0
    %v2294 = vadd.f32 0.0, %v2293
    %v2295 = vpop.f32.mrb[0].mxu0
    %2296 = vdwg.mxu0
    %v2297 = vadd.f32 %v2219, %v2294
    %v2298 = vmax.f32 %v2297, 0.0
    %v2299 = vld [vmem:[%s7] sm:$0xff]
    %v2300 = vld [vmem:[%s7 + $0x8] sm:$0xff]
    %v2301 = vld [vmem:[%s7 + $0x10] sm:$0xff]
    %v2302 = vld [vmem:[%s7 + $0x18] sm:$0xff]
    %v2304 = vsel %vm78, %v2298, 0
    %2306 = vmatprep.subr.mxu0 0.0
    %2307 = vmatpush1.msra.mxu0 %v2299
    %2308 = vmatprep.subr.mxu0 0.0
    %2309 = vmatpush1.msra.mxu0 %v2300
    %2310 = vmatprep.subr.mxu0 0.0
    %2311 = vmatpush1.msra.mxu0 %v2301
    %2312 = vmatprep.subr.mxu0 0.0
    %2313 = vmatpush1.msra.mxu0 %v2302
    %2314 = vmatprep.subr.mxu0 0.0
    %2315 = vmatpush1.msra.mxu0 0.0
    %2316 = vmatprep.subr.mxu0 0.0
    %2317 = vmatpush1.msra.mxu0 0.0
    %2318 = vmatprep.subr.mxu0 0.0
    %2319 = vmatpush1.msra.mxu0 0.0
    %2320 = vmatprep.subr.mxu0 0.0
    %2321 = vmatpush1.msra.mxu0 0.0
    %2322 = vmatprep.subr.mxu0 0.0
    %2323 = vmatpush1.msra.mxu0 0.0
    %2324 = vmatprep.subr.mxu0 0.0
    %2325 = vmatpush1.msra.mxu0 0.0
    %2326 = vmatprep.subr.mxu0 0.0
    %2327 = vmatpush1.msra.mxu0 0.0
    %2328 = vmatprep.subr.mxu0 0.0
    %2329 = vmatpush1.msra.mxu0 0.0
    %2330 = vmatprep.subr.mxu0 0.0
    %2331 = vmatpush1.msra.mxu0 0.0
    %2332 = vmatprep.subr.mxu0 0.0
    %2333 = vmatpush1.msra.mxu0 0.0
    %2334 = vmatprep.subr.mxu0 0.0
    %2335 = vmatpush1.msra.mxu0 0.0
    %2336 = vmatprep.subr.mxu0 0.0
    %2337 = vmatpush1.msra.mxu0 0.0
    %2338 = vmatprep.subr.mxu0 0.0
    %2339 = vmatpush1.msra.mxu0 0.0
    %2340 = vmatprep.subr.mxu0 0.0
    %2341 = vmatpush1.msra.mxu0 0.0
    %2342 = vmatprep.subr.mxu0 0.0
    %2343 = vmatpush1.msra.mxu0 0.0
    %2344 = vmatprep.subr.mxu0 0.0
    %2345 = vmatpush1.msra.mxu0 0.0
    %2346 = vmatprep.subr.mxu0 0.0
    %2347 = vmatpush1.msra.mxu0 0.0
    %2348 = vmatprep.subr.mxu0 0.0
    %2349 = vmatpush1.msra.mxu0 0.0
    %2350 = vmatprep.subr.mxu0 0.0
    %2351 = vmatpush1.msra.mxu0 0.0
    %2352 = vmatprep.subr.mxu0 0.0
    %2353 = vmatpush1.msra.mxu0 0.0
    %2354 = vmatprep.subr.mxu0 0.0
    %2355 = vmatpush1.msra.mxu0 0.0
    %2356 = vmatprep.subr.mxu0 0.0
    %2357 = vmatpush1.msra.mxu0 0.0
    %2358 = vmatprep.subr.mxu0 0.0
    %2359 = vmatpush1.msra.mxu0 0.0
    %2360 = vmatprep.subr.mxu0 0.0
    %2361 = vmatpush1.msra.mxu0 0.0
    %2362 = vmatprep.subr.mxu0 0.0
    %2363 = vmatpush1.msra.mxu0 0.0
    %2364 = vmatprep.subr.mxu0 0.0
    %2365 = vmatpush1.msra.mxu0 0.0
    %2366 = vmatprep.subr.mxu0 0.0
    %2367 = vmatpush1.msra.mxu0 0.0
    %2368 = vmatprep.subr.mxu0 0.0
    %2369 = vmatpush1.msra.mxu0 0.0
    %2370 = vmatprep.mubr.f32.mxu0 0.0
    %2371 = vmatmul.mubr.f32.gmra.mrb[0].mxu0 %v2304
    %v2372 = vpop.f32.mrb[0].mxu0
    %v2373 = vadd.f32 0.0, %v2372
    %v2374 = vpop.f32.mrb[0].mxu0
    %2375 = vdwg.mxu0
    %v2376 = vadd.f32 %v2124, %v2373
    %v2377 = vxor.u32 %v2376, 2147483648
    %v2378 = vmul.f32 %v2377, 1.442695
    %v2379 = vpow.pop %v2378
    %v2380 = vadd.f32 %v2379, 1.0
    %v2381 = vrcp.pop %v2380
    %v2382 = vmul.f32 1.0, %v2381
    %2384 = vrot.lane.b32.xlu0 %v2376, 32
    %v2385 = vpop.permute.xlu0 %2384
    %v2387 = vmul.f32 %v2382, %v2385
    %2389 = vrot.lane.b32.xlu0 %v2387, 64
    %v2390 = vpop.permute.xlu0 %2389
    %v2392 = vadd.f32 %v2376, %v2390
    %v2393 = vtanh.pop %v2392
    %v2394 = vsub.f32 1.0, %v2382
    %2396 = vrot.lane.b32.xlu0 %v2393, 96
    %v2397 = vpop.permute.xlu0 %2396
    %v2399 = vmul.f32 %v2394, %v2397
    %v2400 = vmul.f32 %v2382, %v2028
    %v2401 = vadd.f32 %v2399, %v2400
    %2403 = vrot.lane.b32.xlu0 %v2401, 96
    %v2404 = vpop.permute.xlu0 %2403
    %2406 = vst.msk [vmem:[#allocation4 + $0x5] sm:$0x1] %vm540, %v2404
    %2407 = vst.msk [vmem:[#allocation5 + $0x5] sm:$0x1] %vm256, %v2135
    %v2408 = vld [vmem:[%s5] sm:$0xff]
    %v2409 = vld [vmem:[%s5 + $0x8] sm:$0xff]
    %v2410 = vld [vmem:[%s5 + $0x10] sm:$0xff]
    %v2411 = vld [vmem:[%s5 + $0x18] sm:$0xff]
    %v2412 = vld [vmem:[%s5 + $0x20] sm:$0xff]
    %v2413 = vld [vmem:[%s5 + $0x28] sm:$0xff]
    %v2414 = vld [vmem:[%s5 + $0x30] sm:$0xff]
    %v2415 = vld [vmem:[%s5 + $0x38] sm:$0xff]
    %v2416 = vld [vmem:[%s6] sm:$0x3]
    %v2418 = vlaneseq
    %v2419 = vshrl.u32 %v2418, 7
    %v2420 = vsub.s32 0, %v2419
    %v2421 = vrot.slane %v2416, %v2420
    %v2422 = vlaneseq
    %v2423 = vshrl.u32 %v2422, 7
    %v2424 = vsub.s32 1, %v2423
    %v2425 = vrot.slane %v2416, %v2424
    %v2428 = vsel %vm78, %v2404, 0
    %2430 = vmatprep.subr.mxu0 %v2409
    %2431 = vmatpush1.msra.mxu0 %v2408
    %2432 = vmatprep.subr.mxu0 %v2411
    %2433 = vmatpush1.msra.mxu0 %v2410
    %2434 = vmatprep.subr.mxu0 %v2413
    %2435 = vmatpush1.msra.mxu0 %v2412
    %2436 = vmatprep.subr.mxu0 %v2415
    %2437 = vmatpush1.msra.mxu0 %v2414
    %2438 = vmatprep.subr.mxu0 0.0
    %2439 = vmatpush1.msra.mxu0 0.0
    %2440 = vmatprep.subr.mxu0 0.0
    %2441 = vmatpush1.msra.mxu0 0.0
    %2442 = vmatprep.subr.mxu0 0.0
    %2443 = vmatpush1.msra.mxu0 0.0
    %2444 = vmatprep.subr.mxu0 0.0
    %2445 = vmatpush1.msra.mxu0 0.0
    %2446 = vmatprep.subr.mxu0 0.0
    %2447 = vmatpush1.msra.mxu0 0.0
    %2448 = vmatprep.subr.mxu0 0.0
    %2449 = vmatpush1.msra.mxu0 0.0
    %2450 = vmatprep.subr.mxu0 0.0
    %2451 = vmatpush1.msra.mxu0 0.0
    %2452 = vmatprep.subr.mxu0 0.0
    %2453 = vmatpush1.msra.mxu0 0.0
    %2454 = vmatprep.subr.mxu0 0.0
    %2455 = vmatpush1.msra.mxu0 0.0
    %2456 = vmatprep.subr.mxu0 0.0
    %2457 = vmatpush1.msra.mxu0 0.0
    %2458 = vmatprep.subr.mxu0 0.0
    %2459 = vmatpush1.msra.mxu0 0.0
    %2460 = vmatprep.subr.mxu0 0.0
    %2461 = vmatpush1.msra.mxu0 0.0
    %2462 = vmatprep.subr.mxu0 0.0
    %2463 = vmatpush1.msra.mxu0 0.0
    %2464 = vmatprep.subr.mxu0 0.0
    %2465 = vmatpush1.msra.mxu0 0.0
    %2466 = vmatprep.subr.mxu0 0.0
    %2467 = vmatpush1.msra.mxu0 0.0
    %2468 = vmatprep.subr.mxu0 0.0
    %2469 = vmatpush1.msra.mxu0 0.0
    %2470 = vmatprep.subr.mxu0 0.0
    %2471 = vmatpush1.msra.mxu0 0.0
    %2472 = vmatprep.subr.mxu0 0.0
    %2473 = vmatpush1.msra.mxu0 0.0
    %2474 = vmatprep.subr.mxu0 0.0
    %2475 = vmatpush1.msra.mxu0 0.0
    %2476 = vmatprep.subr.mxu0 0.0
    %2477 = vmatpush1.msra.mxu0 0.0
    %2478 = vmatprep.subr.mxu0 0.0
    %2479 = vmatpush1.msra.mxu0 0.0
    %2480 = vmatprep.subr.mxu0 0.0
    %2481 = vmatpush1.msra.mxu0 0.0
    %2482 = vmatprep.subr.mxu0 0.0
    %2483 = vmatpush1.msra.mxu0 0.0
    %2484 = vmatprep.subr.mxu0 0.0
    %2485 = vmatpush1.msra.mxu0 0.0
    %2486 = vmatprep.subr.mxu0 0.0
    %2487 = vmatpush1.msra.mxu0 0.0
    %2488 = vmatprep.subr.mxu0 0.0
    %2489 = vmatpush1.msra.mxu0 0.0
    %2490 = vmatprep.subr.mxu0 0.0
    %2491 = vmatpush1.msra.mxu0 0.0
    %2492 = vmatprep.subr.mxu0 0.0
    %2493 = vmatpush1.msra.mxu0 0.0
    %2494 = vmatprep.mubr.f32.mxu0 0.0
    %2495 = vmatmul.mubr.f32.gmra.mrb[0].mxu0 %v2428
    %v2496 = vpop.f32.mrb[0].mxu0
    %v2497 = vadd.f32 %v2421, %v2496
    %v2498 = vpop.f32.mrb[0].mxu0
    %v2499 = vadd.f32 %v2425, %v2498
    %2500 = vdwg.mxu0
    %v2501 = vld [vmem:[#allocation2 + $0x6] sm:$0x1]
    %v2502 = vadd.f32 %v2501, %v2499
    %v2503 = vsel %vm256, %v2502, -inf
    %2504 = vmax.xlane.f32.xlu0 %v2503
    %v2505 = vpop.xlane.xlu0 %2504
    %v2506 = vsub.f32 %v2502, %v2505
    %v2507 = vmul.f32 %v2506, 1.442695
    %v2508 = vpow.pop %v2507
    %v2509 = vsel %vm256, %v2508, 0.0
    %2510 = vadd.xlane.f32.xlu0 %v2509
    %v2511 = vpop.xlane.xlu0 %2510
    %v2512 = vrcp.pop %v2511
    %v2513 = vmul.f32 %v2511, %v2512
    %v2514 = vsub.f32 2.0, %v2513
    %v2515 = vmul.f32 %v2512, %v2514
    %v2516 = vld [vmem:[%s0] sm:$0xff]
    %v2517 = vld [vmem:[%s0 + $0x8] sm:$0xff]
    %v2519 = vsel %vm152, %v2508, 0
    %2521 = vmatprep.subr.mxu0 0.0
    %2522 = vmatpush1.msra.mxu0 %v2516
    %2523 = vmatprep.subr.mxu0 0.0
    %2524 = vmatpush1.msra.mxu0 %v2517
    %2525 = vmatprep.subr.mxu0 0.0
    %2526 = vmatpush1.msra.mxu0 0.0
    %2527 = vmatprep.subr.mxu0 0.0
    %2528 = vmatpush1.msra.mxu0 0.0
    %2529 = vmatprep.subr.mxu0 0.0
    %2530 = vmatpush1.msra.mxu0 0.0
    %2531 = vmatprep.subr.mxu0 0.0
    %2532 = vmatpush1.msra.mxu0 0.0
    %2533 = vmatprep.subr.mxu0 0.0
    %2534 = vmatpush1.msra.mxu0 0.0
    %2535 = vmatprep.subr.mxu0 0.0
    %2536 = vmatpush1.msra.mxu0 0.0
    %2537 = vmatprep.subr.mxu0 0.0
    %2538 = vmatpush1.msra.mxu0 0.0
    %2539 = vmatprep.subr.mxu0 0.0
    %2540 = vmatpush1.msra.mxu0 0.0
    %2541 = vmatprep.subr.mxu0 0.0
    %2542 = vmatpush1.msra.mxu0 0.0
    %2543 = vmatprep.subr.mxu0 0.0
    %2544 = vmatpush1.msra.mxu0 0.0
    %2545 = vmatprep.subr.mxu0 0.0
    %2546 = vmatpush1.msra.mxu0 0.0
    %2547 = vmatprep.subr.mxu0 0.0
    %2548 = vmatpush1.msra.mxu0 0.0
    %2549 = vmatprep.subr.mxu0 0.0
    %2550 = vmatpush1.msra.mxu0 0.0
    %2551 = vmatprep.subr.mxu0 0.0
    %2552 = vmatpush1.msra.mxu0 0.0
    %2553 = vmatprep.subr.mxu0 0.0
    %2554 = vmatpush1.msra.mxu0 0.0
    %2555 = vmatprep.subr.mxu0 0.0
    %2556 = vmatpush1.msra.mxu0 0.0
    %2557 = vmatprep.subr.mxu0 0.0
    %2558 = vmatpush1.msra.mxu0 0.0
    %2559 = vmatprep.subr.mxu0 0.0
    %2560 = vmatpush1.msra.mxu0 0.0
    %2561 = vmatprep.subr.mxu0 0.0
    %2562 = vmatpush1.msra.mxu0 0.0
    %2563 = vmatprep.subr.mxu0 0.0
    %2564 = vmatpush1.msra.mxu0 0.0
    %2565 = vmatprep.subr.mxu0 0.0
    %2566 = vmatpush1.msra.mxu0 0.0
    %2567 = vmatprep.subr.mxu0 0.0
    %2568 = vmatpush1.msra.mxu0 0.0
    %2569 = vmatprep.subr.mxu0 0.0
    %2570 = vmatpush1.msra.mxu0 0.0
    %2571 = vmatprep.subr.mxu0 0.0
    %2572 = vmatpush1.msra.mxu0 0.0
    %2573 = vmatprep.subr.mxu0 0.0
    %2574 = vmatpush1.msra.mxu0 0.0
    %2575 = vmatprep.subr.mxu0 0.0
    %2576 = vmatpush1.msra.mxu0 0.0
    %2577 = vmatprep.subr.mxu0 0.0
    %2578 = vmatpush1.msra.mxu0 0.0
    %2579 = vmatprep.subr.mxu0 0.0
    %2580 = vmatpush1.msra.mxu0 0.0
    %2581 = vmatprep.subr.mxu0 0.0
    %2582 = vmatpush1.msra.mxu0 0.0
    %2583 = vmatprep.subr.mxu0 0.0
    %2584 = vmatpush1.msra.mxu0 0.0
    %2585 = vmatprep.mubr.f32.mxu0 0.0
    %2586 = vmatmul.mubr.f32.gmra.mrb[0].mxu0 %v2519
    %v2587 = vpop.f32.mrb[0].mxu0
    %v2588 = vadd.f32 0.0, %v2587
    %v2589 = vpop.f32.mrb[0].mxu0
    %2590 = vdwg.mxu0
    %v2591 = vmul.f32 %v2588, %v2515
    %v2592 = vld [vmem:[#allocation3 + $0x6] sm:$0x1]
    %v2593 = vld [vmem:[#allocation6] sm:$0xff]
    %v2594 = vld [vmem:[#allocation6 + $0x8] sm:$0xff]
    %v2595 = vld [vmem:[#allocation6 + $0x10] sm:$0xff]
    %v2596 = vld [vmem:[#allocation6 + $0x18] sm:$0xff]
    %v2598 = vsel %vm78, %v2591, 0
    %2600 = vmatprep.subr.mxu0 0.0
    %2601 = vmatpush1.msra.mxu0 %v2593
    %2602 = vmatprep.subr.mxu0 0.0
    %2603 = vmatpush1.msra.mxu0 %v2594
    %2604 = vmatprep.subr.mxu0 0.0
    %2605 = vmatpush1.msra.mxu0 %v2595
    %2606 = vmatprep.subr.mxu0 0.0
    %2607 = vmatpush1.msra.mxu0 %v2596
    %2608 = vmatprep.subr.mxu0 0.0
    %2609 = vmatpush1.msra.mxu0 0.0
    %2610 = vmatprep.subr.mxu0 0.0
    %2611 = vmatpush1.msra.mxu0 0.0
    %2612 = vmatprep.subr.mxu0 0.0
    %2613 = vmatpush1.msra.mxu0 0.0
    %2614 = vmatprep.subr.mxu0 0.0
    %2615 = vmatpush1.msra.mxu0 0.0
    %2616 = vmatprep.subr.mxu0 0.0
    %2617 = vmatpush1.msra.mxu0 0.0
    %2618 = vmatprep.subr.mxu0 0.0
    %2619 = vmatpush1.msra.mxu0 0.0
    %2620 = vmatprep.subr.mxu0 0.0
    %2621 = vmatpush1.msra.mxu0 0.0
    %2622 = vmatprep.subr.mxu0 0.0
    %2623 = vmatpush1.msra.mxu0 0.0
    %2624 = vmatprep.subr.mxu0 0.0
    %2625 = vmatpush1.msra.mxu0 0.0
    %2626 = vmatprep.subr.mxu0 0.0
    %2627 = vmatpush1.msra.mxu0 0.0
    %2628 = vmatprep.subr.mxu0 0.0
    %2629 = vmatpush1.msra.mxu0 0.0
    %2630 = vmatprep.subr.mxu0 0.0
    %2631 = vmatpush1.msra.mxu0 0.0
    %2632 = vmatprep.subr.mxu0 0.0
    %2633 = vmatpush1.msra.mxu0 0.0
    %2634 = vmatprep.subr.mxu0 0.0
    %2635 = vmatpush1.msra.mxu0 0.0
    %2636 = vmatprep.subr.mxu0 0.0
    %2637 = vmatpush1.msra.mxu0 0.0
    %2638 = vmatprep.subr.mxu0 0.0
    %2639 = vmatpush1.msra.mxu0 0.0
    %2640 = vmatprep.subr.mxu0 0.0
    %2641 = vmatpush1.msra.mxu0 0.0
    %2642 = vmatprep.subr.mxu0 0.0
    %2643 = vmatpush1.msra.mxu0 0.0
    %2644 = vmatprep.subr.mxu0 0.0
    %2645 = vmatpush1.msra.mxu0 0.0
    %2646 = vmatprep.subr.mxu0 0.0
    %2647 = vmatpush1.msra.mxu0 0.0
    %2648 = vmatprep.subr.mxu0 0.0
    %2649 = vmatpush1.msra.mxu0 0.0
    %2650 = vmatprep.subr.mxu0 0.0
    %2651 = vmatpush1.msra.mxu0 0.0
    %2652 = vmatprep.subr.mxu0 0.0
    %2653 = vmatpush1.msra.mxu0 0.0
    %2654 = vmatprep.subr.mxu0 0.0
    %2655 = vmatpush1.msra.mxu0 0.0
    %2656 = vmatprep.subr.mxu0 0.0
    %2657 = vmatpush1.msra.mxu0 0.0
    %2658 = vmatprep.subr.mxu0 0.0
    %2659 = vmatpush1.msra.mxu0 0.0
    %2660 = vmatprep.subr.mxu0 0.0
    %2661 = vmatpush1.msra.mxu0 0.0
    %2662 = vmatprep.subr.mxu0 0.0
    %2663 = vmatpush1.msra.mxu0 0.0
    %2664 = vmatprep.mubr.f32.mxu0 0.0
    %2665 = vmatmul.mubr.f32.gmra.mrb[0].mxu0 %v2598
    %v2666 = vpop.f32.mrb[0].mxu0
    %v2667 = vadd.f32 0.0, %v2666
    %v2668 = vpop.f32.mrb[0].mxu0
    %2669 = vdwg.mxu0
    %v2670 = vadd.f32 %v2592, %v2667
    %v2671 = vmax.f32 %v2670, 0.0
    %v2672 = vld [vmem:[%s7] sm:$0xff]
    %v2673 = vld [vmem:[%s7 + $0x8] sm:$0xff]
    %v2674 = vld [vmem:[%s7 + $0x10] sm:$0xff]
    %v2675 = vld [vmem:[%s7 + $0x18] sm:$0xff]
    %v2677 = vsel %vm78, %v2671, 0
    %2679 = vmatprep.subr.mxu0 0.0
    %2680 = vmatpush1.msra.mxu0 %v2672
    %2681 = vmatprep.subr.mxu0 0.0
    %2682 = vmatpush1.msra.mxu0 %v2673
    %2683 = vmatprep.subr.mxu0 0.0
    %2684 = vmatpush1.msra.mxu0 %v2674
    %2685 = vmatprep.subr.mxu0 0.0
    %2686 = vmatpush1.msra.mxu0 %v2675
    %2687 = vmatprep.subr.mxu0 0.0
    %2688 = vmatpush1.msra.mxu0 0.0
    %2689 = vmatprep.subr.mxu0 0.0
    %2690 = vmatpush1.msra.mxu0 0.0
    %2691 = vmatprep.subr.mxu0 0.0
    %2692 = vmatpush1.msra.mxu0 0.0
    %2693 = vmatprep.subr.mxu0 0.0
    %2694 = vmatpush1.msra.mxu0 0.0
    %2695 = vmatprep.subr.mxu0 0.0
    %2696 = vmatpush1.msra.mxu0 0.0
    %2697 = vmatprep.subr.mxu0 0.0
    %2698 = vmatpush1.msra.mxu0 0.0
    %2699 = vmatprep.subr.mxu0 0.0
    %2700 = vmatpush1.msra.mxu0 0.0
    %2701 = vmatprep.subr.mxu0 0.0
    %2702 = vmatpush1.msra.mxu0 0.0
    %2703 = vmatprep.subr.mxu0 0.0
    %2704 = vmatpush1.msra.mxu0 0.0
    %2705 = vmatprep.subr.mxu0 0.0
    %2706 = vmatpush1.msra.mxu0 0.0
    %2707 = vmatprep.subr.mxu0 0.0
    %2708 = vmatpush1.msra.mxu0 0.0
    %2709 = vmatprep.subr.mxu0 0.0
    %2710 = vmatpush1.msra.mxu0 0.0
    %2711 = vmatprep.subr.mxu0 0.0
    %2712 = vmatpush1.msra.mxu0 0.0
    %2713 = vmatprep.subr.mxu0 0.0
    %2714 = vmatpush1.msra.mxu0 0.0
    %2715 = vmatprep.subr.mxu0 0.0
    %2716 = vmatpush1.msra.mxu0 0.0
    %2717 = vmatprep.subr.mxu0 0.0
    %2718 = vmatpush1.msra.mxu0 0.0
    %2719 = vmatprep.subr.mxu0 0.0
    %2720 = vmatpush1.msra.mxu0 0.0
    %2721 = vmatprep.subr.mxu0 0.0
    %2722 = vmatpush1.msra.mxu0 0.0
    %2723 = vmatprep.subr.mxu0 0.0
    %2724 = vmatpush1.msra.mxu0 0.0
    %2725 = vmatprep.subr.mxu0 0.0
    %2726 = vmatpush1.msra.mxu0 0.0
    %2727 = vmatprep.subr.mxu0 0.0
    %2728 = vmatpush1.msra.mxu0 0.0
    %2729 = vmatprep.subr.mxu0 0.0
    %2730 = vmatpush1.msra.mxu0 0.0
    %2731 = vmatprep.subr.mxu0 0.0
    %2732 = vmatpush1.msra.mxu0 0.0
    %2733 = vmatprep.subr.mxu0 0.0
    %2734 = vmatpush1.msra.mxu0 0.0
    %2735 = vmatprep.subr.mxu0 0.0
    %2736 = vmatpush1.msra.mxu0 0.0
    %2737 = vmatprep.subr.mxu0 0.0
    %2738 = vmatpush1.msra.mxu0 0.0
    %2739 = vmatprep.subr.mxu0 0.0
    %2740 = vmatpush1.msra.mxu0 0.0
    %2741 = vmatprep.subr.mxu0 0.0
    %2742 = vmatpush1.msra.mxu0 0.0
    %2743 = vmatprep.mubr.f32.mxu0 0.0
    %2744 = vmatmul.mubr.f32.gmra.mrb[0].mxu0 %v2677
    %v2745 = vpop.f32.mrb[0].mxu0
    %v2746 = vadd.f32 0.0, %v2745
    %v2747 = vpop.f32.mrb[0].mxu0
    %2748 = vdwg.mxu0
    %v2749 = vadd.f32 %v2497, %v2746
    %v2750 = vxor.u32 %v2749, 2147483648
    %v2751 = vmul.f32 %v2750, 1.442695
    %v2752 = vpow.pop %v2751
    %v2753 = vadd.f32 %v2752, 1.0
    %v2754 = vrcp.pop %v2753
    %v2755 = vmul.f32 1.0, %v2754
    %2757 = vrot.lane.b32.xlu0 %v2749, 32
    %v2758 = vpop.permute.xlu0 %2757
    %v2760 = vmul.f32 %v2755, %v2758
    %2762 = vrot.lane.b32.xlu0 %v2760, 64
    %v2763 = vpop.permute.xlu0 %2762
    %v2765 = vadd.f32 %v2749, %v2763
    %v2766 = vtanh.pop %v2765
    %v2767 = vsub.f32 1.0, %v2755
    %2769 = vrot.lane.b32.xlu0 %v2766, 96
    %v2770 = vpop.permute.xlu0 %2769
    %v2772 = vmul.f32 %v2767, %v2770
    %v2773 = vmul.f32 %v2755, %v2401
    %v2774 = vadd.f32 %v2772, %v2773
    %2776 = vrot.lane.b32.xlu0 %v2774, 96
    %v2777 = vpop.permute.xlu0 %2776
    %2779 = vst.msk [vmem:[#allocation4 + $0x6] sm:$0x1] %vm540, %v2777
    %2780 = vst.msk [vmem:[#allocation5 + $0x6] sm:$0x1] %vm256, %v2508
    %v2781 = vld [vmem:[%s5] sm:$0xff]
    %v2782 = vld [vmem:[%s5 + $0x8] sm:$0xff]
    %v2783 = vld [vmem:[%s5 + $0x10] sm:$0xff]
    %v2784 = vld [vmem:[%s5 + $0x18] sm:$0xff]
    %v2785 = vld [vmem:[%s5 + $0x20] sm:$0xff]
    %v2786 = vld [vmem:[%s5 + $0x28] sm:$0xff]
    %v2787 = vld [vmem:[%s5 + $0x30] sm:$0xff]
    %v2788 = vld [vmem:[%s5 + $0x38] sm:$0xff]
    %v2789 = vld [vmem:[%s6] sm:$0x3]
    %v2791 = vlaneseq
    %v2792 = vshrl.u32 %v2791, 7
    %v2793 = vsub.s32 0, %v2792
    %v2794 = vrot.slane %v2789, %v2793
    %v2795 = vlaneseq
    %v2796 = vshrl.u32 %v2795, 7
    %v2797 = vsub.s32 1, %v2796
    %v2798 = vrot.slane %v2789, %v2797
    %v2801 = vsel %vm78, %v2777, 0
    %2803 = vmatprep.subr.mxu0 %v2782
    %2804 = vmatpush1.msra.mxu0 %v2781
    %2805 = vmatprep.subr.mxu0 %v2784
    %2806 = vmatpush1.msra.mxu0 %v2783
    %2807 = vmatprep.subr.mxu0 %v2786
    %2808 = vmatpush1.msra.mxu0 %v2785
    %2809 = vmatprep.subr.mxu0 %v2788
    %2810 = vmatpush1.msra.mxu0 %v2787
    %2811 = vmatprep.subr.mxu0 0.0
    %2812 = vmatpush1.msra.mxu0 0.0
    %2813 = vmatprep.subr.mxu0 0.0
    %2814 = vmatpush1.msra.mxu0 0.0
    %2815 = vmatprep.subr.mxu0 0.0
    %2816 = vmatpush1.msra.mxu0 0.0
    %2817 = vmatprep.subr.mxu0 0.0
    %2818 = vmatpush1.msra.mxu0 0.0
    %2819 = vmatprep.subr.mxu0 0.0
    %2820 = vmatpush1.msra.mxu0 0.0
    %2821 = vmatprep.subr.mxu0 0.0
    %2822 = vmatpush1.msra.mxu0 0.0
    %2823 = vmatprep.subr.mxu0 0.0
    %2824 = vmatpush1.msra.mxu0 0.0
    %2825 = vmatprep.subr.mxu0 0.0
    %2826 = vmatpush1.msra.mxu0 0.0
    %2827 = vmatprep.subr.mxu0 0.0
    %2828 = vmatpush1.msra.mxu0 0.0
    %2829 = vmatprep.subr.mxu0 0.0
    %2830 = vmatpush1.msra.mxu0 0.0
    %2831 = vmatprep.subr.mxu0 0.0
    %2832 = vmatpush1.msra.mxu0 0.0
    %2833 = vmatprep.subr.mxu0 0.0
    %2834 = vmatpush1.msra.mxu0 0.0
    %2835 = vmatprep.subr.mxu0 0.0
    %2836 = vmatpush1.msra.mxu0 0.0
    %2837 = vmatprep.subr.mxu0 0.0
    %2838 = vmatpush1.msra.mxu0 0.0
    %2839 = vmatprep.subr.mxu0 0.0
    %2840 = vmatpush1.msra.mxu0 0.0
    %2841 = vmatprep.subr.mxu0 0.0
    %2842 = vmatpush1.msra.mxu0 0.0
    %2843 = vmatprep.subr.mxu0 0.0
    %2844 = vmatpush1.msra.mxu0 0.0
    %2845 = vmatprep.subr.mxu0 0.0
    %2846 = vmatpush1.msra.mxu0 0.0
    %2847 = vmatprep.subr.mxu0 0.0
    %2848 = vmatpush1.msra.mxu0 0.0
    %2849 = vmatprep.subr.mxu0 0.0
    %2850 = vmatpush1.msra.mxu0 0.0
    %2851 = vmatprep.subr.mxu0 0.0
    %2852 = vmatpush1.msra.mxu0 0.0
    %2853 = vmatprep.subr.mxu0 0.0
    %2854 = vmatpush1.msra.mxu0 0.0
    %2855 = vmatprep.subr.mxu0 0.0
    %2856 = vmatpush1.msra.mxu0 0.0
    %2857 = vmatprep.subr.mxu0 0.0
    %2858 = vmatpush1.msra.mxu0 0.0
    %2859 = vmatprep.subr.mxu0 0.0
    %2860 = vmatpush1.msra.mxu0 0.0
    %2861 = vmatprep.subr.mxu0 0.0
    %2862 = vmatpush1.msra.mxu0 0.0
    %2863 = vmatprep.subr.mxu0 0.0
    %2864 = vmatpush1.msra.mxu0 0.0
    %2865 = vmatprep.subr.mxu0 0.0
    %2866 = vmatpush1.msra.mxu0 0.0
    %2867 = vmatprep.mubr.f32.mxu0 0.0
    %2868 = vmatmul.mubr.f32.gmra.mrb[0].mxu0 %v2801
    %v2869 = vpop.f32.mrb[0].mxu0
    %v2870 = vadd.f32 %v2794, %v2869
    %v2871 = vpop.f32.mrb[0].mxu0
    %v2872 = vadd.f32 %v2798, %v2871
    %2873 = vdwg.mxu0
    %v2874 = vld [vmem:[#allocation2 + $0x7] sm:$0x1]
    %v2875 = vadd.f32 %v2874, %v2872
    %v2876 = vsel %vm256, %v2875, -inf
    %2877 = vmax.xlane.f32.xlu0 %v2876
    %v2878 = vpop.xlane.xlu0 %2877
    %v2879 = vsub.f32 %v2875, %v2878
    %v2880 = vmul.f32 %v2879, 1.442695
    %v2881 = vpow.pop %v2880
    %v2882 = vsel %vm256, %v2881, 0.0
    %2883 = vadd.xlane.f32.xlu0 %v2882
    %v2884 = vpop.xlane.xlu0 %2883
    %v2885 = vrcp.pop %v2884
    %v2886 = vmul.f32 %v2884, %v2885
    %v2887 = vsub.f32 2.0, %v2886
    %v2888 = vmul.f32 %v2885, %v2887
    %v2889 = vld [vmem:[%s0] sm:$0xff]
    %v2890 = vld [vmem:[%s0 + $0x8] sm:$0xff]
    %v2892 = vsel %vm152, %v2881, 0
    %2894 = vmatprep.subr.mxu0 0.0
    %2895 = vmatpush1.msra.mxu0 %v2889
    %2896 = vmatprep.subr.mxu0 0.0
    %2897 = vmatpush1.msra.mxu0 %v2890
    %2898 = vmatprep.subr.mxu0 0.0
    %2899 = vmatpush1.msra.mxu0 0.0
    %2900 = vmatprep.subr.mxu0 0.0
    %2901 = vmatpush1.msra.mxu0 0.0
    %2902 = vmatprep.subr.mxu0 0.0
    %2903 = vmatpush1.msra.mxu0 0.0
    %2904 = vmatprep.subr.mxu0 0.0
    %2905 = vmatpush1.msra.mxu0 0.0
    %2906 = vmatprep.subr.mxu0 0.0
    %2907 = vmatpush1.msra.mxu0 0.0
    %2908 = vmatprep.subr.mxu0 0.0
    %2909 = vmatpush1.msra.mxu0 0.0
    %2910 = vmatprep.subr.mxu0 0.0
    %2911 = vmatpush1.msra.mxu0 0.0
    %2912 = vmatprep.subr.mxu0 0.0
    %2913 = vmatpush1.msra.mxu0 0.0
    %2914 = vmatprep.subr.mxu0 0.0
    %2915 = vmatpush1.msra.mxu0 0.0
    %2916 = vmatprep.subr.mxu0 0.0
    %2917 = vmatpush1.msra.mxu0 0.0
    %2918 = vmatprep.subr.mxu0 0.0
    %2919 = vmatpush1.msra.mxu0 0.0
    %2920 = vmatprep.subr.mxu0 0.0
    %2921 = vmatpush1.msra.mxu0 0.0
    %2922 = vmatprep.subr.mxu0 0.0
    %2923 = vmatpush1.msra.mxu0 0.0
    %2924 = vmatprep.subr.mxu0 0.0
    %2925 = vmatpush1.msra.mxu0 0.0
    %2926 = vmatprep.subr.mxu0 0.0
    %2927 = vmatpush1.msra.mxu0 0.0
    %2928 = vmatprep.subr.mxu0 0.0
    %2929 = vmatpush1.msra.mxu0 0.0
    %2930 = vmatprep.subr.mxu0 0.0
    %2931 = vmatpush1.msra.mxu0 0.0
    %2932 = vmatprep.subr.mxu0 0.0
    %2933 = vmatpush1.msra.mxu0 0.0
    %2934 = vmatprep.subr.mxu0 0.0
    %2935 = vmatpush1.msra.mxu0 0.0
    %2936 = vmatprep.subr.mxu0 0.0
    %2937 = vmatpush1.msra.mxu0 0.0
    %2938 = vmatprep.subr.mxu0 0.0
    %2939 = vmatpush1.msra.mxu0 0.0
    %2940 = vmatprep.subr.mxu0 0.0
    %2941 = vmatpush1.msra.mxu0 0.0
    %2942 = vmatprep.subr.mxu0 0.0
    %2943 = vmatpush1.msra.mxu0 0.0
    %2944 = vmatprep.subr.mxu0 0.0
    %2945 = vmatpush1.msra.mxu0 0.0
    %2946 = vmatprep.subr.mxu0 0.0
    %2947 = vmatpush1.msra.mxu0 0.0
    %2948 = vmatprep.subr.mxu0 0.0
    %2949 = vmatpush1.msra.mxu0 0.0
    %2950 = vmatprep.subr.mxu0 0.0
    %2951 = vmatpush1.msra.mxu0 0.0
    %2952 = vmatprep.subr.mxu0 0.0
    %2953 = vmatpush1.msra.mxu0 0.0
    %2954 = vmatprep.subr.mxu0 0.0
    %2955 = vmatpush1.msra.mxu0 0.0
    %2956 = vmatprep.subr.mxu0 0.0
    %2957 = vmatpush1.msra.mxu0 0.0
    %2958 = vmatprep.mubr.f32.mxu0 0.0
    %2959 = vmatmul.mubr.f32.gmra.mrb[0].mxu0 %v2892
    %v2960 = vpop.f32.mrb[0].mxu0
    %v2961 = vadd.f32 0.0, %v2960
    %v2962 = vpop.f32.mrb[0].mxu0
    %2963 = vdwg.mxu0
    %v2964 = vmul.f32 %v2961, %v2888
    %v2965 = vld [vmem:[#allocation3 + $0x7] sm:$0x1]
    %v2966 = vld [vmem:[#allocation6] sm:$0xff]
    %v2967 = vld [vmem:[#allocation6 + $0x8] sm:$0xff]
    %v2968 = vld [vmem:[#allocation6 + $0x10] sm:$0xff]
    %v2969 = vld [vmem:[#allocation6 + $0x18] sm:$0xff]
    %v2971 = vsel %vm78, %v2964, 0
    %2973 = vmatprep.subr.mxu0 0.0
    %2974 = vmatpush1.msra.mxu0 %v2966
    %2975 = vmatprep.subr.mxu0 0.0
    %2976 = vmatpush1.msra.mxu0 %v2967
    %2977 = vmatprep.subr.mxu0 0.0
    %2978 = vmatpush1.msra.mxu0 %v2968
    %2979 = vmatprep.subr.mxu0 0.0
    %2980 = vmatpush1.msra.mxu0 %v2969
    %2981 = vmatprep.subr.mxu0 0.0
    %2982 = vmatpush1.msra.mxu0 0.0
    %2983 = vmatprep.subr.mxu0 0.0
    %2984 = vmatpush1.msra.mxu0 0.0
    %2985 = vmatprep.subr.mxu0 0.0
    %2986 = vmatpush1.msra.mxu0 0.0
    %2987 = vmatprep.subr.mxu0 0.0
    %2988 = vmatpush1.msra.mxu0 0.0
    %2989 = vmatprep.subr.mxu0 0.0
    %2990 = vmatpush1.msra.mxu0 0.0
    %2991 = vmatprep.subr.mxu0 0.0
    %2992 = vmatpush1.msra.mxu0 0.0
    %2993 = vmatprep.subr.mxu0 0.0
    %2994 = vmatpush1.msra.mxu0 0.0
    %2995 = vmatprep.subr.mxu0 0.0
    %2996 = vmatpush1.msra.mxu0 0.0
    %2997 = vmatprep.subr.mxu0 0.0
    %2998 = vmatpush1.msra.mxu0 0.0
    %2999 = vmatprep.subr.mxu0 0.0
    %3000 = vmatpush1.msra.mxu0 0.0
    %3001 = vmatprep.subr.mxu0 0.0
    %3002 = vmatpush1.msra.mxu0 0.0
    %3003 = vmatprep.subr.mxu0 0.0
    %3004 = vmatpush1.msra.mxu0 0.0
    %3005 = vmatprep.subr.mxu0 0.0
    %3006 = vmatpush1.msra.mxu0 0.0
    %3007 = vmatprep.subr.mxu0 0.0
    %3008 = vmatpush1.msra.mxu0 0.0
    %3009 = vmatprep.subr.mxu0 0.0
    %3010 = vmatpush1.msra.mxu0 0.0
    %3011 = vmatprep.subr.mxu0 0.0
    %3012 = vmatpush1.msra.mxu0 0.0
    %3013 = vmatprep.subr.mxu0 0.0
    %3014 = vmatpush1.msra.mxu0 0.0
    %3015 = vmatprep.subr.mxu0 0.0
    %3016 = vmatpush1.msra.mxu0 0.0
    %3017 = vmatprep.subr.mxu0 0.0
    %3018 = vmatpush1.msra.mxu0 0.0
    %3019 = vmatprep.subr.mxu0 0.0
    %3020 = vmatpush1.msra.mxu0 0.0
    %3021 = vmatprep.subr.mxu0 0.0
    %3022 = vmatpush1.msra.mxu0 0.0
    %3023 = vmatprep.subr.mxu0 0.0
    %3024 = vmatpush1.msra.mxu0 0.0
    %3025 = vmatprep.subr.mxu0 0.0
    %3026 = vmatpush1.msra.mxu0 0.0
    %3027 = vmatprep.subr.mxu0 0.0
    %3028 = vmatpush1.msra.mxu0 0.0
    %3029 = vmatprep.subr.mxu0 0.0
    %3030 = vmatpush1.msra.mxu0 0.0
    %3031 = vmatprep.subr.mxu0 0.0
    %3032 = vmatpush1.msra.mxu0 0.0
    %3033 = vmatprep.subr.mxu0 0.0
    %3034 = vmatpush1.msra.mxu0 0.0
    %3035 = vmatprep.subr.mxu0 0.0
    %3036 = vmatpush1.msra.mxu0 0.0
    %3037 = vmatprep.mubr.f32.mxu0 0.0
    %3038 = vmatmul.mubr.f32.gmra.mrb[0].mxu0 %v2971
    %v3039 = vpop.f32.mrb[0].mxu0
    %v3040 = vadd.f32 0.0, %v3039
    %v3041 = vpop.f32.mrb[0].mxu0
    %3042 = vdwg.mxu0
    %v3043 = vadd.f32 %v2965, %v3040
    %v3044 = vmax.f32 %v3043, 0.0
    %v3045 = vld [vmem:[%s7] sm:$0xff]
    %v3046 = vld [vmem:[%s7 + $0x8] sm:$0xff]
    %v3047 = vld [vmem:[%s7 + $0x10] sm:$0xff]
    %v3048 = vld [vmem:[%s7 + $0x18] sm:$0xff]
    %v3050 = vsel %vm78, %v3044, 0
    %3052 = vmatprep.subr.mxu0 0.0
    %3053 = vmatpush1.msra.mxu0 %v3045
    %3054 = vmatprep.subr.mxu0 0.0
    %3055 = vmatpush1.msra.mxu0 %v3046
    %3056 = vmatprep.subr.mxu0 0.0
    %3057 = vmatpush1.msra.mxu0 %v3047
    %3058 = vmatprep.subr.mxu0 0.0
    %3059 = vmatpush1.msra.mxu0 %v3048
    %3060 = vmatprep.subr.mxu0 0.0
    %3061 = vmatpush1.msra.mxu0 0.0
    %3062 = vmatprep.subr.mxu0 0.0
    %3063 = vmatpush1.msra.mxu0 0.0
    %3064 = vmatprep.subr.mxu0 0.0
    %3065 = vmatpush1.msra.mxu0 0.0
    %3066 = vmatprep.subr.mxu0 0.0
    %3067 = vmatpush1.msra.mxu0 0.0
    %3068 = vmatprep.subr.mxu0 0.0
    %3069 = vmatpush1.msra.mxu0 0.0
    %3070 = vmatprep.subr.mxu0 0.0
    %3071 = vmatpush1.msra.mxu0 0.0
    %3072 = vmatprep.subr.mxu0 0.0
    %3073 = vmatpush1.msra.mxu0 0.0
    %3074 = vmatprep.subr.mxu0 0.0
    %3075 = vmatpush1.msra.mxu0 0.0
    %3076 = vmatprep.subr.mxu0 0.0
    %3077 = vmatpush1.msra.mxu0 0.0
    %3078 = vmatprep.subr.mxu0 0.0
    %3079 = vmatpush1.msra.mxu0 0.0
    %3080 = vmatprep.subr.mxu0 0.0
    %3081 = vmatpush1.msra.mxu0 0.0
    %3082 = vmatprep.subr.mxu0 0.0
    %3083 = vmatpush1.msra.mxu0 0.0
    %3084 = vmatprep.subr.mxu0 0.0
    %3085 = vmatpush1.msra.mxu0 0.0
    %3086 = vmatprep.subr.mxu0 0.0
    %3087 = vmatpush1.msra.mxu0 0.0
    %3088 = vmatprep.subr.mxu0 0.0
    %3089 = vmatpush1.msra.mxu0 0.0
    %3090 = vmatprep.subr.mxu0 0.0
    %3091 = vmatpush1.msra.mxu0 0.0
    %3092 = vmatprep.subr.mxu0 0.0
    %3093 = vmatpush1.msra.mxu0 0.0
    %3094 = vmatprep.subr.mxu0 0.0
    %3095 = vmatpush1.msra.mxu0 0.0
    %3096 = vmatprep.subr.mxu0 0.0
    %3097 = vmatpush1.msra.mxu0 0.0
    %3098 = vmatprep.subr.mxu0 0.0
    %3099 = vmatpush1.msra.mxu0 0.0
    %3100 = vmatprep.subr.mxu0 0.0
    %3101 = vmatpush1.msra.mxu0 0.0
    %3102 = vmatprep.subr.mxu0 0.0
    %3103 = vmatpush1.msra.mxu0 0.0
    %3104 = vmatprep.subr.mxu0 0.0
    %3105 = vmatpush1.msra.mxu0 0.0
    %3106 = vmatprep.subr.mxu0 0.0
    %3107 = vmatpush1.msra.mxu0 0.0
    %3108 = vmatprep.subr.mxu0 0.0
    %3109 = vmatpush1.msra.mxu0 0.0
    %3110 = vmatprep.subr.mxu0 0.0
    %3111 = vmatpush1.msra.mxu0 0.0
    %3112 = vmatprep.subr.mxu0 0.0
    %3113 = vmatpush1.msra.mxu0 0.0
    %3114 = vmatprep.subr.mxu0 0.0
    %3115 = vmatpush1.msra.mxu0 0.0
    %3116 = vmatprep.mubr.f32.mxu0 0.0
    %3117 = vmatmul.mubr.f32.gmra.mrb[0].mxu0 %v3050
    %v3118 = vpop.f32.mrb[0].mxu0
    %v3119 = vadd.f32 0.0, %v3118
    %v3120 = vpop.f32.mrb[0].mxu0
    %3121 = vdwg.mxu0
    %v3122 = vadd.f32 %v2870, %v3119
    %v3123 = vxor.u32 %v3122, 2147483648
    %v3124 = vmul.f32 %v3123, 1.442695
    %v3125 = vpow.pop %v3124
    %v3126 = vadd.f32 %v3125, 1.0
    %v3127 = vrcp.pop %v3126
    %v3128 = vmul.f32 1.0, %v3127
    %3130 = vrot.lane.b32.xlu0 %v3122, 32
    %v3131 = vpop.permute.xlu0 %3130
    %v3133 = vmul.f32 %v3128, %v3131
    %3135 = vrot.lane.b32.xlu0 %v3133, 64
    %v3136 = vpop.permute.xlu0 %3135
    %v3138 = vadd.f32 %v3122, %v3136
    %v3139 = vtanh.pop %v3138
    %v3140 = vsub.f32 1.0, %v3128
    %3142 = vrot.lane.b32.xlu0 %v3139, 96
    %v3143 = vpop.permute.xlu0 %3142
    %v3145 = vmul.f32 %v3140, %v3143
    %v3146 = vmul.f32 %v3128, %v2774
    %v3147 = vadd.f32 %v3145, %v3146
    %3149 = vrot.lane.b32.xlu0 %v3147, 96
    %v3150 = vpop.permute.xlu0 %3149
    %3152 = vst.msk [vmem:[#allocation4 + $0x7] sm:$0x1] %vm540, %v3150
    %3153 = vst.msk [vmem:[#allocation5 + $0x7] sm:$0x1] %vm256, %v2881
    %v3154 = vld [vmem:[#allocation4] sm:$0xff]
    %v3155 = vld [vmem:[#allocation8] sm:$0xff]
    %v3156 = vld [vmem:[#allocation8 + $0x8] sm:$0xff]
    %v3157 = vld [vmem:[#allocation8 + $0x10] sm:$0xff]
    %v3158 = vld [vmem:[#allocation8 + $0x18] sm:$0xff]
    %v3159 = vld [vmem:[%s10] sm:$0x1]
    %v3161 = vlaneseq
    %v3162 = vshrl.u32 %v3161, 7
    %v3163 = vsub.s32 0, %v3162
    %v3164 = vrot.slane %v3159, %v3163
    %v3167 = vsel %vm78, %v3154, 0
    %3169 = vmatprep.subr.mxu0 0.0
    %3170 = vmatpush1.msra.mxu0 %v3155
    %3171 = vmatprep.subr.mxu0 0.0
    %3172 = vmatpush1.msra.mxu0 %v3156
    %3173 = vmatprep.subr.mxu0 0.0
    %3174 = vmatpush1.msra.mxu0 %v3157
    %3175 = vmatprep.subr.mxu0 0.0
    %3176 = vmatpush1.msra.mxu0 %v3158
    %3177 = vmatprep.subr.mxu0 0.0
    %3178 = vmatpush1.msra.mxu0 0.0
    %3179 = vmatprep.subr.mxu0 0.0
    %3180 = vmatpush1.msra.mxu0 0.0
    %3181 = vmatprep.subr.mxu0 0.0
    %3182 = vmatpush1.msra.mxu0 0.0
    %3183 = vmatprep.subr.mxu0 0.0
    %3184 = vmatpush1.msra.mxu0 0.0
    %3185 = vmatprep.subr.mxu0 0.0
    %3186 = vmatpush1.msra.mxu0 0.0
    %3187 = vmatprep.subr.mxu0 0.0
    %3188 = vmatpush1.msra.mxu0 0.0
    %3189 = vmatprep.subr.mxu0 0.0
    %3190 = vmatpush1.msra.mxu0 0.0
    %3191 = vmatprep.subr.mxu0 0.0
    %3192 = vmatpush1.msra.mxu0 0.0
    %3193 = vmatprep.subr.mxu0 0.0
    %3194 = vmatpush1.msra.mxu0 0.0
    %3195 = vmatprep.subr.mxu0 0.0
    %3196 = vmatpush1.msra.mxu0 0.0
    %3197 = vmatprep.subr.mxu0 0.0
    %3198 = vmatpush1.msra.mxu0 0.0
    %3199 = vmatprep.subr.mxu0 0.0
    %3200 = vmatpush1.msra.mxu0 0.0
    %3201 = vmatprep.subr.mxu0 0.0
    %3202 = vmatpush1.msra.mxu0 0.0
    %3203 = vmatprep.subr.mxu0 0.0
    %3204 = vmatpush1.msra.mxu0 0.0
    %3205 = vmatprep.subr.mxu0 0.0
    %3206 = vmatpush1.msra.mxu0 0.0
    %3207 = vmatprep.subr.mxu0 0.0
    %3208 = vmatpush1.msra.mxu0 0.0
    %3209 = vmatprep.subr.mxu0 0.0
    %3210 = vmatpush1.msra.mxu0 0.0
    %3211 = vmatprep.subr.mxu0 0.0
    %3212 = vmatpush1.msra.mxu0 0.0
    %3213 = vmatprep.subr.mxu0 0.0
    %3214 = vmatpush1.msra.mxu0 0.0
    %3215 = vmatprep.subr.mxu0 0.0
    %3216 = vmatpush1.msra.mxu0 0.0
    %3217 = vmatprep.subr.mxu0 0.0
    %3218 = vmatpush1.msra.mxu0 0.0
    %3219 = vmatprep.subr.mxu0 0.0
    %3220 = vmatpush1.msra.mxu0 0.0
    %3221 = vmatprep.subr.mxu0 0.0
    %3222 = vmatpush1.msra.mxu0 0.0
    %3223 = vmatprep.subr.mxu0 0.0
    %3224 = vmatpush1.msra.mxu0 0.0
    %3225 = vmatprep.subr.mxu0 0.0
    %3226 = vmatpush1.msra.mxu0 0.0
    %3227 = vmatprep.subr.mxu0 0.0
    %3228 = vmatpush1.msra.mxu0 0.0
    %3229 = vmatprep.subr.mxu0 0.0
    %3230 = vmatpush1.msra.mxu0 0.0
    %3231 = vmatprep.subr.mxu0 0.0
    %3232 = vmatpush1.msra.mxu0 0.0
    %3233 = vmatprep.mubr.f32.mxu0 0.0
    %3234 = vmatmul.mubr.f32.gmra.mrb[0].mxu0 %v3167
    %v3235 = vpop.f32.mrb[0].mxu0
    %v3236 = vadd.f32 %v3164, %v3235
    %v3237 = vpop.f32.mrb[0].mxu0
    %3238 = vdwg.mxu0
    %vm3239 = vcmask 523264
    %v3240 = vsel %vm3239, %v3236, -inf
    %3241 = vmax.xlane.f32.xlu0 %v3240
    %v3242 = vpop.xlane.xlu0 %3241
    %v3243 = vsub.f32 %v3236, %v3242
    %v3244 = vmul.f32 %v3243, 1.442695
    %v3245 = vpow.pop %v3244
    %v3246 = vsel %vm3239, %v3245, 0.0
    %3247 = vadd.xlane.f32.xlu0 %v3246
    %v3248 = vpop.xlane.xlu0 %3247
    %v3249 = vlog2.pop %v3248
    %v3250 = vmul.f32 %v3249, 0.6931472
    %v3251 = vsub.f32 %v3243, %v3250
    %v3252 = vld [vmem:[#allocation5] sm:$0xff]
    %v3253 = vsel %vm152, %v3252, 0.0
    %3254 = vadd.xlane.f32.xlu0 %v3253
    %v3255 = vpop.xlane.xlu0 %3254
    %v3256 = vrcp.pop %v3255
    %v3257 = vmul.f32 %v3252, %v3256
    %3258 = vrot.lane.b32.xlu0 %v3154, 64
    %v3259 = vpop.permute.xlu0 %3258
    %3262 = vrot.lane.b32.xlu0 %v3257, 96
    %v3263 = vpop.permute.xlu0 %3262
    %v3265 = vsel %vm3239, %v3251, %v3259
    %vm3266 = vcmask 785408
    %v3267 = vsel %vm3266, %v3265, %v3263
    %vm3268 = vcmask 916480
    %v3269 = vsel %vm3268, %v3267, 0.0
    %3270 = vst [vmem:[%s11] sm:$0xff] %v3269
    // Predicated region
    $region54: #{attn_decoder_forward_seq.1} parent=1 // pred_check
      _
    $region55: #{attn_decoder_forward_seq.1} parent=1 // pred_check_branch
      %3272 = sbr.rel (0) target = $region57
    $region56: #{attn_decoder_forward_seq.1} parent=1 // pred_region
      _
    $region57: #{attn_decoder_forward_seq.1} parent=1 // pred_fallthru
      _
    // Predicated region
    $region58: #{attn_decoder_forward_seq.1} parent=1 // pred_check
      _
    $region59: #{attn_decoder_forward_seq.1} parent=1 // pred_check_branch
      %3274 = sbr.rel (0) target = $region61
    $region60: #{attn_decoder_forward_seq.1} parent=1 // pred_region
      _
    $region61: #{attn_decoder_forward_seq.1} parent=1 // pred_fallthru
      _
    %3275 = vsyncpa [#allocation7], 1
    %3276 = vsyncpa [#allocation9], 1

</llo_original>
